<compile_context>
chip_gen: v7x
topology: tpu7x:2x2x1
jax: 0.10.0
libtpu: 0.0.40
codegen_flags: <defaults>
</compile_context>

<pallas_src>
import jax
import jax.numpy as jnp
from jax.experimental import pallas as pl
from jax.experimental.pallas import tpu as pltpu

BN_EPS = 1e-5


def _conv3x3_bn_relu(xpad, col_ref, w_r, gamma, beta):
    """3x3 conv (stride 1, zero ring already in xpad) + BN(train) + ReLU.

    xpad   : (N, Hp+2, Wp+2, C) f32 value with a zero ring of width 1.
    col_ref: (N*Hp*Wp, 9*C) VMEM scratch holding the im2col matrix.
    w_r    : (9*C, Cout) weights, rows ordered (ky, kx, cin) = HWIO.reshape.
    Returns (N*Hp*Wp, Cout) f32.
    """
    N, Hpp, Wpp, C = xpad.shape
    Hp, Wp = Hpp - 2, Wpp - 2

    # im2col: lay the 9 shifted patches side by side, then one MXU matmul
    # (single pipeline fill/drain instead of 9 accumulating K=C matmuls).
    t = 0
    for dy in range(3):
        for dx in range(3):
            patch = xpad[:, dy:dy + Hp, dx:dx + Wp, :].reshape(N * Hp * Wp, C)
            col_ref[:, t * C:(t + 1) * C] = patch
            t += 1
    acc = jnp.dot(col_ref[...], w_r, preferred_element_type=jnp.float32)

    # BatchNorm2d with batch statistics over (N, H, W), single reduction pass:
    # var = E[x^2] - mean^2, then one fused scale/bias pass + ReLU.
    inv_n = 1.0 / (N * Hp * Wp)
    mean = jnp.sum(acc, axis=0, keepdims=True) * inv_n
    ex2 = jnp.sum(acc * acc, axis=0, keepdims=True) * inv_n
    var = ex2 - mean * mean
    scale = gamma * jax.lax.rsqrt(var + BN_EPS)     # rsqrt -> EUP slot (free-ish)
    bias = beta - mean * scale
    return jnp.maximum(acc * scale + bias, 0.0)


def down_kernel(x6_ref, w1_ref, g1_ref, b1_ref, w2_ref, g2_ref, b2_ref,
                o_ref, pad1_ref, pad2_ref, col1_ref, col2_ref):
    N, Hp, _, Wp, _, Cin = x6_ref.shape
    Cmid = w1_ref.shape[-1]
    Cout = w2_ref.shape[-1]

    # --- 2x2 max pool (pool windows exposed as axes 2 and 4 by the wrapper) --
    pooled = jnp.max(x6_ref[...], axis=(2, 4))            # (N, Hp, Wp, Cin)

    # --- stage 1: conv3x3 + BN + ReLU ---------------------------------------
    # Zero-init scratch + interior store reproduces the padding=1 zero ring.
    pad1_ref[...] = jnp.zeros_like(pad1_ref)
    pad1_ref[:, 1:Hp + 1, 1:Wp + 1, :] = pooled
    y1 = _conv3x3_bn_relu(pad1_ref[...], col1_ref, w1_ref[...],
                          g1_ref[...], b1_ref[...])       # (N*Hp*Wp, Cmid)

    # --- stage 2: conv3x3 + BN + ReLU, read straight from VMEM --------------
    pad2_ref[...] = jnp.zeros_like(pad2_ref)
    pad2_ref[:, 1:Hp + 1, 1:Wp + 1, :] = y1.reshape(N, Hp, Wp, Cmid)
    y2 = _conv3x3_bn_relu(pad2_ref[...], col2_ref, w2_ref[...],
                          g2_ref[...], b2_ref[...])       # (N*Hp*Wp, Cout)

    # Emit NCHW directly: (N, Hp*Wp, Cout) -> (N, Cout, Hp*Wp).
    # Lane-dense output store (Hp*Wp lanes) and no wrapper transpose needed.
    y2 = jnp.transpose(y2.reshape(N, Hp * Wp, Cout), (0, 2, 1))
    o_ref[...] = y2.astype(o_ref.dtype)


def down_forward(x_nchw, params):
    w1, g1, b1, w2, g2, b2 = params
    N, Cin, H, W = x_nchw.shape
    Hp, Wp = H // 2, W // 2
    Cmid, Cout = w1.shape[-1], w2.shape[-1]

    x = jnp.transpose(x_nchw, (0, 2, 3, 1))          # NCHW -> NHWC (tiny XLA op)
    x6 = x.reshape(N, Hp, 2, Wp, 2, Cin)             # expose 2x2 pool windows (free)
    w1r = w1.reshape(9 * Cin, Cmid)                  # HWIO -> (ky,kx,cin) x Cout
    w2r = w2.reshape(9 * Cmid, Cout)

    vspec = pl.BlockSpec(memory_space=pltpu.MemorySpace.VMEM)
    # NOTE(perf): at this toy size a single grid step is correct and fastest;
    # scaling up would need a row-block grid (parallel across TCs) plus a
    # two-pass / cross-tile BN statistics reduction.
    y = pl.pallas_call(
        down_kernel,
        out_shape=jax.ShapeDtypeStruct((N, Cout, Hp * Wp), jnp.float32),
        in_specs=[vspec] * 7,
        out_specs=vspec,
        scratch_shapes=[
            pltpu.VMEM((N, Hp + 2, Wp + 2, Cin), jnp.float32),   # padded pooled (conv1 in)
            pltpu.VMEM((N, Hp + 2, Wp + 2, Cmid), jnp.float32),  # padded y1     (conv2 in)
            pltpu.VMEM((N * Hp * Wp, 9 * Cin), jnp.float32),     # im2col, stage 1
            pltpu.VMEM((N * Hp * Wp, 9 * Cmid), jnp.float32),    # im2col, stage 2
        ],
    )(x6, w1r, g1, b1, w2r, g2, b2)

    return y.reshape(N, Cout, Hp, Wp)                # metadata-only reshape -> NCHW


def ref_forward(x_nchw, params):
    """Pure-JAX reference (XLA conv) for correctness checking."""
    w1, g1, b1, w2, g2, b2 = params
    x = jnp.transpose(x_nchw, (0, 2, 3, 1))
    N, H, W, C = x.shape
    p = x.reshape(N, H // 2, 2, W // 2, 2, C).max(axis=(2, 4))

    def conv_bn_relu(h, w, g, b):
        y = jax.lax.conv_general_dilated(
            h, w, window_strides=(1, 1), padding="SAME",
            dimension_numbers=("NHWC", "HWIO", "NHWC"))
        mean = y.mean(axis=(0, 1, 2))
        var = ((y - mean) ** 2).mean(axis=(0, 1, 2))
        y = (y - mean) * jax.lax.rsqrt(var + BN_EPS) * g.reshape(-1) + b.reshape(-1)
        return jnp.maximum(y, 0.0)

    y = conv_bn_relu(p, w1, g1, b1)
    y = conv_bn_relu(y, w2, g2, b2)
    return jnp.transpose(y, (0, 3, 1, 2))


if __name__ == "__main__":
    key = jax.random.PRNGKey(0)
    k_x, k_w1, k_w2 = jax.random.split(key, 3)

    N, Cin, H, W = 2, 4, 16, 16
    Cout = 8            # Down(4, 8): mid_channels == out_channels == 8

    x = jax.random.normal(k_x, (N, Cin, H, W), jnp.float32)

    # Conv weights in HWIO layout; BN gamma/beta at PyTorch defaults (1, 0).
    w1 = jax.random.normal(k_w1, (3, 3, Cin, Cout), jnp.float32) * 0.1
    w2 = jax.random.normal(k_w2, (3, 3, Cout, Cout), jnp.float32) * 0.1
    g1 = jnp.ones((1, Cout), jnp.float32)
    b1 = jnp.zeros((1, Cout), jnp.float32)
    g2 = jnp.ones((1, Cout), jnp.float32)
    b2 = jnp.zeros((1, Cout), jnp.float32)
    params = (w1, g1, b1, w2, g2, b2)

    fwd = jax.jit(down_forward)
    out = jax.block_until_ready(fwd(x, params))
    ref = jax.block_until_ready(ref_forward(x, params))

    assert out.shape == (N, Cout, H // 2, W // 2), out.shape
    max_err = float(jnp.max(jnp.abs(out - ref)))
    assert max_err < 1e-3, max_err
    print("KERNEL_OK")
</pallas_src>

<mosaic_0001>
module attributes {stable_mosaic.version = 11 : i64} {
  func.func @down_kernel(%arg0: memref<2x8x2x8x2x4xf32, #tpu.memory_space<vmem>>, %arg1: memref<36x8xf32, #tpu.memory_space<vmem>>, %arg2: memref<1x8xf32, #tpu.memory_space<vmem>>, %arg3: memref<1x8xf32, #tpu.memory_space<vmem>>, %arg4: memref<72x8xf32, #tpu.memory_space<vmem>>, %arg5: memref<1x8xf32, #tpu.memory_space<vmem>>, %arg6: memref<1x8xf32, #tpu.memory_space<vmem>>, %arg7: memref<2x8x64xf32, #tpu.memory_space<vmem>>, %arg8: memref<2x10x10x4xf32, #tpu.memory_space<vmem>>, %arg9: memref<2x10x10x8xf32, #tpu.memory_space<vmem>>, %arg10: memref<128x36xf32, #tpu.memory_space<vmem>>, %arg11: memref<128x72xf32, #tpu.memory_space<vmem>>) attributes {dimension_semantics = [], scalar_prefetch = 0 : i64, scratch_operands = 4 : i64, tpu.core_type = #tpu.core_type<tc>} {
    %c0 = arith.constant 0 : index
    %c0_0 = arith.constant 0 : index
    %c0_1 = arith.constant 0 : index
    %c0_2 = arith.constant 0 : index
    %c0_3 = arith.constant 0 : index
    %c0_4 = arith.constant 0 : index
    %0 = vector.load %arg0[%c0, %c0_0, %c0_1, %c0_2, %c0_3, %c0_4] : memref<2x8x2x8x2x4xf32, #tpu.memory_space<vmem>>, vector<2x8x2x8x2x4xf32>
    %cst = arith.constant dense<0xFF800000> : vector<2x8x8x4xf32>
    %1 = vector.multi_reduction <maximumf>, %0, %cst [2, 4] : vector<2x8x2x8x2x4xf32> to vector<2x8x8x4xf32>
    %cst_5 = arith.constant 0.000000e+00 : f32
    %2 = vector.broadcast %cst_5 : f32 to vector<2x10x10x4xf32>
    %c0_6 = arith.constant 0 : index
    %c0_7 = arith.constant 0 : index
    %c0_8 = arith.constant 0 : index
    %c0_9 = arith.constant 0 : index
    %3 = vector.load %arg8[%c0_6, %c0_7, %c0_8, %c0_9] : memref<2x10x10x4xf32, #tpu.memory_space<vmem>>, vector<2x10x10x4xf32>
    tpu.vector_store %arg8[%c0_6, %c0_7, %c0_8, %c0_9], %2 {strides = array<i32>} : memref<2x10x10x4xf32, #tpu.memory_space<vmem>>, vector<2x10x10x4xf32>,
    %c0_10 = arith.constant 0 : index
    %c1 = arith.constant 1 : index
    %c1_11 = arith.constant 1 : index
    %c0_12 = arith.constant 0 : index
    %4 = vector.load %arg8[%c0_10, %c1, %c1_11, %c0_12] : memref<2x10x10x4xf32, #tpu.memory_space<vmem>>, vector<2x8x8x4xf32>
    tpu.vector_store %arg8[%c0_10, %c1, %c1_11, %c0_12], %1 {strides = array<i32>} : memref<2x10x10x4xf32, #tpu.memory_space<vmem>>, vector<2x8x8x4xf32>,
    %c0_13 = arith.constant 0 : index
    %c0_14 = arith.constant 0 : index
    %c0_15 = arith.constant 0 : index
    %c0_16 = arith.constant 0 : index
    %5 = vector.load %arg8[%c0_13, %c0_14, %c0_15, %c0_16] : memref<2x10x10x4xf32, #tpu.memory_space<vmem>>, vector<2x10x10x4xf32>
    %c0_17 = arith.constant 0 : index
    %c0_18 = arith.constant 0 : index
    %6 = vector.load %arg1[%c0_17, %c0_18] : memref<36x8xf32, #tpu.memory_space<vmem>>, vector<36x8xf32>
    %c0_19 = arith.constant 0 : index
    %c0_20 = arith.constant 0 : index
    %7 = vector.load %arg2[%c0_19, %c0_20] : memref<1x8xf32, #tpu.memory_space<vmem>>, vector<1x8xf32>
    %c0_21 = arith.constant 0 : index
    %c0_22 = arith.constant 0 : index
    %8 = vector.load %arg3[%c0_21, %c0_22] : memref<1x8xf32, #tpu.memory_space<vmem>>, vector<1x8xf32>
    %9 = vector.extract_strided_slice %5 {offsets = [0, 0, 0, 0], sizes = [2, 8, 8, 4], strides = [1, 1, 1, 1]} : vector<2x10x10x4xf32> to vector<2x8x8x4xf32>
    %10 = vector.shape_cast %9 : vector<2x8x8x4xf32> to vector<128x4xf32>
    %c0_23 = arith.constant 0 : index
    %c0_24 = arith.constant 0 : index
    %11 = vector.load %arg10[%c0_23, %c0_24] : memref<128x36xf32, #tpu.memory_space<vmem>>, vector<128x4xf32>
    tpu.vector_store %arg10[%c0_23, %c0_24], %10 {strides = array<i32>} : memref<128x36xf32, #tpu.memory_space<vmem>>, vector<128x4xf32>,
    %12 = vector.extract_strided_slice %5 {offsets = [0, 0, 1, 0], sizes = [2, 8, 8, 4], strides = [1, 1, 1, 1]} : vector<2x10x10x4xf32> to vector<2x8x8x4xf32>
    %13 = vector.shape_cast %12 : vector<2x8x8x4xf32> to vector<128x4xf32>
    %c0_25 = arith.constant 0 : index
    %c4 = arith.constant 4 : index
    %14 = vector.load %arg10[%c0_25, %c4] : memref<128x36xf32, #tpu.memory_space<vmem>>, vector<128x4xf32>
    tpu.vector_store %arg10[%c0_25, %c4], %13 {strides = array<i32>} : memref<128x36xf32, #tpu.memory_space<vmem>>, vector<128x4xf32>,
    %15 = vector.extract_strided_slice %5 {offsets = [0, 0, 2, 0], sizes = [2, 8, 8, 4], strides = [1, 1, 1, 1]} : vector<2x10x10x4xf32> to vector<2x8x8x4xf32>
    %16 = vector.shape_cast %15 : vector<2x8x8x4xf32> to vector<128x4xf32>
    %c0_26 = arith.constant 0 : index
    %c8 = arith.constant 8 : index
    %17 = vector.load %arg10[%c0_26, %c8] : memref<128x36xf32, #tpu.memory_space<vmem>>, vector<128x4xf32>
    tpu.vector_store %arg10[%c0_26, %c8], %16 {strides = array<i32>} : memref<128x36xf32, #tpu.memory_space<vmem>>, vector<128x4xf32>,
    %18 = vector.extract_strided_slice %5 {offsets = [0, 1, 0, 0], sizes = [2, 8, 8, 4], strides = [1, 1, 1, 1]} : vector<2x10x10x4xf32> to vector<2x8x8x4xf32>
    %19 = vector.shape_cast %18 : vector<2x8x8x4xf32> to vector<128x4xf32>
    %c0_27 = arith.constant 0 : index
    %c12 = arith.constant 12 : index
    %20 = vector.load %arg10[%c0_27, %c12] : memref<128x36xf32, #tpu.memory_space<vmem>>, vector<128x4xf32>
    tpu.vector_store %arg10[%c0_27, %c12], %19 {strides = array<i32>} : memref<128x36xf32, #tpu.memory_space<vmem>>, vector<128x4xf32>,
    %21 = vector.extract_strided_slice %5 {offsets = [0, 1, 1, 0], sizes = [2, 8, 8, 4], strides = [1, 1, 1, 1]} : vector<2x10x10x4xf32> to vector<2x8x8x4xf32>
    %22 = vector.shape_cast %21 : vector<2x8x8x4xf32> to vector<128x4xf32>
    %c0_28 = arith.constant 0 : index
    %c16 = arith.constant 16 : index
    %23 = vector.load %arg10[%c0_28, %c16] : memref<128x36xf32, #tpu.memory_space<vmem>>, vector<128x4xf32>
    tpu.vector_store %arg10[%c0_28, %c16], %22 {strides = array<i32>} : memref<128x36xf32, #tpu.memory_space<vmem>>, vector<128x4xf32>,
    %24 = vector.extract_strided_slice %5 {offsets = [0, 1, 2, 0], sizes = [2, 8, 8, 4], strides = [1, 1, 1, 1]} : vector<2x10x10x4xf32> to vector<2x8x8x4xf32>
    %25 = vector.shape_cast %24 : vector<2x8x8x4xf32> to vector<128x4xf32>
    %c0_29 = arith.constant 0 : index
    %c20 = arith.constant 20 : index
    %26 = vector.load %arg10[%c0_29, %c20] : memref<128x36xf32, #tpu.memory_space<vmem>>, vector<128x4xf32>
    tpu.vector_store %arg10[%c0_29, %c20], %25 {strides = array<i32>} : memref<128x36xf32, #tpu.memory_space<vmem>>, vector<128x4xf32>,
    %27 = vector.extract_strided_slice %5 {offsets = [0, 2, 0, 0], sizes = [2, 8, 8, 4], strides = [1, 1, 1, 1]} : vector<2x10x10x4xf32> to vector<2x8x8x4xf32>
    %28 = vector.shape_cast %27 : vector<2x8x8x4xf32> to vector<128x4xf32>
    %c0_30 = arith.constant 0 : index
    %c24 = arith.constant 24 : index
    %29 = vector.load %arg10[%c0_30, %c24] : memref<128x36xf32, #tpu.memory_space<vmem>>, vector<128x4xf32>
    tpu.vector_store %arg10[%c0_30, %c24], %28 {strides = array<i32>} : memref<128x36xf32, #tpu.memory_space<vmem>>, vector<128x4xf32>,
    %30 = vector.extract_strided_slice %5 {offsets = [0, 2, 1, 0], sizes = [2, 8, 8, 4], strides = [1, 1, 1, 1]} : vector<2x10x10x4xf32> to vector<2x8x8x4xf32>
    %31 = vector.shape_cast %30 : vector<2x8x8x4xf32> to vector<128x4xf32>
    %c0_31 = arith.constant 0 : index
    %c28 = arith.constant 28 : index
    %32 = vector.load %arg10[%c0_31, %c28] : memref<128x36xf32, #tpu.memory_space<vmem>>, vector<128x4xf32>
    tpu.vector_store %arg10[%c0_31, %c28], %31 {strides = array<i32>} : memref<128x36xf32, #tpu.memory_space<vmem>>, vector<128x4xf32>,
    %33 = vector.extract_strided_slice %5 {offsets = [0, 2, 2, 0], sizes = [2, 8, 8, 4], strides = [1, 1, 1, 1]} : vector<2x10x10x4xf32> to vector<2x8x8x4xf32>
    %34 = vector.shape_cast %33 : vector<2x8x8x4xf32> to vector<128x4xf32>
    %c0_32 = arith.constant 0 : index
    %c32 = arith.constant 32 : index
    %35 = vector.load %arg10[%c0_32, %c32] : memref<128x36xf32, #tpu.memory_space<vmem>>, vector<128x4xf32>
    tpu.vector_store %arg10[%c0_32, %c32], %34 {strides = array<i32>} : memref<128x36xf32, #tpu.memory_space<vmem>>, vector<128x4xf32>,
    %c0_33 = arith.constant 0 : index
    %c0_34 = arith.constant 0 : index
    %36 = vector.load %arg10[%c0_33, %c0_34] : memref<128x36xf32, #tpu.memory_space<vmem>>, vector<128x36xf32>
    %cst_35 = arith.constant dense<0.000000e+00> : vector<128x8xf32>
    %37 = tpu.matmul %36, %6, %cst_35 {dimension_numbers = #tpu.dot_dimension_numbers<[1], [0], [0], [1], [0, 0, 1, 1], [], []>} : vector<128x36xf32>, vector<36x8xf32>, vector<128x8xf32> -> vector<128x8xf32>
    %cst_36 = arith.constant dense<0.000000e+00> : vector<8xf32>
    %38 = vector.multi_reduction <add>, %37, %cst_36 [0] : vector<128x8xf32> to vector<8xf32>
    %39 = vector.shape_cast %38 : vector<8xf32> to vector<1x8xf32>
    %cst_37 = arith.constant 7.812500e-03 : f32
    %40 = vector.broadcast %cst_37 : f32 to vector<1x8xf32>
    %41 = arith.mulf %39, %40 : vector<1x8xf32>
    %42 = arith.mulf %37, %37 : vector<128x8xf32>
    %cst_38 = arith.constant dense<0.000000e+00> : vector<8xf32>
    %43 = vector.multi_reduction <add>, %42, %cst_38 [0] : vector<128x8xf32> to vector<8xf32>
    %44 = vector.shape_cast %43 : vector<8xf32> to vector<1x8xf32>
    %cst_39 = arith.constant 7.812500e-03 : f32
    %45 = vector.broadcast %cst_39 : f32 to vector<1x8xf32>
    %46 = arith.mulf %44, %45 : vector<1x8xf32>
    %47 = arith.mulf %41, %41 : vector<1x8xf32>
    %48 = arith.subf %46, %47 : vector<1x8xf32>
    %cst_40 = arith.constant 9.99999974E-6 : f32
    %49 = vector.broadcast %cst_40 : f32 to vector<1x8xf32>
    %50 = arith.addf %48, %49 : vector<1x8xf32>
    %51 = math.rsqrt %50 : vector<1x8xf32>
    %52 = arith.mulf %7, %51 : vector<1x8xf32>
    %53 = arith.mulf %41, %52 : vector<1x8xf32>
    %54 = arith.subf %8, %53 : vector<1x8xf32>
    %55 = vector.broadcast %52 : vector<1x8xf32> to vector<128x8xf32>
    %56 = arith.mulf %37, %55 : vector<128x8xf32>
    %57 = vector.broadcast %54 : vector<1x8xf32> to vector<128x8xf32>
    %58 = arith.addf %56, %57 : vector<128x8xf32>
    %cst_41 = arith.constant 0.000000e+00 : f32
    %59 = vector.broadcast %cst_41 : f32 to vector<128x8xf32>
    %60 = arith.maximumf %58, %59 : vector<128x8xf32>
    %cst_42 = arith.constant 0.000000e+00 : f32
    %61 = vector.broadcast %cst_42 : f32 to vector<2x10x10x8xf32>
    %c0_43 = arith.constant 0 : index
    %c0_44 = arith.constant 0 : index
    %c0_45 = arith.constant 0 : index
    %c0_46 = arith.constant 0 : index
    %62 = vector.load %arg9[%c0_43, %c0_44, %c0_45, %c0_46] : memref<2x10x10x8xf32, #tpu.memory_space<vmem>>, vector<2x10x10x8xf32>
    tpu.vector_store %arg9[%c0_43, %c0_44, %c0_45, %c0_46], %61 {strides = array<i32>} : memref<2x10x10x8xf32, #tpu.memory_space<vmem>>, vector<2x10x10x8xf32>,
    %63 = vector.shape_cast %60 : vector<128x8xf32> to vector<2x8x8x8xf32>
    %c0_47 = arith.constant 0 : index
    %c1_48 = arith.constant 1 : index
    %c1_49 = arith.constant 1 : index
    %c0_50 = arith.constant 0 : index
    %64 = vector.load %arg9[%c0_47, %c1_48, %c1_49, %c0_50] : memref<2x10x10x8xf32, #tpu.memory_space<vmem>>, vector<2x8x8x8xf32>
    tpu.vector_store %arg9[%c0_47, %c1_48, %c1_49, %c0_50], %63 {strides = array<i32>} : memref<2x10x10x8xf32, #tpu.memory_space<vmem>>, vector<2x8x8x8xf32>,
    %c0_51 = arith.constant 0 : index
    %c0_52 = arith.constant 0 : index
    %c0_53 = arith.constant 0 : index
    %c0_54 = arith.constant 0 : index
    %65 = vector.load %arg9[%c0_51, %c0_52, %c0_53, %c0_54] : memref<2x10x10x8xf32, #tpu.memory_space<vmem>>, vector<2x10x10x8xf32>
    %c0_55 = arith.constant 0 : index
    %c0_56 = arith.constant 0 : index
    %66 = vector.load %arg4[%c0_55, %c0_56] : memref<72x8xf32, #tpu.memory_space<vmem>>, vector<72x8xf32>
    %c0_57 = arith.constant 0 : index
    %c0_58 = arith.constant 0 : index
    %67 = vector.load %arg5[%c0_57, %c0_58] : memref<1x8xf32, #tpu.memory_space<vmem>>, vector<1x8xf32>
    %c0_59 = arith.constant 0 : index
    %c0_60 = arith.constant 0 : index
    %68 = vector.load %arg6[%c0_59, %c0_60] : memref<1x8xf32, #tpu.memory_space<vmem>>, vector<1x8xf32>
    %69 = vector.extract_strided_slice %65 {offsets = [0, 0, 0, 0], sizes = [2, 8, 8, 8], strides = [1, 1, 1, 1]} : vector<2x10x10x8xf32> to vector<2x8x8x8xf32>
    %70 = vector.shape_cast %69 : vector<2x8x8x8xf32> to vector<128x8xf32>
    %c0_61 = arith.constant 0 : index
    %c0_62 = arith.constant 0 : index
    %71 = vector.load %arg11[%c0_61, %c0_62] : memref<128x72xf32, #tpu.memory_space<vmem>>, vector<128x8xf32>
    tpu.vector_store %arg11[%c0_61, %c0_62], %70 {strides = array<i32>} : memref<128x72xf32, #tpu.memory_space<vmem>>, vector<128x8xf32>,
    %72 = vector.extract_strided_slice %65 {offsets = [0, 0, 1, 0], sizes = [2, 8, 8, 8], strides = [1, 1, 1, 1]} : vector<2x10x10x8xf32> to vector<2x8x8x8xf32>
    %73 = vector.shape_cast %72 : vector<2x8x8x8xf32> to vector<128x8xf32>
    %c0_63 = arith.constant 0 : index
    %c8_64 = arith.constant 8 : index
    %74 = vector.load %arg11[%c0_63, %c8_64] : memref<128x72xf32, #tpu.memory_space<vmem>>, vector<128x8xf32>
    tpu.vector_store %arg11[%c0_63, %c8_64], %73 {strides = array<i32>} : memref<128x72xf32, #tpu.memory_space<vmem>>, vector<128x8xf32>,
    %75 = vector.extract_strided_slice %65 {offsets = [0, 0, 2, 0], sizes = [2, 8, 8, 8], strides = [1, 1, 1, 1]} : vector<2x10x10x8xf32> to vector<2x8x8x8xf32>
    %76 = vector.shape_cast %75 : vector<2x8x8x8xf32> to vector<128x8xf32>
    %c0_65 = arith.constant 0 : index
    %c16_66 = arith.constant 16 : index
    %77 = vector.load %arg11[%c0_65, %c16_66] : memref<128x72xf32, #tpu.memory_space<vmem>>, vector<128x8xf32>
    tpu.vector_store %arg11[%c0_65, %c16_66], %76 {strides = array<i32>} : memref<128x72xf32, #tpu.memory_space<vmem>>, vector<128x8xf32>,
    %78 = vector.extract_strided_slice %65 {offsets = [0, 1, 0, 0], sizes = [2, 8, 8, 8], strides = [1, 1, 1, 1]} : vector<2x10x10x8xf32> to vector<2x8x8x8xf32>
    %79 = vector.shape_cast %78 : vector<2x8x8x8xf32> to vector<128x8xf32>
    %c0_67 = arith.constant 0 : index
    %c24_68 = arith.constant 24 : index
    %80 = vector.load %arg11[%c0_67, %c24_68] : memref<128x72xf32, #tpu.memory_space<vmem>>, vector<128x8xf32>
    tpu.vector_store %arg11[%c0_67, %c24_68], %79 {strides = array<i32>} : memref<128x72xf32, #tpu.memory_space<vmem>>, vector<128x8xf32>,
    %81 = vector.extract_strided_slice %65 {offsets = [0, 1, 1, 0], sizes = [2, 8, 8, 8], strides = [1, 1, 1, 1]} : vector<2x10x10x8xf32> to vector<2x8x8x8xf32>
    %82 = vector.shape_cast %81 : vector<2x8x8x8xf32> to vector<128x8xf32>
    %c0_69 = arith.constant 0 : index
    %c32_70 = arith.constant 32 : index
    %83 = vector.load %arg11[%c0_69, %c32_70] : memref<128x72xf32, #tpu.memory_space<vmem>>, vector<128x8xf32>
    tpu.vector_store %arg11[%c0_69, %c32_70], %82 {strides = array<i32>} : memref<128x72xf32, #tpu.memory_space<vmem>>, vector<128x8xf32>,
    %84 = vector.extract_strided_slice %65 {offsets = [0, 1, 2, 0], sizes = [2, 8, 8, 8], strides = [1, 1, 1, 1]} : vector<2x10x10x8xf32> to vector<2x8x8x8xf32>
    %85 = vector.shape_cast %84 : vector<2x8x8x8xf32> to vector<128x8xf32>
    %c0_71 = arith.constant 0 : index
    %c40 = arith.constant 40 : index
    %86 = vector.load %arg11[%c0_71, %c40] : memref<128x72xf32, #tpu.memory_space<vmem>>, vector<128x8xf32>
    tpu.vector_store %arg11[%c0_71, %c40], %85 {strides = array<i32>} : memref<128x72xf32, #tpu.memory_space<vmem>>, vector<128x8xf32>,
    %87 = vector.extract_strided_slice %65 {offsets = [0, 2, 0, 0], sizes = [2, 8, 8, 8], strides = [1, 1, 1, 1]} : vector<2x10x10x8xf32> to vector<2x8x8x8xf32>
    %88 = vector.shape_cast %87 : vector<2x8x8x8xf32> to vector<128x8xf32>
    %c0_72 = arith.constant 0 : index
    %c48 = arith.constant 48 : index
    %89 = vector.load %arg11[%c0_72, %c48] : memref<128x72xf32, #tpu.memory_space<vmem>>, vector<128x8xf32>
    tpu.vector_store %arg11[%c0_72, %c48], %88 {strides = array<i32>} : memref<128x72xf32, #tpu.memory_space<vmem>>, vector<128x8xf32>,
    %90 = vector.extract_strided_slice %65 {offsets = [0, 2, 1, 0], sizes = [2, 8, 8, 8], strides = [1, 1, 1, 1]} : vector<2x10x10x8xf32> to vector<2x8x8x8xf32>
    %91 = vector.shape_cast %90 : vector<2x8x8x8xf32> to vector<128x8xf32>
    %c0_73 = arith.constant 0 : index
    %c56 = arith.constant 56 : index
    %92 = vector.load %arg11[%c0_73, %c56] : memref<128x72xf32, #tpu.memory_space<vmem>>, vector<128x8xf32>
    tpu.vector_store %arg11[%c0_73, %c56], %91 {strides = array<i32>} : memref<128x72xf32, #tpu.memory_space<vmem>>, vector<128x8xf32>,
    %93 = vector.extract_strided_slice %65 {offsets = [0, 2, 2, 0], sizes = [2, 8, 8, 8], strides = [1, 1, 1, 1]} : vector<2x10x10x8xf32> to vector<2x8x8x8xf32>
    %94 = vector.shape_cast %93 : vector<2x8x8x8xf32> to vector<128x8xf32>
    %c0_74 = arith.constant 0 : index
    %c64 = arith.constant 64 : index
    %95 = vector.load %arg11[%c0_74, %c64] : memref<128x72xf32, #tpu.memory_space<vmem>>, vector<128x8xf32>
    tpu.vector_store %arg11[%c0_74, %c64], %94 {strides = array<i32>} : memref<128x72xf32, #tpu.memory_space<vmem>>, vector<128x8xf32>,
    %c0_75 = arith.constant 0 : index
    %c0_76 = arith.constant 0 : index
    %96 = vector.load %arg11[%c0_75, %c0_76] : memref<128x72xf32, #tpu.memory_space<vmem>>, vector<128x72xf32>
    %cst_77 = arith.constant dense<0.000000e+00> : vector<128x8xf32>
    %97 = tpu.matmul %96, %66, %cst_77 {dimension_numbers = #tpu.dot_dimension_numbers<[1], [0], [0], [1], [0, 0, 1, 1], [], []>} : vector<128x72xf32>, vector<72x8xf32>, vector<128x8xf32> -> vector<128x8xf32>
    %cst_78 = arith.constant dense<0.000000e+00> : vector<8xf32>
    %98 = vector.multi_reduction <add>, %97, %cst_78 [0] : vector<128x8xf32> to vector<8xf32>
    %99 = vector.shape_cast %98 : vector<8xf32> to vector<1x8xf32>
    %cst_79 = arith.constant 7.812500e-03 : f32
    %100 = vector.broadcast %cst_79 : f32 to vector<1x8xf32>
    %101 = arith.mulf %99, %100 : vector<1x8xf32>
    %102 = arith.mulf %97, %97 : vector<128x8xf32>
    %cst_80 = arith.constant dense<0.000000e+00> : vector<8xf32>
    %103 = vector.multi_reduction <add>, %102, %cst_80 [0] : vector<128x8xf32> to vector<8xf32>
    %104 = vector.shape_cast %103 : vector<8xf32> to vector<1x8xf32>
    %cst_81 = arith.constant 7.812500e-03 : f32
    %105 = vector.broadcast %cst_81 : f32 to vector<1x8xf32>
    %106 = arith.mulf %104, %105 : vector<1x8xf32>
    %107 = arith.mulf %101, %101 : vector<1x8xf32>
    %108 = arith.subf %106, %107 : vector<1x8xf32>
    %cst_82 = arith.constant 9.99999974E-6 : f32
    %109 = vector.broadcast %cst_82 : f32 to vector<1x8xf32>
    %110 = arith.addf %108, %109 : vector<1x8xf32>
    %111 = math.rsqrt %110 : vector<1x8xf32>
    %112 = arith.mulf %67, %111 : vector<1x8xf32>
    %113 = arith.mulf %101, %112 : vector<1x8xf32>
    %114 = arith.subf %68, %113 : vector<1x8xf32>
    %115 = vector.broadcast %112 : vector<1x8xf32> to vector<128x8xf32>
    %116 = arith.mulf %97, %115 : vector<128x8xf32>
    %117 = vector.broadcast %114 : vector<1x8xf32> to vector<128x8xf32>
    %118 = arith.addf %116, %117 : vector<128x8xf32>
    %cst_83 = arith.constant 0.000000e+00 : f32
    %119 = vector.broadcast %cst_83 : f32 to vector<128x8xf32>
    %120 = arith.maximumf %118, %119 : vector<128x8xf32>
    %121 = vector.shape_cast %120 : vector<128x8xf32> to vector<2x64x8xf32>
    %122 = tpu.transpose %121, [0, 2, 1] : vector<2x64x8xf32> -> vector<2x8x64xf32>
    %c0_84 = arith.constant 0 : index
    %c0_85 = arith.constant 0 : index
    %c0_86 = arith.constant 0 : index
    %123 = vector.load %arg7[%c0_84, %c0_85, %c0_86] : memref<2x8x64xf32, #tpu.memory_space<vmem>>, vector<2x8x64xf32>
    tpu.vector_store %arg7[%c0_84, %c0_85, %c0_86], %122 {strides = array<i32>} : memref<2x8x64xf32, #tpu.memory_space<vmem>>, vector<2x8x64xf32>,
    return
  }
}

</mosaic_0001>

<llo_original>
// kernel: down_forward.1
$region0: #{down_forward.1}
  #allocation0 [shape = 'u32[]', space=smem, size = 0x4, offset = 0x4, fixed_abs, tag = 'smem constant byte address 0x4 - core index']
  #allocation1 [shape = 'u32[144,128]{1,0:T(1,128)}', space=vmem, size = 0x12000, scoped, tag = 'internal scratch']
  #allocation2 [shape = 'f32[2,10,10,4]{3,2,1,0:T(8,128)}', space=vmem, size = 0x28000, scoped, tag = 'scratch operand']
  #allocation3 [shape = 'f32[2,10,10,8]{3,2,1,0:T(8,128)}', space=vmem, size = 0x28000, scoped, tag = 'scratch operand']
  #allocation4 [shape = 'f32[128,36]{1,0:T(8,128)}', space=vmem, size = 0x10000, scoped, tag = 'scratch operand']
  #allocation5 [shape = 'f32[128,72]{1,0:T(8,128)}', space=vmem, size = 0x10000, scoped, tag = 'scratch operand']
  %s0 = inlined_call_operand.vmem [shape: f32[2,8,2,8,2,4], index: 0, kind: input, shape index: {}]
  %s1 = inlined_call_operand.vmem [shape: f32[36,8], index: 1, kind: input, shape index: {}]
  %s2 = inlined_call_operand.vmem [shape: f32[1,8], index: 2, kind: input, shape index: {}]
  %s3 = inlined_call_operand.vmem [shape: f32[1,8], index: 3, kind: input, shape index: {}]
  %s4 = inlined_call_operand.vmem [shape: f32[72,8], index: 4, kind: input, shape index: {}]
  %s5 = inlined_call_operand.vmem [shape: f32[1,8], index: 5, kind: input, shape index: {}]
  %s6 = inlined_call_operand.vmem [shape: f32[1,8], index: 6, kind: input, shape index: {}]
  %s7 = inlined_call_operand.vmem [shape: f32[2,8,64], index: 7, kind: output, shape index: {}]
  %s8 = sld [smem:[#allocation0]]
  $region38: #{down_forward.1} parent=0
    _
  %s10 = ssub.s32 1, %s8
  %s11 = scalar_select 0, %s10, %s8
  // Predicated region
  $region2: #{down_forward.1} parent=0 // pred_check
    _
  $region3: #{down_forward.1} parent=0 // pred_check_branch
    %13 = sbr.rel (0) target = $region5
  $region4: #{down_forward.1} parent=0 // pred_region
    _
  $region5: #{down_forward.1} parent=0 // pred_fallthru
    _
  // Predicated region
  $region6: #{down_forward.1} parent=0 // pred_check
    _
  $region7: #{down_forward.1} parent=0 // pred_check_branch
    %15 = sbr.rel (0) target = $region9
  $region8: #{down_forward.1} parent=0 // pred_region
    _
  $region9: #{down_forward.1} parent=0 // pred_fallthru
    _
  // Predicated region
  $region10: #{down_forward.1} parent=0 // pred_check
    _
  $region11: #{down_forward.1} parent=0 // pred_check_branch
    %17 = sbr.rel (0) target = $region13
  $region12: #{down_forward.1} parent=0 // pred_region
    _
  $region13: #{down_forward.1} parent=0 // pred_fallthru
    _
  // Predicated region
  $region14: #{down_forward.1} parent=0 // pred_check
    _
  $region15: #{down_forward.1} parent=0 // pred_check_branch
    %19 = sbr.rel (0) target = $region17
  $region16: #{down_forward.1} parent=0 // pred_region
    _
  $region17: #{down_forward.1} parent=0 // pred_fallthru
    _
  // Predicated region
  $region18: #{down_forward.1} parent=0 // pred_check
    _
  $region19: #{down_forward.1} parent=0 // pred_check_branch
    %21 = sbr.rel (0) target = $region21
  $region20: #{down_forward.1} parent=0 // pred_region
    _
  $region21: #{down_forward.1} parent=0 // pred_fallthru
    _
  // Predicated region
  $region22: #{down_forward.1} parent=0 // pred_check
    _
  $region23: #{down_forward.1} parent=0 // pred_check_branch
    %23 = sbr.rel (0) target = $region25
  $region24: #{down_forward.1} parent=0 // pred_region
    _
  $region25: #{down_forward.1} parent=0 // pred_fallthru
    _
  // Predicated region
  $region26: #{down_forward.1} parent=0 // pred_check
    _
  $region27: #{down_forward.1} parent=0 // pred_check_branch
    %25 = sbr.rel (0) target = $region29
  $region28: #{down_forward.1} parent=0 // pred_region
    _
  $region29: #{down_forward.1} parent=0 // pred_fallthru
    _
  %v26 = vld [vmem:[%s0] sm:$0x3]
  %v27 = vld [vmem:[%s0 + $0x2] sm:$0x3]
  %v28 = vld [vmem:[%s0 + $0x4] sm:$0x3]
  %v29 = vld [vmem:[%s0 + $0x6] sm:$0x3]
  %v30 = vld [vmem:[%s0 + $0x8] sm:$0x3]
  %v31 = vld [vmem:[%s0 + $0xa] sm:$0x3]
  %v32 = vld [vmem:[%s0 + $0xc] sm:$0x3]
  %v33 = vld [vmem:[%s0 + $0xe] sm:$0x3]
  %v34 = vld [vmem:[%s0 + $0x10] sm:$0x3]
  %v35 = vld [vmem:[%s0 + $0x12] sm:$0x3]
  %v36 = vld [vmem:[%s0 + $0x14] sm:$0x3]
  %v37 = vld [vmem:[%s0 + $0x16] sm:$0x3]
  %v38 = vld [vmem:[%s0 + $0x18] sm:$0x3]
  %v39 = vld [vmem:[%s0 + $0x1a] sm:$0x3]
  %v40 = vld [vmem:[%s0 + $0x1c] sm:$0x3]
  %v41 = vld [vmem:[%s0 + $0x1e] sm:$0x3]
  %v42 = vld [vmem:[%s0 + $0x20] sm:$0x3]
  %v43 = vld [vmem:[%s0 + $0x22] sm:$0x3]
  %v44 = vld [vmem:[%s0 + $0x24] sm:$0x3]
  %v45 = vld [vmem:[%s0 + $0x26] sm:$0x3]
  %v46 = vld [vmem:[%s0 + $0x28] sm:$0x3]
  %v47 = vld [vmem:[%s0 + $0x2a] sm:$0x3]
  %v48 = vld [vmem:[%s0 + $0x2c] sm:$0x3]
  %v49 = vld [vmem:[%s0 + $0x2e] sm:$0x3]
  %v50 = vld [vmem:[%s0 + $0x30] sm:$0x3]
  %v51 = vld [vmem:[%s0 + $0x32] sm:$0x3]
  %v52 = vld [vmem:[%s0 + $0x34] sm:$0x3]
  %v53 = vld [vmem:[%s0 + $0x36] sm:$0x3]
  %v54 = vld [vmem:[%s0 + $0x38] sm:$0x3]
  %v55 = vld [vmem:[%s0 + $0x3a] sm:$0x3]
  %v56 = vld [vmem:[%s0 + $0x3c] sm:$0x3]
  %v57 = vld [vmem:[%s0 + $0x3e] sm:$0x3]
  %v58 = vld [vmem:[%s0 + $0x40] sm:$0x3]
  %v59 = vld [vmem:[%s0 + $0x42] sm:$0x3]
  %v60 = vld [vmem:[%s0 + $0x44] sm:$0x3]
  %v61 = vld [vmem:[%s0 + $0x46] sm:$0x3]
  %v62 = vld [vmem:[%s0 + $0x48] sm:$0x3]
  %v63 = vld [vmem:[%s0 + $0x4a] sm:$0x3]
  %v64 = vld [vmem:[%s0 + $0x4c] sm:$0x3]
  %v65 = vld [vmem:[%s0 + $0x4e] sm:$0x3]
  %v66 = vld [vmem:[%s0 + $0x50] sm:$0x3]
  %v67 = vld [vmem:[%s0 + $0x52] sm:$0x3]
  %v68 = vld [vmem:[%s0 + $0x54] sm:$0x3]
  %v69 = vld [vmem:[%s0 + $0x56] sm:$0x3]
  %v70 = vld [vmem:[%s0 + $0x58] sm:$0x3]
  %v71 = vld [vmem:[%s0 + $0x5a] sm:$0x3]
  %v72 = vld [vmem:[%s0 + $0x5c] sm:$0x3]
  %v73 = vld [vmem:[%s0 + $0x5e] sm:$0x3]
  %v74 = vld [vmem:[%s0 + $0x60] sm:$0x3]
  %v75 = vld [vmem:[%s0 + $0x62] sm:$0x3]
  %v76 = vld [vmem:[%s0 + $0x64] sm:$0x3]
  %v77 = vld [vmem:[%s0 + $0x66] sm:$0x3]
  %v78 = vld [vmem:[%s0 + $0x68] sm:$0x3]
  %v79 = vld [vmem:[%s0 + $0x6a] sm:$0x3]
  %v80 = vld [vmem:[%s0 + $0x6c] sm:$0x3]
  %v81 = vld [vmem:[%s0 + $0x6e] sm:$0x3]
  %v82 = vld [vmem:[%s0 + $0x70] sm:$0x3]
  %v83 = vld [vmem:[%s0 + $0x72] sm:$0x3]
  %v84 = vld [vmem:[%s0 + $0x74] sm:$0x3]
  %v85 = vld [vmem:[%s0 + $0x76] sm:$0x3]
  %v86 = vld [vmem:[%s0 + $0x78] sm:$0x3]
  %v87 = vld [vmem:[%s0 + $0x7a] sm:$0x3]
  %v88 = vld [vmem:[%s0 + $0x7c] sm:$0x3]
  %v89 = vld [vmem:[%s0 + $0x7e] sm:$0x3]
  %v90 = vld [vmem:[%s0 + $0x80] sm:$0x3]
  %v91 = vld [vmem:[%s0 + $0x82] sm:$0x3]
  %v92 = vld [vmem:[%s0 + $0x84] sm:$0x3]
  %v93 = vld [vmem:[%s0 + $0x86] sm:$0x3]
  %v94 = vld [vmem:[%s0 + $0x88] sm:$0x3]
  %v95 = vld [vmem:[%s0 + $0x8a] sm:$0x3]
  %v96 = vld [vmem:[%s0 + $0x8c] sm:$0x3]
  %v97 = vld [vmem:[%s0 + $0x8e] sm:$0x3]
  %v98 = vld [vmem:[%s0 + $0x90] sm:$0x3]
  %v99 = vld [vmem:[%s0 + $0x92] sm:$0x3]
  %v100 = vld [vmem:[%s0 + $0x94] sm:$0x3]
  %v101 = vld [vmem:[%s0 + $0x96] sm:$0x3]
  %v102 = vld [vmem:[%s0 + $0x98] sm:$0x3]
  %v103 = vld [vmem:[%s0 + $0x9a] sm:$0x3]
  %v104 = vld [vmem:[%s0 + $0x9c] sm:$0x3]
  %v105 = vld [vmem:[%s0 + $0x9e] sm:$0x3]
  %v106 = vld [vmem:[%s0 + $0xa0] sm:$0x3]
  %v107 = vld [vmem:[%s0 + $0xa2] sm:$0x3]
  %v108 = vld [vmem:[%s0 + $0xa4] sm:$0x3]
  %v109 = vld [vmem:[%s0 + $0xa6] sm:$0x3]
  %v110 = vld [vmem:[%s0 + $0xa8] sm:$0x3]
  %v111 = vld [vmem:[%s0 + $0xaa] sm:$0x3]
  %v112 = vld [vmem:[%s0 + $0xac] sm:$0x3]
  %v113 = vld [vmem:[%s0 + $0xae] sm:$0x3]
  %v114 = vld [vmem:[%s0 + $0xb0] sm:$0x3]
  %v115 = vld [vmem:[%s0 + $0xb2] sm:$0x3]
  %v116 = vld [vmem:[%s0 + $0xb4] sm:$0x3]
  %v117 = vld [vmem:[%s0 + $0xb6] sm:$0x3]
  %v118 = vld [vmem:[%s0 + $0xb8] sm:$0x3]
  %v119 = vld [vmem:[%s0 + $0xba] sm:$0x3]
  %v120 = vld [vmem:[%s0 + $0xbc] sm:$0x3]
  %v121 = vld [vmem:[%s0 + $0xbe] sm:$0x3]
  %v122 = vld [vmem:[%s0 + $0xc0] sm:$0x3]
  %v123 = vld [vmem:[%s0 + $0xc2] sm:$0x3]
  %v124 = vld [vmem:[%s0 + $0xc4] sm:$0x3]
  %v125 = vld [vmem:[%s0 + $0xc6] sm:$0x3]
  %v126 = vld [vmem:[%s0 + $0xc8] sm:$0x3]
  %v127 = vld [vmem:[%s0 + $0xca] sm:$0x3]
  %v128 = vld [vmem:[%s0 + $0xcc] sm:$0x3]
  %v129 = vld [vmem:[%s0 + $0xce] sm:$0x3]
  %v130 = vld [vmem:[%s0 + $0xd0] sm:$0x3]
  %v131 = vld [vmem:[%s0 + $0xd2] sm:$0x3]
  %v132 = vld [vmem:[%s0 + $0xd4] sm:$0x3]
  %v133 = vld [vmem:[%s0 + $0xd6] sm:$0x3]
  %v134 = vld [vmem:[%s0 + $0xd8] sm:$0x3]
  %v135 = vld [vmem:[%s0 + $0xda] sm:$0x3]
  %v136 = vld [vmem:[%s0 + $0xdc] sm:$0x3]
  %v137 = vld [vmem:[%s0 + $0xde] sm:$0x3]
  %v138 = vld [vmem:[%s0 + $0xe0] sm:$0x3]
  %v139 = vld [vmem:[%s0 + $0xe2] sm:$0x3]
  %v140 = vld [vmem:[%s0 + $0xe4] sm:$0x3]
  %v141 = vld [vmem:[%s0 + $0xe6] sm:$0x3]
  %v142 = vld [vmem:[%s0 + $0xe8] sm:$0x3]
  %v143 = vld [vmem:[%s0 + $0xea] sm:$0x3]
  %v144 = vld [vmem:[%s0 + $0xec] sm:$0x3]
  %v145 = vld [vmem:[%s0 + $0xee] sm:$0x3]
  %v146 = vld [vmem:[%s0 + $0xf0] sm:$0x3]
  %v147 = vld [vmem:[%s0 + $0xf2] sm:$0x3]
  %v148 = vld [vmem:[%s0 + $0xf4] sm:$0x3]
  %v149 = vld [vmem:[%s0 + $0xf6] sm:$0x3]
  %v150 = vld [vmem:[%s0 + $0xf8] sm:$0x3]
  %v151 = vld [vmem:[%s0 + $0xfa] sm:$0x3]
  %v152 = vld [vmem:[%s0 + $0xfc] sm:$0x3]
  %v153 = vld [vmem:[%s0 + $0xfe] sm:$0x3]
  %v154 = vld [vmem:[%s0 + $0x100] sm:$0x3]
  %v155 = vld [vmem:[%s0 + $0x102] sm:$0x3]
  %v156 = vld [vmem:[%s0 + $0x104] sm:$0x3]
  %v157 = vld [vmem:[%s0 + $0x106] sm:$0x3]
  %v158 = vld [vmem:[%s0 + $0x108] sm:$0x3]
  %v159 = vld [vmem:[%s0 + $0x10a] sm:$0x3]
  %v160 = vld [vmem:[%s0 + $0x10c] sm:$0x3]
  %v161 = vld [vmem:[%s0 + $0x10e] sm:$0x3]
  %v162 = vld [vmem:[%s0 + $0x110] sm:$0x3]
  %v163 = vld [vmem:[%s0 + $0x112] sm:$0x3]
  %v164 = vld [vmem:[%s0 + $0x114] sm:$0x3]
  %v165 = vld [vmem:[%s0 + $0x116] sm:$0x3]
  %v166 = vld [vmem:[%s0 + $0x118] sm:$0x3]
  %v167 = vld [vmem:[%s0 + $0x11a] sm:$0x3]
  %v168 = vld [vmem:[%s0 + $0x11c] sm:$0x3]
  %v169 = vld [vmem:[%s0 + $0x11e] sm:$0x3]
  %v170 = vld [vmem:[%s0 + $0x120] sm:$0x3]
  %v171 = vld [vmem:[%s0 + $0x122] sm:$0x3]
  %v172 = vld [vmem:[%s0 + $0x124] sm:$0x3]
  %v173 = vld [vmem:[%s0 + $0x126] sm:$0x3]
  %v174 = vld [vmem:[%s0 + $0x128] sm:$0x3]
  %v175 = vld [vmem:[%s0 + $0x12a] sm:$0x3]
  %v176 = vld [vmem:[%s0 + $0x12c] sm:$0x3]
  %v177 = vld [vmem:[%s0 + $0x12e] sm:$0x3]
  %v178 = vld [vmem:[%s0 + $0x130] sm:$0x3]
  %v179 = vld [vmem:[%s0 + $0x132] sm:$0x3]
  %v180 = vld [vmem:[%s0 + $0x134] sm:$0x3]
  %v181 = vld [vmem:[%s0 + $0x136] sm:$0x3]
  %v182 = vld [vmem:[%s0 + $0x138] sm:$0x3]
  %v183 = vld [vmem:[%s0 + $0x13a] sm:$0x3]
  %v184 = vld [vmem:[%s0 + $0x13c] sm:$0x3]
  %v185 = vld [vmem:[%s0 + $0x13e] sm:$0x3]
  %v186 = vld [vmem:[%s0 + $0x140] sm:$0x3]
  %v187 = vld [vmem:[%s0 + $0x142] sm:$0x3]
  %v188 = vld [vmem:[%s0 + $0x144] sm:$0x3]
  %v189 = vld [vmem:[%s0 + $0x146] sm:$0x3]
  %v190 = vld [vmem:[%s0 + $0x148] sm:$0x3]
  %v191 = vld [vmem:[%s0 + $0x14a] sm:$0x3]
  %v192 = vld [vmem:[%s0 + $0x14c] sm:$0x3]
  %v193 = vld [vmem:[%s0 + $0x14e] sm:$0x3]
  %v194 = vld [vmem:[%s0 + $0x150] sm:$0x3]
  %v195 = vld [vmem:[%s0 + $0x152] sm:$0x3]
  %v196 = vld [vmem:[%s0 + $0x154] sm:$0x3]
  %v197 = vld [vmem:[%s0 + $0x156] sm:$0x3]
  %v198 = vld [vmem:[%s0 + $0x158] sm:$0x3]
  %v199 = vld [vmem:[%s0 + $0x15a] sm:$0x3]
  %v200 = vld [vmem:[%s0 + $0x15c] sm:$0x3]
  %v201 = vld [vmem:[%s0 + $0x15e] sm:$0x3]
  %v202 = vld [vmem:[%s0 + $0x160] sm:$0x3]
  %v203 = vld [vmem:[%s0 + $0x162] sm:$0x3]
  %v204 = vld [vmem:[%s0 + $0x164] sm:$0x3]
  %v205 = vld [vmem:[%s0 + $0x166] sm:$0x3]
  %v206 = vld [vmem:[%s0 + $0x168] sm:$0x3]
  %v207 = vld [vmem:[%s0 + $0x16a] sm:$0x3]
  %v208 = vld [vmem:[%s0 + $0x16c] sm:$0x3]
  %v209 = vld [vmem:[%s0 + $0x16e] sm:$0x3]
  %v210 = vld [vmem:[%s0 + $0x170] sm:$0x3]
  %v211 = vld [vmem:[%s0 + $0x172] sm:$0x3]
  %v212 = vld [vmem:[%s0 + $0x174] sm:$0x3]
  %v213 = vld [vmem:[%s0 + $0x176] sm:$0x3]
  %v214 = vld [vmem:[%s0 + $0x178] sm:$0x3]
  %v215 = vld [vmem:[%s0 + $0x17a] sm:$0x3]
  %v216 = vld [vmem:[%s0 + $0x17c] sm:$0x3]
  %v217 = vld [vmem:[%s0 + $0x17e] sm:$0x3]
  %v218 = vld [vmem:[%s0 + $0x180] sm:$0x3]
  %v219 = vld [vmem:[%s0 + $0x182] sm:$0x3]
  %v220 = vld [vmem:[%s0 + $0x184] sm:$0x3]
  %v221 = vld [vmem:[%s0 + $0x186] sm:$0x3]
  %v222 = vld [vmem:[%s0 + $0x188] sm:$0x3]
  %v223 = vld [vmem:[%s0 + $0x18a] sm:$0x3]
  %v224 = vld [vmem:[%s0 + $0x18c] sm:$0x3]
  %v225 = vld [vmem:[%s0 + $0x18e] sm:$0x3]
  %v226 = vld [vmem:[%s0 + $0x190] sm:$0x3]
  %v227 = vld [vmem:[%s0 + $0x192] sm:$0x3]
  %v228 = vld [vmem:[%s0 + $0x194] sm:$0x3]
  %v229 = vld [vmem:[%s0 + $0x196] sm:$0x3]
  %v230 = vld [vmem:[%s0 + $0x198] sm:$0x3]
  %v231 = vld [vmem:[%s0 + $0x19a] sm:$0x3]
  %v232 = vld [vmem:[%s0 + $0x19c] sm:$0x3]
  %v233 = vld [vmem:[%s0 + $0x19e] sm:$0x3]
  %v234 = vld [vmem:[%s0 + $0x1a0] sm:$0x3]
  %v235 = vld [vmem:[%s0 + $0x1a2] sm:$0x3]
  %v236 = vld [vmem:[%s0 + $0x1a4] sm:$0x3]
  %v237 = vld [vmem:[%s0 + $0x1a6] sm:$0x3]
  %v238 = vld [vmem:[%s0 + $0x1a8] sm:$0x3]
  %v239 = vld [vmem:[%s0 + $0x1aa] sm:$0x3]
  %v240 = vld [vmem:[%s0 + $0x1ac] sm:$0x3]
  %v241 = vld [vmem:[%s0 + $0x1ae] sm:$0x3]
  %v242 = vld [vmem:[%s0 + $0x1b0] sm:$0x3]
  %v243 = vld [vmem:[%s0 + $0x1b2] sm:$0x3]
  %v244 = vld [vmem:[%s0 + $0x1b4] sm:$0x3]
  %v245 = vld [vmem:[%s0 + $0x1b6] sm:$0x3]
  %v246 = vld [vmem:[%s0 + $0x1b8] sm:$0x3]
  %v247 = vld [vmem:[%s0 + $0x1ba] sm:$0x3]
  %v248 = vld [vmem:[%s0 + $0x1bc] sm:$0x3]
  %v249 = vld [vmem:[%s0 + $0x1be] sm:$0x3]
  %v250 = vld [vmem:[%s0 + $0x1c0] sm:$0x3]
  %v251 = vld [vmem:[%s0 + $0x1c2] sm:$0x3]
  %v252 = vld [vmem:[%s0 + $0x1c4] sm:$0x3]
  %v253 = vld [vmem:[%s0 + $0x1c6] sm:$0x3]
  %v254 = vld [vmem:[%s0 + $0x1c8] sm:$0x3]
  %v255 = vld [vmem:[%s0 + $0x1ca] sm:$0x3]
  %v256 = vld [vmem:[%s0 + $0x1cc] sm:$0x3]
  %v257 = vld [vmem:[%s0 + $0x1ce] sm:$0x3]
  %v258 = vld [vmem:[%s0 + $0x1d0] sm:$0x3]
  %v259 = vld [vmem:[%s0 + $0x1d2] sm:$0x3]
  %v260 = vld [vmem:[%s0 + $0x1d4] sm:$0x3]
  %v261 = vld [vmem:[%s0 + $0x1d6] sm:$0x3]
  %v262 = vld [vmem:[%s0 + $0x1d8] sm:$0x3]
  %v263 = vld [vmem:[%s0 + $0x1da] sm:$0x3]
  %v264 = vld [vmem:[%s0 + $0x1dc] sm:$0x3]
  %v265 = vld [vmem:[%s0 + $0x1de] sm:$0x3]
  %v266 = vld [vmem:[%s0 + $0x1e0] sm:$0x3]
  %v267 = vld [vmem:[%s0 + $0x1e2] sm:$0x3]
  %v268 = vld [vmem:[%s0 + $0x1e4] sm:$0x3]
  %v269 = vld [vmem:[%s0 + $0x1e6] sm:$0x3]
  %v270 = vld [vmem:[%s0 + $0x1e8] sm:$0x3]
  %v271 = vld [vmem:[%s0 + $0x1ea] sm:$0x3]
  %v272 = vld [vmem:[%s0 + $0x1ec] sm:$0x3]
  %v273 = vld [vmem:[%s0 + $0x1ee] sm:$0x3]
  %v274 = vld [vmem:[%s0 + $0x1f0] sm:$0x3]
  %v275 = vld [vmem:[%s0 + $0x1f2] sm:$0x3]
  %v276 = vld [vmem:[%s0 + $0x1f4] sm:$0x3]
  %v277 = vld [vmem:[%s0 + $0x1f6] sm:$0x3]
  %v278 = vld [vmem:[%s0 + $0x1f8] sm:$0x3]
  %v279 = vld [vmem:[%s0 + $0x1fa] sm:$0x3]
  %v280 = vld [vmem:[%s0 + $0x1fc] sm:$0x3]
  %v281 = vld [vmem:[%s0 + $0x1fe] sm:$0x3]
  %vm282 = vcmask 25600
  %v283 = vsel %vm282, %v26, -inf
  %v284 = vsel %vm282, %v34, -inf
  %v285 = vmax.f32 %v283, %v284
  %v286 = vrot.slane %v285, 4
  %v287 = vmax.f32 %v285, %v286
  %v288 = vrot.slane %v287, 2
  %v289 = vmax.f32 %v287, %v288
  %v290 = vrot.slane %v289, 1
  %v291 = vmax.f32 %v289, %v290
  %v292 = vsel %vm282, %v27, -inf
  %v293 = vsel %vm282, %v35, -inf
  %v294 = vmax.f32 %v292, %v293
  %v295 = vrot.slane %v294, 4
  %v296 = vmax.f32 %v294, %v295
  %v297 = vrot.slane %v296, 2
  %v298 = vmax.f32 %v296, %v297
  %v299 = vrot.slane %v298, 1
  %v300 = vmax.f32 %v298, %v299
  %v301 = vsel %vm282, %v28, -inf
  %v302 = vsel %vm282, %v36, -inf
  %v303 = vmax.f32 %v301, %v302
  %v304 = vrot.slane %v303, 4
  %v305 = vmax.f32 %v303, %v304
  %v306 = vrot.slane %v305, 2
  %v307 = vmax.f32 %v305, %v306
  %v308 = vrot.slane %v307, 1
  %v309 = vmax.f32 %v307, %v308
  %v310 = vsel %vm282, %v29, -inf
  %v311 = vsel %vm282, %v37, -inf
  %v312 = vmax.f32 %v310, %v311
  %v313 = vrot.slane %v312, 4
  %v314 = vmax.f32 %v312, %v313
  %v315 = vrot.slane %v314, 2
  %v316 = vmax.f32 %v314, %v315
  %v317 = vrot.slane %v316, 1
  %v318 = vmax.f32 %v316, %v317
  %v319 = vsel %vm282, %v30, -inf
  %v320 = vsel %vm282, %v38, -inf
  %v321 = vmax.f32 %v319, %v320
  %v322 = vrot.slane %v321, 4
  %v323 = vmax.f32 %v321, %v322
  %v324 = vrot.slane %v323, 2
  %v325 = vmax.f32 %v323, %v324
  %v326 = vrot.slane %v325, 1
  %v327 = vmax.f32 %v325, %v326
  %v328 = vsel %vm282, %v31, -inf
  %v329 = vsel %vm282, %v39, -inf
  %v330 = vmax.f32 %v328, %v329
  %v331 = vrot.slane %v330, 4
  %v332 = vmax.f32 %v330, %v331
  %v333 = vrot.slane %v332, 2
  %v334 = vmax.f32 %v332, %v333
  %v335 = vrot.slane %v334, 1
  %v336 = vmax.f32 %v334, %v335
  %v337 = vsel %vm282, %v32, -inf
  %v338 = vsel %vm282, %v40, -inf
  %v339 = vmax.f32 %v337, %v338
  %v340 = vrot.slane %v339, 4
  %v341 = vmax.f32 %v339, %v340
  %v342 = vrot.slane %v341, 2
  %v343 = vmax.f32 %v341, %v342
  %v344 = vrot.slane %v343, 1
  %v345 = vmax.f32 %v343, %v344
  %v346 = vsel %vm282, %v33, -inf
  %v347 = vsel %vm282, %v41, -inf
  %v348 = vmax.f32 %v346, %v347
  %v349 = vrot.slane %v348, 4
  %v350 = vmax.f32 %v348, %v349
  %v351 = vrot.slane %v350, 2
  %v352 = vmax.f32 %v350, %v351
  %v353 = vrot.slane %v352, 1
  %v354 = vmax.f32 %v352, %v353
  %v355 = vsel %vm282, %v42, -inf
  %v356 = vsel %vm282, %v50, -inf
  %v357 = vmax.f32 %v355, %v356
  %v358 = vrot.slane %v357, 4
  %v359 = vmax.f32 %v357, %v358
  %v360 = vrot.slane %v359, 2
  %v361 = vmax.f32 %v359, %v360
  %v362 = vrot.slane %v361, 1
  %v363 = vmax.f32 %v361, %v362
  %v364 = vsel %vm282, %v43, -inf
  %v365 = vsel %vm282, %v51, -inf
  %v366 = vmax.f32 %v364, %v365
  %v367 = vrot.slane %v366, 4
  %v368 = vmax.f32 %v366, %v367
  %v369 = vrot.slane %v368, 2
  %v370 = vmax.f32 %v368, %v369
  %v371 = vrot.slane %v370, 1
  %v372 = vmax.f32 %v370, %v371
  %v373 = vsel %vm282, %v44, -inf
  %v374 = vsel %vm282, %v52, -inf
  %v375 = vmax.f32 %v373, %v374
  %v376 = vrot.slane %v375, 4
  %v377 = vmax.f32 %v375, %v376
  %v378 = vrot.slane %v377, 2
  %v379 = vmax.f32 %v377, %v378
  %v380 = vrot.slane %v379, 1
  %v381 = vmax.f32 %v379, %v380
  %v382 = vsel %vm282, %v45, -inf
  %v383 = vsel %vm282, %v53, -inf
  %v384 = vmax.f32 %v382, %v383
  %v385 = vrot.slane %v384, 4
  %v386 = vmax.f32 %v384, %v385
  %v387 = vrot.slane %v386, 2
  %v388 = vmax.f32 %v386, %v387
  %v389 = vrot.slane %v388, 1
  %v390 = vmax.f32 %v388, %v389
  %v391 = vsel %vm282, %v46, -inf
  %v392 = vsel %vm282, %v54, -inf
  %v393 = vmax.f32 %v391, %v392
  %v394 = vrot.slane %v393, 4
  %v395 = vmax.f32 %v393, %v394
  %v396 = vrot.slane %v395, 2
  %v397 = vmax.f32 %v395, %v396
  %v398 = vrot.slane %v397, 1
  %v399 = vmax.f32 %v397, %v398
  %v400 = vsel %vm282, %v47, -inf
  %v401 = vsel %vm282, %v55, -inf
  %v402 = vmax.f32 %v400, %v401
  %v403 = vrot.slane %v402, 4
  %v404 = vmax.f32 %v402, %v403
  %v405 = vrot.slane %v404, 2
  %v406 = vmax.f32 %v404, %v405
  %v407 = vrot.slane %v406, 1
  %v408 = vmax.f32 %v406, %v407
  %v409 = vsel %vm282, %v48, -inf
  %v410 = vsel %vm282, %v56, -inf
  %v411 = vmax.f32 %v409, %v410
  %v412 = vrot.slane %v411, 4
  %v413 = vmax.f32 %v411, %v412
  %v414 = vrot.slane %v413, 2
  %v415 = vmax.f32 %v413, %v414
  %v416 = vrot.slane %v415, 1
  %v417 = vmax.f32 %v415, %v416
  %v418 = vsel %vm282, %v49, -inf
  %v419 = vsel %vm282, %v57, -inf
  %v420 = vmax.f32 %v418, %v419
  %v421 = vrot.slane %v420, 4
  %v422 = vmax.f32 %v420, %v421
  %v423 = vrot.slane %v422, 2
  %v424 = vmax.f32 %v422, %v423
  %v425 = vrot.slane %v424, 1
  %v426 = vmax.f32 %v424, %v425
  %v427 = vsel %vm282, %v58, -inf
  %v428 = vsel %vm282, %v66, -inf
  %v429 = vmax.f32 %v427, %v428
  %v430 = vrot.slane %v429, 4
  %v431 = vmax.f32 %v429, %v430
  %v432 = vrot.slane %v431, 2
  %v433 = vmax.f32 %v431, %v432
  %v434 = vrot.slane %v433, 1
  %v435 = vmax.f32 %v433, %v434
  %v436 = vsel %vm282, %v59, -inf
  %v437 = vsel %vm282, %v67, -inf
  %v438 = vmax.f32 %v436, %v437
  %v439 = vrot.slane %v438, 4
  %v440 = vmax.f32 %v438, %v439
  %v441 = vrot.slane %v440, 2
  %v442 = vmax.f32 %v440, %v441
  %v443 = vrot.slane %v442, 1
  %v444 = vmax.f32 %v442, %v443
  %v445 = vsel %vm282, %v60, -inf
  %v446 = vsel %vm282, %v68, -inf
  %v447 = vmax.f32 %v445, %v446
  %v448 = vrot.slane %v447, 4
  %v449 = vmax.f32 %v447, %v448
  %v450 = vrot.slane %v449, 2
  %v451 = vmax.f32 %v449, %v450
  %v452 = vrot.slane %v451, 1
  %v453 = vmax.f32 %v451, %v452
  %v454 = vsel %vm282, %v61, -inf
  %v455 = vsel %vm282, %v69, -inf
  %v456 = vmax.f32 %v454, %v455
  %v457 = vrot.slane %v456, 4
  %v458 = vmax.f32 %v456, %v457
  %v459 = vrot.slane %v458, 2
  %v460 = vmax.f32 %v458, %v459
  %v461 = vrot.slane %v460, 1
  %v462 = vmax.f32 %v460, %v461
  %v463 = vsel %vm282, %v62, -inf
  %v464 = vsel %vm282, %v70, -inf
  %v465 = vmax.f32 %v463, %v464
  %v466 = vrot.slane %v465, 4
  %v467 = vmax.f32 %v465, %v466
  %v468 = vrot.slane %v467, 2
  %v469 = vmax.f32 %v467, %v468
  %v470 = vrot.slane %v469, 1
  %v471 = vmax.f32 %v469, %v470
  %v472 = vsel %vm282, %v63, -inf
  %v473 = vsel %vm282, %v71, -inf
  %v474 = vmax.f32 %v472, %v473
  %v475 = vrot.slane %v474, 4
  %v476 = vmax.f32 %v474, %v475
  %v477 = vrot.slane %v476, 2
  %v478 = vmax.f32 %v476, %v477
  %v479 = vrot.slane %v478, 1
  %v480 = vmax.f32 %v478, %v479
  %v481 = vsel %vm282, %v64, -inf
  %v482 = vsel %vm282, %v72, -inf
  %v483 = vmax.f32 %v481, %v482
  %v484 = vrot.slane %v483, 4
  %v485 = vmax.f32 %v483, %v484
  %v486 = vrot.slane %v485, 2
  %v487 = vmax.f32 %v485, %v486
  %v488 = vrot.slane %v487, 1
  %v489 = vmax.f32 %v487, %v488
  %v490 = vsel %vm282, %v65, -inf
  %v491 = vsel %vm282, %v73, -inf
  %v492 = vmax.f32 %v490, %v491
  %v493 = vrot.slane %v492, 4
  %v494 = vmax.f32 %v492, %v493
  %v495 = vrot.slane %v494, 2
  %v496 = vmax.f32 %v494, %v495
  %v497 = vrot.slane %v496, 1
  %v498 = vmax.f32 %v496, %v497
  %v499 = vsel %vm282, %v74, -inf
  %v500 = vsel %vm282, %v82, -inf
  %v501 = vmax.f32 %v499, %v500
  %v502 = vrot.slane %v501, 4
  %v503 = vmax.f32 %v501, %v502
  %v504 = vrot.slane %v503, 2
  %v505 = vmax.f32 %v503, %v504
  %v506 = vrot.slane %v505, 1
  %v507 = vmax.f32 %v505, %v506
  %v508 = vsel %vm282, %v75, -inf
  %v509 = vsel %vm282, %v83, -inf
  %v510 = vmax.f32 %v508, %v509
  %v511 = vrot.slane %v510, 4
  %v512 = vmax.f32 %v510, %v511
  %v513 = vrot.slane %v512, 2
  %v514 = vmax.f32 %v512, %v513
  %v515 = vrot.slane %v514, 1
  %v516 = vmax.f32 %v514, %v515
  %v517 = vsel %vm282, %v76, -inf
  %v518 = vsel %vm282, %v84, -inf
  %v519 = vmax.f32 %v517, %v518
  %v520 = vrot.slane %v519, 4
  %v521 = vmax.f32 %v519, %v520
  %v522 = vrot.slane %v521, 2
  %v523 = vmax.f32 %v521, %v522
  %v524 = vrot.slane %v523, 1
  %v525 = vmax.f32 %v523, %v524
  %v526 = vsel %vm282, %v77, -inf
  %v527 = vsel %vm282, %v85, -inf
  %v528 = vmax.f32 %v526, %v527
  %v529 = vrot.slane %v528, 4
  %v530 = vmax.f32 %v528, %v529
  %v531 = vrot.slane %v530, 2
  %v532 = vmax.f32 %v530, %v531
  %v533 = vrot.slane %v532, 1
  %v534 = vmax.f32 %v532, %v533
  %v535 = vsel %vm282, %v78, -inf
  %v536 = vsel %vm282, %v86, -inf
  %v537 = vmax.f32 %v535, %v536
  %v538 = vrot.slane %v537, 4
  %v539 = vmax.f32 %v537, %v538
  %v540 = vrot.slane %v539, 2
  %v541 = vmax.f32 %v539, %v540
  %v542 = vrot.slane %v541, 1
  %v543 = vmax.f32 %v541, %v542
  %v544 = vsel %vm282, %v79, -inf
  %v545 = vsel %vm282, %v87, -inf
  %v546 = vmax.f32 %v544, %v545
  %v547 = vrot.slane %v546, 4
  %v548 = vmax.f32 %v546, %v547
  %v549 = vrot.slane %v548, 2
  %v550 = vmax.f32 %v548, %v549
  %v551 = vrot.slane %v550, 1
  %v552 = vmax.f32 %v550, %v551
  %v553 = vsel %vm282, %v80, -inf
  %v554 = vsel %vm282, %v88, -inf
  %v555 = vmax.f32 %v553, %v554
  %v556 = vrot.slane %v555, 4
  %v557 = vmax.f32 %v555, %v556
  %v558 = vrot.slane %v557, 2
  %v559 = vmax.f32 %v557, %v558
  %v560 = vrot.slane %v559, 1
  %v561 = vmax.f32 %v559, %v560
  %v562 = vsel %vm282, %v81, -inf
  %v563 = vsel %vm282, %v89, -inf
  %v564 = vmax.f32 %v562, %v563
  %v565 = vrot.slane %v564, 4
  %v566 = vmax.f32 %v564, %v565
  %v567 = vrot.slane %v566, 2
  %v568 = vmax.f32 %v566, %v567
  %v569 = vrot.slane %v568, 1
  %v570 = vmax.f32 %v568, %v569
  %v571 = vsel %vm282, %v90, -inf
  %v572 = vsel %vm282, %v98, -inf
  %v573 = vmax.f32 %v571, %v572
  %v574 = vrot.slane %v573, 4
  %v575 = vmax.f32 %v573, %v574
  %v576 = vrot.slane %v575, 2
  %v577 = vmax.f32 %v575, %v576
  %v578 = vrot.slane %v577, 1
  %v579 = vmax.f32 %v577, %v578
  %v580 = vsel %vm282, %v91, -inf
  %v581 = vsel %vm282, %v99, -inf
  %v582 = vmax.f32 %v580, %v581
  %v583 = vrot.slane %v582, 4
  %v584 = vmax.f32 %v582, %v583
  %v585 = vrot.slane %v584, 2
  %v586 = vmax.f32 %v584, %v585
  %v587 = vrot.slane %v586, 1
  %v588 = vmax.f32 %v586, %v587
  %v589 = vsel %vm282, %v92, -inf
  %v590 = vsel %vm282, %v100, -inf
  %v591 = vmax.f32 %v589, %v590
  %v592 = vrot.slane %v591, 4
  %v593 = vmax.f32 %v591, %v592
  %v594 = vrot.slane %v593, 2
  %v595 = vmax.f32 %v593, %v594
  %v596 = vrot.slane %v595, 1
  %v597 = vmax.f32 %v595, %v596
  %v598 = vsel %vm282, %v93, -inf
  %v599 = vsel %vm282, %v101, -inf
  %v600 = vmax.f32 %v598, %v599
  %v601 = vrot.slane %v600, 4
  %v602 = vmax.f32 %v600, %v601
  %v603 = vrot.slane %v602, 2
  %v604 = vmax.f32 %v602, %v603
  %v605 = vrot.slane %v604, 1
  %v606 = vmax.f32 %v604, %v605
  %v607 = vsel %vm282, %v94, -inf
  %v608 = vsel %vm282, %v102, -inf
  %v609 = vmax.f32 %v607, %v608
  %v610 = vrot.slane %v609, 4
  %v611 = vmax.f32 %v609, %v610
  %v612 = vrot.slane %v611, 2
  %v613 = vmax.f32 %v611, %v612
  %v614 = vrot.slane %v613, 1
  %v615 = vmax.f32 %v613, %v614
  %v616 = vsel %vm282, %v95, -inf
  %v617 = vsel %vm282, %v103, -inf
  %v618 = vmax.f32 %v616, %v617
  %v619 = vrot.slane %v618, 4
  %v620 = vmax.f32 %v618, %v619
  %v621 = vrot.slane %v620, 2
  %v622 = vmax.f32 %v620, %v621
  %v623 = vrot.slane %v622, 1
  %v624 = vmax.f32 %v622, %v623
  %v625 = vsel %vm282, %v96, -inf
  %v626 = vsel %vm282, %v104, -inf
  %v627 = vmax.f32 %v625, %v626
  %v628 = vrot.slane %v627, 4
  %v629 = vmax.f32 %v627, %v628
  %v630 = vrot.slane %v629, 2
  %v631 = vmax.f32 %v629, %v630
  %v632 = vrot.slane %v631, 1
  %v633 = vmax.f32 %v631, %v632
  %v634 = vsel %vm282, %v97, -inf
  %v635 = vsel %vm282, %v105, -inf
  %v636 = vmax.f32 %v634, %v635
  %v637 = vrot.slane %v636, 4
  %v638 = vmax.f32 %v636, %v637
  %v639 = vrot.slane %v638, 2
  %v640 = vmax.f32 %v638, %v639
  %v641 = vrot.slane %v640, 1
  %v642 = vmax.f32 %v640, %v641
  %v643 = vsel %vm282, %v106, -inf
  %v644 = vsel %vm282, %v114, -inf
  %v645 = vmax.f32 %v643, %v644
  %v646 = vrot.slane %v645, 4
  %v647 = vmax.f32 %v645, %v646
  %v648 = vrot.slane %v647, 2
  %v649 = vmax.f32 %v647, %v648
  %v650 = vrot.slane %v649, 1
  %v651 = vmax.f32 %v649, %v650
  %v652 = vsel %vm282, %v107, -inf
  %v653 = vsel %vm282, %v115, -inf
  %v654 = vmax.f32 %v652, %v653
  %v655 = vrot.slane %v654, 4
  %v656 = vmax.f32 %v654, %v655
  %v657 = vrot.slane %v656, 2
  %v658 = vmax.f32 %v656, %v657
  %v659 = vrot.slane %v658, 1
  %v660 = vmax.f32 %v658, %v659
  %v661 = vsel %vm282, %v108, -inf
  %v662 = vsel %vm282, %v116, -inf
  %v663 = vmax.f32 %v661, %v662
  %v664 = vrot.slane %v663, 4
  %v665 = vmax.f32 %v663, %v664
  %v666 = vrot.slane %v665, 2
  %v667 = vmax.f32 %v665, %v666
  %v668 = vrot.slane %v667, 1
  %v669 = vmax.f32 %v667, %v668
  %v670 = vsel %vm282, %v109, -inf
  %v671 = vsel %vm282, %v117, -inf
  %v672 = vmax.f32 %v670, %v671
  %v673 = vrot.slane %v672, 4
  %v674 = vmax.f32 %v672, %v673
  %v675 = vrot.slane %v674, 2
  %v676 = vmax.f32 %v674, %v675
  %v677 = vrot.slane %v676, 1
  %v678 = vmax.f32 %v676, %v677
  %v679 = vsel %vm282, %v110, -inf
  %v680 = vsel %vm282, %v118, -inf
  %v681 = vmax.f32 %v679, %v680
  %v682 = vrot.slane %v681, 4
  %v683 = vmax.f32 %v681, %v682
  %v684 = vrot.slane %v683, 2
  %v685 = vmax.f32 %v683, %v684
  %v686 = vrot.slane %v685, 1
  %v687 = vmax.f32 %v685, %v686
  %v688 = vsel %vm282, %v111, -inf
  %v689 = vsel %vm282, %v119, -inf
  %v690 = vmax.f32 %v688, %v689
  %v691 = vrot.slane %v690, 4
  %v692 = vmax.f32 %v690, %v691
  %v693 = vrot.slane %v692, 2
  %v694 = vmax.f32 %v692, %v693
  %v695 = vrot.slane %v694, 1
  %v696 = vmax.f32 %v694, %v695
  %v697 = vsel %vm282, %v112, -inf
  %v698 = vsel %vm282, %v120, -inf
  %v699 = vmax.f32 %v697, %v698
  %v700 = vrot.slane %v699, 4
  %v701 = vmax.f32 %v699, %v700
  %v702 = vrot.slane %v701, 2
  %v703 = vmax.f32 %v701, %v702
  %v704 = vrot.slane %v703, 1
  %v705 = vmax.f32 %v703, %v704
  %v706 = vsel %vm282, %v113, -inf
  %v707 = vsel %vm282, %v121, -inf
  %v708 = vmax.f32 %v706, %v707
  %v709 = vrot.slane %v708, 4
  %v710 = vmax.f32 %v708, %v709
  %v711 = vrot.slane %v710, 2
  %v712 = vmax.f32 %v710, %v711
  %v713 = vrot.slane %v712, 1
  %v714 = vmax.f32 %v712, %v713
  %v715 = vsel %vm282, %v122, -inf
  %v716 = vsel %vm282, %v130, -inf
  %v717 = vmax.f32 %v715, %v716
  %v718 = vrot.slane %v717, 4
  %v719 = vmax.f32 %v717, %v718
  %v720 = vrot.slane %v719, 2
  %v721 = vmax.f32 %v719, %v720
  %v722 = vrot.slane %v721, 1
  %v723 = vmax.f32 %v721, %v722
  %v724 = vsel %vm282, %v123, -inf
  %v725 = vsel %vm282, %v131, -inf
  %v726 = vmax.f32 %v724, %v725
  %v727 = vrot.slane %v726, 4
  %v728 = vmax.f32 %v726, %v727
  %v729 = vrot.slane %v728, 2
  %v730 = vmax.f32 %v728, %v729
  %v731 = vrot.slane %v730, 1
  %v732 = vmax.f32 %v730, %v731
  %v733 = vsel %vm282, %v124, -inf
  %v734 = vsel %vm282, %v132, -inf
  %v735 = vmax.f32 %v733, %v734
  %v736 = vrot.slane %v735, 4
  %v737 = vmax.f32 %v735, %v736
  %v738 = vrot.slane %v737, 2
  %v739 = vmax.f32 %v737, %v738
  %v740 = vrot.slane %v739, 1
  %v741 = vmax.f32 %v739, %v740
  %v742 = vsel %vm282, %v125, -inf
  %v743 = vsel %vm282, %v133, -inf
  %v744 = vmax.f32 %v742, %v743
  %v745 = vrot.slane %v744, 4
  %v746 = vmax.f32 %v744, %v745
  %v747 = vrot.slane %v746, 2
  %v748 = vmax.f32 %v746, %v747
  %v749 = vrot.slane %v748, 1
  %v750 = vmax.f32 %v748, %v749
  %v751 = vsel %vm282, %v126, -inf
  %v752 = vsel %vm282, %v134, -inf
  %v753 = vmax.f32 %v751, %v752
  %v754 = vrot.slane %v753, 4
  %v755 = vmax.f32 %v753, %v754
  %v756 = vrot.slane %v755, 2
  %v757 = vmax.f32 %v755, %v756
  %v758 = vrot.slane %v757, 1
  %v759 = vmax.f32 %v757, %v758
  %v760 = vsel %vm282, %v127, -inf
  %v761 = vsel %vm282, %v135, -inf
  %v762 = vmax.f32 %v760, %v761
  %v763 = vrot.slane %v762, 4
  %v764 = vmax.f32 %v762, %v763
  %v765 = vrot.slane %v764, 2
  %v766 = vmax.f32 %v764, %v765
  %v767 = vrot.slane %v766, 1
  %v768 = vmax.f32 %v766, %v767
  %v769 = vsel %vm282, %v128, -inf
  %v770 = vsel %vm282, %v136, -inf
  %v771 = vmax.f32 %v769, %v770
  %v772 = vrot.slane %v771, 4
  %v773 = vmax.f32 %v771, %v772
  %v774 = vrot.slane %v773, 2
  %v775 = vmax.f32 %v773, %v774
  %v776 = vrot.slane %v775, 1
  %v777 = vmax.f32 %v775, %v776
  %v778 = vsel %vm282, %v129, -inf
  %v779 = vsel %vm282, %v137, -inf
  %v780 = vmax.f32 %v778, %v779
  %v781 = vrot.slane %v780, 4
  %v782 = vmax.f32 %v780, %v781
  %v783 = vrot.slane %v782, 2
  %v784 = vmax.f32 %v782, %v783
  %v785 = vrot.slane %v784, 1
  %v786 = vmax.f32 %v784, %v785
  %v787 = vsel %vm282, %v138, -inf
  %v788 = vsel %vm282, %v146, -inf
  %v789 = vmax.f32 %v787, %v788
  %v790 = vrot.slane %v789, 4
  %v791 = vmax.f32 %v789, %v790
  %v792 = vrot.slane %v791, 2
  %v793 = vmax.f32 %v791, %v792
  %v794 = vrot.slane %v793, 1
  %v795 = vmax.f32 %v793, %v794
  %v796 = vsel %vm282, %v139, -inf
  %v797 = vsel %vm282, %v147, -inf
  %v798 = vmax.f32 %v796, %v797
  %v799 = vrot.slane %v798, 4
  %v800 = vmax.f32 %v798, %v799
  %v801 = vrot.slane %v800, 2
  %v802 = vmax.f32 %v800, %v801
  %v803 = vrot.slane %v802, 1
  %v804 = vmax.f32 %v802, %v803
  %v805 = vsel %vm282, %v140, -inf
  %v806 = vsel %vm282, %v148, -inf
  %v807 = vmax.f32 %v805, %v806
  %v808 = vrot.slane %v807, 4
  %v809 = vmax.f32 %v807, %v808
  %v810 = vrot.slane %v809, 2
  %v811 = vmax.f32 %v809, %v810
  %v812 = vrot.slane %v811, 1
  %v813 = vmax.f32 %v811, %v812
  %v814 = vsel %vm282, %v141, -inf
  %v815 = vsel %vm282, %v149, -inf
  %v816 = vmax.f32 %v814, %v815
  %v817 = vrot.slane %v816, 4
  %v818 = vmax.f32 %v816, %v817
  %v819 = vrot.slane %v818, 2
  %v820 = vmax.f32 %v818, %v819
  %v821 = vrot.slane %v820, 1
  %v822 = vmax.f32 %v820, %v821
  %v823 = vsel %vm282, %v142, -inf
  %v824 = vsel %vm282, %v150, -inf
  %v825 = vmax.f32 %v823, %v824
  %v826 = vrot.slane %v825, 4
  %v827 = vmax.f32 %v825, %v826
  %v828 = vrot.slane %v827, 2
  %v829 = vmax.f32 %v827, %v828
  %v830 = vrot.slane %v829, 1
  %v831 = vmax.f32 %v829, %v830
  %v832 = vsel %vm282, %v143, -inf
  %v833 = vsel %vm282, %v151, -inf
  %v834 = vmax.f32 %v832, %v833
  %v835 = vrot.slane %v834, 4
  %v836 = vmax.f32 %v834, %v835
  %v837 = vrot.slane %v836, 2
  %v838 = vmax.f32 %v836, %v837
  %v839 = vrot.slane %v838, 1
  %v840 = vmax.f32 %v838, %v839
  %v841 = vsel %vm282, %v144, -inf
  %v842 = vsel %vm282, %v152, -inf
  %v843 = vmax.f32 %v841, %v842
  %v844 = vrot.slane %v843, 4
  %v845 = vmax.f32 %v843, %v844
  %v846 = vrot.slane %v845, 2
  %v847 = vmax.f32 %v845, %v846
  %v848 = vrot.slane %v847, 1
  %v849 = vmax.f32 %v847, %v848
  %v850 = vsel %vm282, %v145, -inf
  %v851 = vsel %vm282, %v153, -inf
  %v852 = vmax.f32 %v850, %v851
  %v853 = vrot.slane %v852, 4
  %v854 = vmax.f32 %v852, %v853
  %v855 = vrot.slane %v854, 2
  %v856 = vmax.f32 %v854, %v855
  %v857 = vrot.slane %v856, 1
  %v858 = vmax.f32 %v856, %v857
  %v859 = vsel %vm282, %v154, -inf
  %v860 = vsel %vm282, %v162, -inf
  %v861 = vmax.f32 %v859, %v860
  %v862 = vrot.slane %v861, 4
  %v863 = vmax.f32 %v861, %v862
  %v864 = vrot.slane %v863, 2
  %v865 = vmax.f32 %v863, %v864
  %v866 = vrot.slane %v865, 1
  %v867 = vmax.f32 %v865, %v866
  %v868 = vsel %vm282, %v155, -inf
  %v869 = vsel %vm282, %v163, -inf
  %v870 = vmax.f32 %v868, %v869
  %v871 = vrot.slane %v870, 4
  %v872 = vmax.f32 %v870, %v871
  %v873 = vrot.slane %v872, 2
  %v874 = vmax.f32 %v872, %v873
  %v875 = vrot.slane %v874, 1
  %v876 = vmax.f32 %v874, %v875
  %v877 = vsel %vm282, %v156, -inf
  %v878 = vsel %vm282, %v164, -inf
  %v879 = vmax.f32 %v877, %v878
  %v880 = vrot.slane %v879, 4
  %v881 = vmax.f32 %v879, %v880
  %v882 = vrot.slane %v881, 2
  %v883 = vmax.f32 %v881, %v882
  %v884 = vrot.slane %v883, 1
  %v885 = vmax.f32 %v883, %v884
  %v886 = vsel %vm282, %v157, -inf
  %v887 = vsel %vm282, %v165, -inf
  %v888 = vmax.f32 %v886, %v887
  %v889 = vrot.slane %v888, 4
  %v890 = vmax.f32 %v888, %v889
  %v891 = vrot.slane %v890, 2
  %v892 = vmax.f32 %v890, %v891
  %v893 = vrot.slane %v892, 1
  %v894 = vmax.f32 %v892, %v893
  %v895 = vsel %vm282, %v158, -inf
  %v896 = vsel %vm282, %v166, -inf
  %v897 = vmax.f32 %v895, %v896
  %v898 = vrot.slane %v897, 4
  %v899 = vmax.f32 %v897, %v898
  %v900 = vrot.slane %v899, 2
  %v901 = vmax.f32 %v899, %v900
  %v902 = vrot.slane %v901, 1
  %v903 = vmax.f32 %v901, %v902
  %v904 = vsel %vm282, %v159, -inf
  %v905 = vsel %vm282, %v167, -inf
  %v906 = vmax.f32 %v904, %v905
  %v907 = vrot.slane %v906, 4
  %v908 = vmax.f32 %v906, %v907
  %v909 = vrot.slane %v908, 2
  %v910 = vmax.f32 %v908, %v909
  %v911 = vrot.slane %v910, 1
  %v912 = vmax.f32 %v910, %v911
  %v913 = vsel %vm282, %v160, -inf
  %v914 = vsel %vm282, %v168, -inf
  %v915 = vmax.f32 %v913, %v914
  %v916 = vrot.slane %v915, 4
  %v917 = vmax.f32 %v915, %v916
  %v918 = vrot.slane %v917, 2
  %v919 = vmax.f32 %v917, %v918
  %v920 = vrot.slane %v919, 1
  %v921 = vmax.f32 %v919, %v920
  %v922 = vsel %vm282, %v161, -inf
  %v923 = vsel %vm282, %v169, -inf
  %v924 = vmax.f32 %v922, %v923
  %v925 = vrot.slane %v924, 4
  %v926 = vmax.f32 %v924, %v925
  %v927 = vrot.slane %v926, 2
  %v928 = vmax.f32 %v926, %v927
  %v929 = vrot.slane %v928, 1
  %v930 = vmax.f32 %v928, %v929
  %v931 = vsel %vm282, %v170, -inf
  %v932 = vsel %vm282, %v178, -inf
  %v933 = vmax.f32 %v931, %v932
  %v934 = vrot.slane %v933, 4
  %v935 = vmax.f32 %v933, %v934
  %v936 = vrot.slane %v935, 2
  %v937 = vmax.f32 %v935, %v936
  %v938 = vrot.slane %v937, 1
  %v939 = vmax.f32 %v937, %v938
  %v940 = vsel %vm282, %v171, -inf
  %v941 = vsel %vm282, %v179, -inf
  %v942 = vmax.f32 %v940, %v941
  %v943 = vrot.slane %v942, 4
  %v944 = vmax.f32 %v942, %v943
  %v945 = vrot.slane %v944, 2
  %v946 = vmax.f32 %v944, %v945
  %v947 = vrot.slane %v946, 1
  %v948 = vmax.f32 %v946, %v947
  %v949 = vsel %vm282, %v172, -inf
  %v950 = vsel %vm282, %v180, -inf
  %v951 = vmax.f32 %v949, %v950
  %v952 = vrot.slane %v951, 4
  %v953 = vmax.f32 %v951, %v952
  %v954 = vrot.slane %v953, 2
  %v955 = vmax.f32 %v953, %v954
  %v956 = vrot.slane %v955, 1
  %v957 = vmax.f32 %v955, %v956
  %v958 = vsel %vm282, %v173, -inf
  %v959 = vsel %vm282, %v181, -inf
  %v960 = vmax.f32 %v958, %v959
  %v961 = vrot.slane %v960, 4
  %v962 = vmax.f32 %v960, %v961
  %v963 = vrot.slane %v962, 2
  %v964 = vmax.f32 %v962, %v963
  %v965 = vrot.slane %v964, 1
  %v966 = vmax.f32 %v964, %v965
  %v967 = vsel %vm282, %v174, -inf
  %v968 = vsel %vm282, %v182, -inf
  %v969 = vmax.f32 %v967, %v968
  %v970 = vrot.slane %v969, 4
  %v971 = vmax.f32 %v969, %v970
  %v972 = vrot.slane %v971, 2
  %v973 = vmax.f32 %v971, %v972
  %v974 = vrot.slane %v973, 1
  %v975 = vmax.f32 %v973, %v974
  %v976 = vsel %vm282, %v175, -inf
  %v977 = vsel %vm282, %v183, -inf
  %v978 = vmax.f32 %v976, %v977
  %v979 = vrot.slane %v978, 4
  %v980 = vmax.f32 %v978, %v979
  %v981 = vrot.slane %v980, 2
  %v982 = vmax.f32 %v980, %v981
  %v983 = vrot.slane %v982, 1
  %v984 = vmax.f32 %v982, %v983
  %v985 = vsel %vm282, %v176, -inf
  %v986 = vsel %vm282, %v184, -inf
  %v987 = vmax.f32 %v985, %v986
  %v988 = vrot.slane %v987, 4
  %v989 = vmax.f32 %v987, %v988
  %v990 = vrot.slane %v989, 2
  %v991 = vmax.f32 %v989, %v990
  %v992 = vrot.slane %v991, 1
  %v993 = vmax.f32 %v991, %v992
  %v994 = vsel %vm282, %v177, -inf
  %v995 = vsel %vm282, %v185, -inf
  %v996 = vmax.f32 %v994, %v995
  %v997 = vrot.slane %v996, 4
  %v998 = vmax.f32 %v996, %v997
  %v999 = vrot.slane %v998, 2
  %v1000 = vmax.f32 %v998, %v999
  %v1001 = vrot.slane %v1000, 1
  %v1002 = vmax.f32 %v1000, %v1001
  %v1003 = vsel %vm282, %v186, -inf
  %v1004 = vsel %vm282, %v194, -inf
  %v1005 = vmax.f32 %v1003, %v1004
  %v1006 = vrot.slane %v1005, 4
  %v1007 = vmax.f32 %v1005, %v1006
  %v1008 = vrot.slane %v1007, 2
  %v1009 = vmax.f32 %v1007, %v1008
  %v1010 = vrot.slane %v1009, 1
  %v1011 = vmax.f32 %v1009, %v1010
  %v1012 = vsel %vm282, %v187, -inf
  %v1013 = vsel %vm282, %v195, -inf
  %v1014 = vmax.f32 %v1012, %v1013
  %v1015 = vrot.slane %v1014, 4
  %v1016 = vmax.f32 %v1014, %v1015
  %v1017 = vrot.slane %v1016, 2
  %v1018 = vmax.f32 %v1016, %v1017
  %v1019 = vrot.slane %v1018, 1
  %v1020 = vmax.f32 %v1018, %v1019
  %v1021 = vsel %vm282, %v188, -inf
  %v1022 = vsel %vm282, %v196, -inf
  %v1023 = vmax.f32 %v1021, %v1022
  %v1024 = vrot.slane %v1023, 4
  %v1025 = vmax.f32 %v1023, %v1024
  %v1026 = vrot.slane %v1025, 2
  %v1027 = vmax.f32 %v1025, %v1026
  %v1028 = vrot.slane %v1027, 1
  %v1029 = vmax.f32 %v1027, %v1028
  %v1030 = vsel %vm282, %v189, -inf
  %v1031 = vsel %vm282, %v197, -inf
  %v1032 = vmax.f32 %v1030, %v1031
  %v1033 = vrot.slane %v1032, 4
  %v1034 = vmax.f32 %v1032, %v1033
  %v1035 = vrot.slane %v1034, 2
  %v1036 = vmax.f32 %v1034, %v1035
  %v1037 = vrot.slane %v1036, 1
  %v1038 = vmax.f32 %v1036, %v1037
  %v1039 = vsel %vm282, %v190, -inf
  %v1040 = vsel %vm282, %v198, -inf
  %v1041 = vmax.f32 %v1039, %v1040
  %v1042 = vrot.slane %v1041, 4
  %v1043 = vmax.f32 %v1041, %v1042
  %v1044 = vrot.slane %v1043, 2
  %v1045 = vmax.f32 %v1043, %v1044
  %v1046 = vrot.slane %v1045, 1
  %v1047 = vmax.f32 %v1045, %v1046
  %v1048 = vsel %vm282, %v191, -inf
  %v1049 = vsel %vm282, %v199, -inf
  %v1050 = vmax.f32 %v1048, %v1049
  %v1051 = vrot.slane %v1050, 4
  %v1052 = vmax.f32 %v1050, %v1051
  %v1053 = vrot.slane %v1052, 2
  %v1054 = vmax.f32 %v1052, %v1053
  %v1055 = vrot.slane %v1054, 1
  %v1056 = vmax.f32 %v1054, %v1055
  %v1057 = vsel %vm282, %v192, -inf
  %v1058 = vsel %vm282, %v200, -inf
  %v1059 = vmax.f32 %v1057, %v1058
  %v1060 = vrot.slane %v1059, 4
  %v1061 = vmax.f32 %v1059, %v1060
  %v1062 = vrot.slane %v1061, 2
  %v1063 = vmax.f32 %v1061, %v1062
  %v1064 = vrot.slane %v1063, 1
  %v1065 = vmax.f32 %v1063, %v1064
  %v1066 = vsel %vm282, %v193, -inf
  %v1067 = vsel %vm282, %v201, -inf
  %v1068 = vmax.f32 %v1066, %v1067
  %v1069 = vrot.slane %v1068, 4
  %v1070 = vmax.f32 %v1068, %v1069
  %v1071 = vrot.slane %v1070, 2
  %v1072 = vmax.f32 %v1070, %v1071
  %v1073 = vrot.slane %v1072, 1
  %v1074 = vmax.f32 %v1072, %v1073
  %v1075 = vsel %vm282, %v202, -inf
  %v1076 = vsel %vm282, %v210, -inf
  %v1077 = vmax.f32 %v1075, %v1076
  %v1078 = vrot.slane %v1077, 4
  %v1079 = vmax.f32 %v1077, %v1078
  %v1080 = vrot.slane %v1079, 2
  %v1081 = vmax.f32 %v1079, %v1080
  %v1082 = vrot.slane %v1081, 1
  %v1083 = vmax.f32 %v1081, %v1082
  %v1084 = vsel %vm282, %v203, -inf
  %v1085 = vsel %vm282, %v211, -inf
  %v1086 = vmax.f32 %v1084, %v1085
  %v1087 = vrot.slane %v1086, 4
  %v1088 = vmax.f32 %v1086, %v1087
  %v1089 = vrot.slane %v1088, 2
  %v1090 = vmax.f32 %v1088, %v1089
  %v1091 = vrot.slane %v1090, 1
  %v1092 = vmax.f32 %v1090, %v1091
  %v1093 = vsel %vm282, %v204, -inf
  %v1094 = vsel %vm282, %v212, -inf
  %v1095 = vmax.f32 %v1093, %v1094
  %v1096 = vrot.slane %v1095, 4
  %v1097 = vmax.f32 %v1095, %v1096
  %v1098 = vrot.slane %v1097, 2
  %v1099 = vmax.f32 %v1097, %v1098
  %v1100 = vrot.slane %v1099, 1
  %v1101 = vmax.f32 %v1099, %v1100
  %v1102 = vsel %vm282, %v205, -inf
  %v1103 = vsel %vm282, %v213, -inf
  %v1104 = vmax.f32 %v1102, %v1103
  %v1105 = vrot.slane %v1104, 4
  %v1106 = vmax.f32 %v1104, %v1105
  %v1107 = vrot.slane %v1106, 2
  %v1108 = vmax.f32 %v1106, %v1107
  %v1109 = vrot.slane %v1108, 1
  %v1110 = vmax.f32 %v1108, %v1109
  %v1111 = vsel %vm282, %v206, -inf
  %v1112 = vsel %vm282, %v214, -inf
  %v1113 = vmax.f32 %v1111, %v1112
  %v1114 = vrot.slane %v1113, 4
  %v1115 = vmax.f32 %v1113, %v1114
  %v1116 = vrot.slane %v1115, 2
  %v1117 = vmax.f32 %v1115, %v1116
  %v1118 = vrot.slane %v1117, 1
  %v1119 = vmax.f32 %v1117, %v1118
  %v1120 = vsel %vm282, %v207, -inf
  %v1121 = vsel %vm282, %v215, -inf
  %v1122 = vmax.f32 %v1120, %v1121
  %v1123 = vrot.slane %v1122, 4
  %v1124 = vmax.f32 %v1122, %v1123
  %v1125 = vrot.slane %v1124, 2
  %v1126 = vmax.f32 %v1124, %v1125
  %v1127 = vrot.slane %v1126, 1
  %v1128 = vmax.f32 %v1126, %v1127
  %v1129 = vsel %vm282, %v208, -inf
  %v1130 = vsel %vm282, %v216, -inf
  %v1131 = vmax.f32 %v1129, %v1130
  %v1132 = vrot.slane %v1131, 4
  %v1133 = vmax.f32 %v1131, %v1132
  %v1134 = vrot.slane %v1133, 2
  %v1135 = vmax.f32 %v1133, %v1134
  %v1136 = vrot.slane %v1135, 1
  %v1137 = vmax.f32 %v1135, %v1136
  %v1138 = vsel %vm282, %v209, -inf
  %v1139 = vsel %vm282, %v217, -inf
  %v1140 = vmax.f32 %v1138, %v1139
  %v1141 = vrot.slane %v1140, 4
  %v1142 = vmax.f32 %v1140, %v1141
  %v1143 = vrot.slane %v1142, 2
  %v1144 = vmax.f32 %v1142, %v1143
  %v1145 = vrot.slane %v1144, 1
  %v1146 = vmax.f32 %v1144, %v1145
  %v1147 = vsel %vm282, %v218, -inf
  %v1148 = vsel %vm282, %v226, -inf
  %v1149 = vmax.f32 %v1147, %v1148
  %v1150 = vrot.slane %v1149, 4
  %v1151 = vmax.f32 %v1149, %v1150
  %v1152 = vrot.slane %v1151, 2
  %v1153 = vmax.f32 %v1151, %v1152
  %v1154 = vrot.slane %v1153, 1
  %v1155 = vmax.f32 %v1153, %v1154
  %v1156 = vsel %vm282, %v219, -inf
  %v1157 = vsel %vm282, %v227, -inf
  %v1158 = vmax.f32 %v1156, %v1157
  %v1159 = vrot.slane %v1158, 4
  %v1160 = vmax.f32 %v1158, %v1159
  %v1161 = vrot.slane %v1160, 2
  %v1162 = vmax.f32 %v1160, %v1161
  %v1163 = vrot.slane %v1162, 1
  %v1164 = vmax.f32 %v1162, %v1163
  %v1165 = vsel %vm282, %v220, -inf
  %v1166 = vsel %vm282, %v228, -inf
  %v1167 = vmax.f32 %v1165, %v1166
  %v1168 = vrot.slane %v1167, 4
  %v1169 = vmax.f32 %v1167, %v1168
  %v1170 = vrot.slane %v1169, 2
  %v1171 = vmax.f32 %v1169, %v1170
  %v1172 = vrot.slane %v1171, 1
  %v1173 = vmax.f32 %v1171, %v1172
  %v1174 = vsel %vm282, %v221, -inf
  %v1175 = vsel %vm282, %v229, -inf
  %v1176 = vmax.f32 %v1174, %v1175
  %v1177 = vrot.slane %v1176, 4
  %v1178 = vmax.f32 %v1176, %v1177
  %v1179 = vrot.slane %v1178, 2
  %v1180 = vmax.f32 %v1178, %v1179
  %v1181 = vrot.slane %v1180, 1
  %v1182 = vmax.f32 %v1180, %v1181
  %v1183 = vsel %vm282, %v222, -inf
  %v1184 = vsel %vm282, %v230, -inf
  %v1185 = vmax.f32 %v1183, %v1184
  %v1186 = vrot.slane %v1185, 4
  %v1187 = vmax.f32 %v1185, %v1186
  %v1188 = vrot.slane %v1187, 2
  %v1189 = vmax.f32 %v1187, %v1188
  %v1190 = vrot.slane %v1189, 1
  %v1191 = vmax.f32 %v1189, %v1190
  %v1192 = vsel %vm282, %v223, -inf
  %v1193 = vsel %vm282, %v231, -inf
  %v1194 = vmax.f32 %v1192, %v1193
  %v1195 = vrot.slane %v1194, 4
  %v1196 = vmax.f32 %v1194, %v1195
  %v1197 = vrot.slane %v1196, 2
  %v1198 = vmax.f32 %v1196, %v1197
  %v1199 = vrot.slane %v1198, 1
  %v1200 = vmax.f32 %v1198, %v1199
  %v1201 = vsel %vm282, %v224, -inf
  %v1202 = vsel %vm282, %v232, -inf
  %v1203 = vmax.f32 %v1201, %v1202
  %v1204 = vrot.slane %v1203, 4
  %v1205 = vmax.f32 %v1203, %v1204
  %v1206 = vrot.slane %v1205, 2
  %v1207 = vmax.f32 %v1205, %v1206
  %v1208 = vrot.slane %v1207, 1
  %v1209 = vmax.f32 %v1207, %v1208
  %v1210 = vsel %vm282, %v225, -inf
  %v1211 = vsel %vm282, %v233, -inf
  %v1212 = vmax.f32 %v1210, %v1211
  %v1213 = vrot.slane %v1212, 4
  %v1214 = vmax.f32 %v1212, %v1213
  %v1215 = vrot.slane %v1214, 2
  %v1216 = vmax.f32 %v1214, %v1215
  %v1217 = vrot.slane %v1216, 1
  %v1218 = vmax.f32 %v1216, %v1217
  %v1219 = vsel %vm282, %v234, -inf
  %v1220 = vsel %vm282, %v242, -inf
  %v1221 = vmax.f32 %v1219, %v1220
  %v1222 = vrot.slane %v1221, 4
  %v1223 = vmax.f32 %v1221, %v1222
  %v1224 = vrot.slane %v1223, 2
  %v1225 = vmax.f32 %v1223, %v1224
  %v1226 = vrot.slane %v1225, 1
  %v1227 = vmax.f32 %v1225, %v1226
  %v1228 = vsel %vm282, %v235, -inf
  %v1229 = vsel %vm282, %v243, -inf
  %v1230 = vmax.f32 %v1228, %v1229
  %v1231 = vrot.slane %v1230, 4
  %v1232 = vmax.f32 %v1230, %v1231
  %v1233 = vrot.slane %v1232, 2
  %v1234 = vmax.f32 %v1232, %v1233
  %v1235 = vrot.slane %v1234, 1
  %v1236 = vmax.f32 %v1234, %v1235
  %v1237 = vsel %vm282, %v236, -inf
  %v1238 = vsel %vm282, %v244, -inf
  %v1239 = vmax.f32 %v1237, %v1238
  %v1240 = vrot.slane %v1239, 4
  %v1241 = vmax.f32 %v1239, %v1240
  %v1242 = vrot.slane %v1241, 2
  %v1243 = vmax.f32 %v1241, %v1242
  %v1244 = vrot.slane %v1243, 1
  %v1245 = vmax.f32 %v1243, %v1244
  %v1246 = vsel %vm282, %v237, -inf
  %v1247 = vsel %vm282, %v245, -inf
  %v1248 = vmax.f32 %v1246, %v1247
  %v1249 = vrot.slane %v1248, 4
  %v1250 = vmax.f32 %v1248, %v1249
  %v1251 = vrot.slane %v1250, 2
  %v1252 = vmax.f32 %v1250, %v1251
  %v1253 = vrot.slane %v1252, 1
  %v1254 = vmax.f32 %v1252, %v1253
  %v1255 = vsel %vm282, %v238, -inf
  %v1256 = vsel %vm282, %v246, -inf
  %v1257 = vmax.f32 %v1255, %v1256
  %v1258 = vrot.slane %v1257, 4
  %v1259 = vmax.f32 %v1257, %v1258
  %v1260 = vrot.slane %v1259, 2
  %v1261 = vmax.f32 %v1259, %v1260
  %v1262 = vrot.slane %v1261, 1
  %v1263 = vmax.f32 %v1261, %v1262
  %v1264 = vsel %vm282, %v239, -inf
  %v1265 = vsel %vm282, %v247, -inf
  %v1266 = vmax.f32 %v1264, %v1265
  %v1267 = vrot.slane %v1266, 4
  %v1268 = vmax.f32 %v1266, %v1267
  %v1269 = vrot.slane %v1268, 2
  %v1270 = vmax.f32 %v1268, %v1269
  %v1271 = vrot.slane %v1270, 1
  %v1272 = vmax.f32 %v1270, %v1271
  %v1273 = vsel %vm282, %v240, -inf
  %v1274 = vsel %vm282, %v248, -inf
  %v1275 = vmax.f32 %v1273, %v1274
  %v1276 = vrot.slane %v1275, 4
  %v1277 = vmax.f32 %v1275, %v1276
  %v1278 = vrot.slane %v1277, 2
  %v1279 = vmax.f32 %v1277, %v1278
  %v1280 = vrot.slane %v1279, 1
  %v1281 = vmax.f32 %v1279, %v1280
  %v1282 = vsel %vm282, %v241, -inf
  %v1283 = vsel %vm282, %v249, -inf
  %v1284 = vmax.f32 %v1282, %v1283
  %v1285 = vrot.slane %v1284, 4
  %v1286 = vmax.f32 %v1284, %v1285
  %v1287 = vrot.slane %v1286, 2
  %v1288 = vmax.f32 %v1286, %v1287
  %v1289 = vrot.slane %v1288, 1
  %v1290 = vmax.f32 %v1288, %v1289
  %v1291 = vsel %vm282, %v250, -inf
  %v1292 = vsel %vm282, %v258, -inf
  %v1293 = vmax.f32 %v1291, %v1292
  %v1294 = vrot.slane %v1293, 4
  %v1295 = vmax.f32 %v1293, %v1294
  %v1296 = vrot.slane %v1295, 2
  %v1297 = vmax.f32 %v1295, %v1296
  %v1298 = vrot.slane %v1297, 1
  %v1299 = vmax.f32 %v1297, %v1298
  %v1300 = vsel %vm282, %v251, -inf
  %v1301 = vsel %vm282, %v259, -inf
  %v1302 = vmax.f32 %v1300, %v1301
  %v1303 = vrot.slane %v1302, 4
  %v1304 = vmax.f32 %v1302, %v1303
  %v1305 = vrot.slane %v1304, 2
  %v1306 = vmax.f32 %v1304, %v1305
  %v1307 = vrot.slane %v1306, 1
  %v1308 = vmax.f32 %v1306, %v1307
  %v1309 = vsel %vm282, %v252, -inf
  %v1310 = vsel %vm282, %v260, -inf
  %v1311 = vmax.f32 %v1309, %v1310
  %v1312 = vrot.slane %v1311, 4
  %v1313 = vmax.f32 %v1311, %v1312
  %v1314 = vrot.slane %v1313, 2
  %v1315 = vmax.f32 %v1313, %v1314
  %v1316 = vrot.slane %v1315, 1
  %v1317 = vmax.f32 %v1315, %v1316
  %v1318 = vsel %vm282, %v253, -inf
  %v1319 = vsel %vm282, %v261, -inf
  %v1320 = vmax.f32 %v1318, %v1319
  %v1321 = vrot.slane %v1320, 4
  %v1322 = vmax.f32 %v1320, %v1321
  %v1323 = vrot.slane %v1322, 2
  %v1324 = vmax.f32 %v1322, %v1323
  %v1325 = vrot.slane %v1324, 1
  %v1326 = vmax.f32 %v1324, %v1325
  %v1327 = vsel %vm282, %v254, -inf
  %v1328 = vsel %vm282, %v262, -inf
  %v1329 = vmax.f32 %v1327, %v1328
  %v1330 = vrot.slane %v1329, 4
  %v1331 = vmax.f32 %v1329, %v1330
  %v1332 = vrot.slane %v1331, 2
  %v1333 = vmax.f32 %v1331, %v1332
  %v1334 = vrot.slane %v1333, 1
  %v1335 = vmax.f32 %v1333, %v1334
  %v1336 = vsel %vm282, %v255, -inf
  %v1337 = vsel %vm282, %v263, -inf
  %v1338 = vmax.f32 %v1336, %v1337
  %v1339 = vrot.slane %v1338, 4
  %v1340 = vmax.f32 %v1338, %v1339
  %v1341 = vrot.slane %v1340, 2
  %v1342 = vmax.f32 %v1340, %v1341
  %v1343 = vrot.slane %v1342, 1
  %v1344 = vmax.f32 %v1342, %v1343
  %v1345 = vsel %vm282, %v256, -inf
  %v1346 = vsel %vm282, %v264, -inf
  %v1347 = vmax.f32 %v1345, %v1346
  %v1348 = vrot.slane %v1347, 4
  %v1349 = vmax.f32 %v1347, %v1348
  %v1350 = vrot.slane %v1349, 2
  %v1351 = vmax.f32 %v1349, %v1350
  %v1352 = vrot.slane %v1351, 1
  %v1353 = vmax.f32 %v1351, %v1352
  %v1354 = vsel %vm282, %v257, -inf
  %v1355 = vsel %vm282, %v265, -inf
  %v1356 = vmax.f32 %v1354, %v1355
  %v1357 = vrot.slane %v1356, 4
  %v1358 = vmax.f32 %v1356, %v1357
  %v1359 = vrot.slane %v1358, 2
  %v1360 = vmax.f32 %v1358, %v1359
  %v1361 = vrot.slane %v1360, 1
  %v1362 = vmax.f32 %v1360, %v1361
  %v1363 = vsel %vm282, %v266, -inf
  %v1364 = vsel %vm282, %v274, -inf
  %v1365 = vmax.f32 %v1363, %v1364
  %v1366 = vrot.slane %v1365, 4
  %v1367 = vmax.f32 %v1365, %v1366
  %v1368 = vrot.slane %v1367, 2
  %v1369 = vmax.f32 %v1367, %v1368
  %v1370 = vrot.slane %v1369, 1
  %v1371 = vmax.f32 %v1369, %v1370
  %v1372 = vsel %vm282, %v267, -inf
  %v1373 = vsel %vm282, %v275, -inf
  %v1374 = vmax.f32 %v1372, %v1373
  %v1375 = vrot.slane %v1374, 4
  %v1376 = vmax.f32 %v1374, %v1375
  %v1377 = vrot.slane %v1376, 2
  %v1378 = vmax.f32 %v1376, %v1377
  %v1379 = vrot.slane %v1378, 1
  %v1380 = vmax.f32 %v1378, %v1379
  %v1381 = vsel %vm282, %v268, -inf
  %v1382 = vsel %vm282, %v276, -inf
  %v1383 = vmax.f32 %v1381, %v1382
  %v1384 = vrot.slane %v1383, 4
  %v1385 = vmax.f32 %v1383, %v1384
  %v1386 = vrot.slane %v1385, 2
  %v1387 = vmax.f32 %v1385, %v1386
  %v1388 = vrot.slane %v1387, 1
  %v1389 = vmax.f32 %v1387, %v1388
  %v1390 = vsel %vm282, %v269, -inf
  %v1391 = vsel %vm282, %v277, -inf
  %v1392 = vmax.f32 %v1390, %v1391
  %v1393 = vrot.slane %v1392, 4
  %v1394 = vmax.f32 %v1392, %v1393
  %v1395 = vrot.slane %v1394, 2
  %v1396 = vmax.f32 %v1394, %v1395
  %v1397 = vrot.slane %v1396, 1
  %v1398 = vmax.f32 %v1396, %v1397
  %v1399 = vsel %vm282, %v270, -inf
  %v1400 = vsel %vm282, %v278, -inf
  %v1401 = vmax.f32 %v1399, %v1400
  %v1402 = vrot.slane %v1401, 4
  %v1403 = vmax.f32 %v1401, %v1402
  %v1404 = vrot.slane %v1403, 2
  %v1405 = vmax.f32 %v1403, %v1404
  %v1406 = vrot.slane %v1405, 1
  %v1407 = vmax.f32 %v1405, %v1406
  %v1408 = vsel %vm282, %v271, -inf
  %v1409 = vsel %vm282, %v279, -inf
  %v1410 = vmax.f32 %v1408, %v1409
  %v1411 = vrot.slane %v1410, 4
  %v1412 = vmax.f32 %v1410, %v1411
  %v1413 = vrot.slane %v1412, 2
  %v1414 = vmax.f32 %v1412, %v1413
  %v1415 = vrot.slane %v1414, 1
  %v1416 = vmax.f32 %v1414, %v1415
  %v1417 = vsel %vm282, %v272, -inf
  %v1418 = vsel %vm282, %v280, -inf
  %v1419 = vmax.f32 %v1417, %v1418
  %v1420 = vrot.slane %v1419, 4
  %v1421 = vmax.f32 %v1419, %v1420
  %v1422 = vrot.slane %v1421, 2
  %v1423 = vmax.f32 %v1421, %v1422
  %v1424 = vrot.slane %v1423, 1
  %v1425 = vmax.f32 %v1423, %v1424
  %v1426 = vsel %vm282, %v273, -inf
  %v1427 = vsel %vm282, %v281, -inf
  %v1428 = vmax.f32 %v1426, %v1427
  %v1429 = vrot.slane %v1428, 4
  %v1430 = vmax.f32 %v1428, %v1429
  %v1431 = vrot.slane %v1430, 2
  %v1432 = vmax.f32 %v1430, %v1431
  %v1433 = vrot.slane %v1432, 1
  %v1434 = vmax.f32 %v1432, %v1433
  %vm1435 = vcmask 31744
  %1436 = vst.msk [vmem:[#allocation2] sm:$0xff] %vm1435, 0.0
  %1437 = vst.msk [vmem:[#allocation2 + $0x8] sm:$0x3] %vm282, 0.0
  %1438 = vst.msk [vmem:[#allocation2 + $0x10] sm:$0xff] %vm1435, 0.0
  %1439 = vst.msk [vmem:[#allocation2 + $0x18] sm:$0x3] %vm282, 0.0
  %1440 = vst.msk [vmem:[#allocation2 + $0x20] sm:$0xff] %vm1435, 0.0
  %1441 = vst.msk [vmem:[#allocation2 + $0x28] sm:$0x3] %vm282, 0.0
  %1442 = vst.msk [vmem:[#allocation2 + $0x30] sm:$0xff] %vm1435, 0.0
  %1443 = vst.msk [vmem:[#allocation2 + $0x38] sm:$0x3] %vm282, 0.0
  %1444 = vst.msk [vmem:[#allocation2 + $0x40] sm:$0xff] %vm1435, 0.0
  %1445 = vst.msk [vmem:[#allocation2 + $0x48] sm:$0x3] %vm282, 0.0
  %1446 = vst.msk [vmem:[#allocation2 + $0x50] sm:$0xff] %vm1435, 0.0
  %1447 = vst.msk [vmem:[#allocation2 + $0x58] sm:$0x3] %vm282, 0.0
  %1448 = vst.msk [vmem:[#allocation2 + $0x60] sm:$0xff] %vm1435, 0.0
  %1449 = vst.msk [vmem:[#allocation2 + $0x68] sm:$0x3] %vm282, 0.0
  %1450 = vst.msk [vmem:[#allocation2 + $0x70] sm:$0xff] %vm1435, 0.0
  %1451 = vst.msk [vmem:[#allocation2 + $0x78] sm:$0x3] %vm282, 0.0
  %1452 = vst.msk [vmem:[#allocation2 + $0x80] sm:$0xff] %vm1435, 0.0
  %1453 = vst.msk [vmem:[#allocation2 + $0x88] sm:$0x3] %vm282, 0.0
  %1454 = vst.msk [vmem:[#allocation2 + $0x90] sm:$0xff] %vm1435, 0.0
  %1455 = vst.msk [vmem:[#allocation2 + $0x98] sm:$0x3] %vm282, 0.0
  %1456 = vst.msk [vmem:[#allocation2 + $0xa0] sm:$0xff] %vm1435, 0.0
  %1457 = vst.msk [vmem:[#allocation2 + $0xa8] sm:$0x3] %vm282, 0.0
  %1458 = vst.msk [vmem:[#allocation2 + $0xb0] sm:$0xff] %vm1435, 0.0
  %1459 = vst.msk [vmem:[#allocation2 + $0xb8] sm:$0x3] %vm282, 0.0
  %1460 = vst.msk [vmem:[#allocation2 + $0xc0] sm:$0xff] %vm1435, 0.0
  %1461 = vst.msk [vmem:[#allocation2 + $0xc8] sm:$0x3] %vm282, 0.0
  %1462 = vst.msk [vmem:[#allocation2 + $0xd0] sm:$0xff] %vm1435, 0.0
  %1463 = vst.msk [vmem:[#allocation2 + $0xd8] sm:$0x3] %vm282, 0.0
  %1464 = vst.msk [vmem:[#allocation2 + $0xe0] sm:$0xff] %vm1435, 0.0
  %1465 = vst.msk [vmem:[#allocation2 + $0xe8] sm:$0x3] %vm282, 0.0
  %1466 = vst.msk [vmem:[#allocation2 + $0xf0] sm:$0xff] %vm1435, 0.0
  %1467 = vst.msk [vmem:[#allocation2 + $0xf8] sm:$0x3] %vm282, 0.0
  %1468 = vst.msk [vmem:[#allocation2 + $0x100] sm:$0xff] %vm1435, 0.0
  %1469 = vst.msk [vmem:[#allocation2 + $0x108] sm:$0x3] %vm282, 0.0
  %1470 = vst.msk [vmem:[#allocation2 + $0x110] sm:$0xff] %vm1435, 0.0
  %1471 = vst.msk [vmem:[#allocation2 + $0x118] sm:$0x3] %vm282, 0.0
  %1472 = vst.msk [vmem:[#allocation2 + $0x120] sm:$0xff] %vm1435, 0.0
  %1473 = vst.msk [vmem:[#allocation2 + $0x128] sm:$0x3] %vm282, 0.0
  %1474 = vst.msk [vmem:[#allocation2 + $0x130] sm:$0xff] %vm1435, 0.0
  %1475 = vst.msk [vmem:[#allocation2 + $0x138] sm:$0x3] %vm282, 0.0
  %vm1604 = vcmask 1041409
  %v1605 = vsel %vm1604, %v300, %v291
  %vm1606 = vcmask 1042434
  %v1607 = vsel %vm1606, %v309, %v1605
  %vm1608 = vcmask 1043459
  %v1609 = vsel %vm1608, %v318, %v1607
  %vm1610 = vcmask 1044484
  %v1611 = vsel %vm1610, %v327, %v1609
  %vm1612 = vcmask 1045509
  %v1613 = vsel %vm1612, %v336, %v1611
  %vm1614 = vcmask 1046534
  %v1615 = vsel %vm1614, %v345, %v1613
  %vm1616 = vcmask 1047559
  %v1617 = vsel %vm1616, %v354, %v1615
  %v1618 = vsel %vm1604, %v372, %v363
  %v1619 = vsel %vm1606, %v381, %v1618
  %v1620 = vsel %vm1608, %v390, %v1619
  %v1621 = vsel %vm1610, %v399, %v1620
  %v1622 = vsel %vm1612, %v408, %v1621
  %v1623 = vsel %vm1614, %v417, %v1622
  %v1624 = vsel %vm1616, %v426, %v1623
  %v1625 = vsel %vm1604, %v444, %v435
  %v1626 = vsel %vm1606, %v453, %v1625
  %v1627 = vsel %vm1608, %v462, %v1626
  %v1628 = vsel %vm1610, %v471, %v1627
  %v1629 = vsel %vm1612, %v480, %v1628
  %v1630 = vsel %vm1614, %v489, %v1629
  %v1631 = vsel %vm1616, %v498, %v1630
  %v1632 = vsel %vm1604, %v516, %v507
  %v1633 = vsel %vm1606, %v525, %v1632
  %v1634 = vsel %vm1608, %v534, %v1633
  %v1635 = vsel %vm1610, %v543, %v1634
  %v1636 = vsel %vm1612, %v552, %v1635
  %v1637 = vsel %vm1614, %v561, %v1636
  %v1638 = vsel %vm1616, %v570, %v1637
  %v1639 = vsel %vm1604, %v588, %v579
  %v1640 = vsel %vm1606, %v597, %v1639
  %v1641 = vsel %vm1608, %v606, %v1640
  %v1642 = vsel %vm1610, %v615, %v1641
  %v1643 = vsel %vm1612, %v624, %v1642
  %v1644 = vsel %vm1614, %v633, %v1643
  %v1645 = vsel %vm1616, %v642, %v1644
  %v1646 = vsel %vm1604, %v660, %v651
  %v1647 = vsel %vm1606, %v669, %v1646
  %v1648 = vsel %vm1608, %v678, %v1647
  %v1649 = vsel %vm1610, %v687, %v1648
  %v1650 = vsel %vm1612, %v696, %v1649
  %v1651 = vsel %vm1614, %v705, %v1650
  %v1652 = vsel %vm1616, %v714, %v1651
  %v1653 = vsel %vm1604, %v732, %v723
  %v1654 = vsel %vm1606, %v741, %v1653
  %v1655 = vsel %vm1608, %v750, %v1654
  %v1656 = vsel %vm1610, %v759, %v1655
  %v1657 = vsel %vm1612, %v768, %v1656
  %v1658 = vsel %vm1614, %v777, %v1657
  %v1659 = vsel %vm1616, %v786, %v1658
  %v1660 = vsel %vm1604, %v804, %v795
  %v1661 = vsel %vm1606, %v813, %v1660
  %v1662 = vsel %vm1608, %v822, %v1661
  %v1663 = vsel %vm1610, %v831, %v1662
  %v1664 = vsel %vm1612, %v840, %v1663
  %v1665 = vsel %vm1614, %v849, %v1664
  %v1666 = vsel %vm1616, %v858, %v1665
  %v1667 = vsel %vm1604, %v876, %v867
  %v1668 = vsel %vm1606, %v885, %v1667
  %v1669 = vsel %vm1608, %v894, %v1668
  %v1670 = vsel %vm1610, %v903, %v1669
  %v1671 = vsel %vm1612, %v912, %v1670
  %v1672 = vsel %vm1614, %v921, %v1671
  %v1673 = vsel %vm1616, %v930, %v1672
  %v1674 = vsel %vm1604, %v948, %v939
  %v1675 = vsel %vm1606, %v957, %v1674
  %v1676 = vsel %vm1608, %v966, %v1675
  %v1677 = vsel %vm1610, %v975, %v1676
  %v1678 = vsel %vm1612, %v984, %v1677
  %v1679 = vsel %vm1614, %v993, %v1678
  %v1680 = vsel %vm1616, %v1002, %v1679
  %v1681 = vsel %vm1604, %v1020, %v1011
  %v1682 = vsel %vm1606, %v1029, %v1681
  %v1683 = vsel %vm1608, %v1038, %v1682
  %v1684 = vsel %vm1610, %v1047, %v1683
  %v1685 = vsel %vm1612, %v1056, %v1684
  %v1686 = vsel %vm1614, %v1065, %v1685
  %v1687 = vsel %vm1616, %v1074, %v1686
  %v1688 = vsel %vm1604, %v1092, %v1083
  %v1689 = vsel %vm1606, %v1101, %v1688
  %v1690 = vsel %vm1608, %v1110, %v1689
  %v1691 = vsel %vm1610, %v1119, %v1690
  %v1692 = vsel %vm1612, %v1128, %v1691
  %v1693 = vsel %vm1614, %v1137, %v1692
  %v1694 = vsel %vm1616, %v1146, %v1693
  %v1695 = vsel %vm1604, %v1164, %v1155
  %v1696 = vsel %vm1606, %v1173, %v1695
  %v1697 = vsel %vm1608, %v1182, %v1696
  %v1698 = vsel %vm1610, %v1191, %v1697
  %v1699 = vsel %vm1612, %v1200, %v1698
  %v1700 = vsel %vm1614, %v1209, %v1699
  %v1701 = vsel %vm1616, %v1218, %v1700
  %v1702 = vsel %vm1604, %v1236, %v1227
  %v1703 = vsel %vm1606, %v1245, %v1702
  %v1704 = vsel %vm1608, %v1254, %v1703
  %v1705 = vsel %vm1610, %v1263, %v1704
  %v1706 = vsel %vm1612, %v1272, %v1705
  %v1707 = vsel %vm1614, %v1281, %v1706
  %v1708 = vsel %vm1616, %v1290, %v1707
  %v1709 = vsel %vm1604, %v1308, %v1299
  %v1710 = vsel %vm1606, %v1317, %v1709
  %v1711 = vsel %vm1608, %v1326, %v1710
  %v1712 = vsel %vm1610, %v1335, %v1711
  %v1713 = vsel %vm1612, %v1344, %v1712
  %v1714 = vsel %vm1614, %v1353, %v1713
  %v1715 = vsel %vm1616, %v1362, %v1714
  %v1716 = vsel %vm1604, %v1380, %v1371
  %v1717 = vsel %vm1606, %v1389, %v1716
  %v1718 = vsel %vm1608, %v1398, %v1717
  %v1719 = vsel %vm1610, %v1407, %v1718
  %v1720 = vsel %vm1612, %v1416, %v1719
  %v1721 = vsel %vm1614, %v1425, %v1720
  %v1722 = vsel %vm1616, %v1434, %v1721
  %s1739 = scalar_lea.vmem [#allocation2], 16
  %1740 = vst.msk [vmem:[%s1739 + $0x1] sm:$0xff] %vm1435, %v1617
  %1741 = vst.msk [vmem:[%s1739 + $0x11] sm:$0xff] %vm1435, %v1624
  %1742 = vst.msk [vmem:[%s1739 + $0x21] sm:$0xff] %vm1435, %v1631
  %1743 = vst.msk [vmem:[%s1739 + $0x31] sm:$0xff] %vm1435, %v1638
  %1744 = vst.msk [vmem:[%s1739 + $0x41] sm:$0xff] %vm1435, %v1645
  %1745 = vst.msk [vmem:[%s1739 + $0x51] sm:$0xff] %vm1435, %v1652
  %1746 = vst.msk [vmem:[%s1739 + $0x61] sm:$0xff] %vm1435, %v1659
  %1747 = vst.msk [vmem:[%s1739 + $0x71] sm:$0xff] %vm1435, %v1666
  %1748 = vst.msk [vmem:[%s1739 + $0xa1] sm:$0xff] %vm1435, %v1673
  %1749 = vst.msk [vmem:[%s1739 + $0xb1] sm:$0xff] %vm1435, %v1680
  %1750 = vst.msk [vmem:[%s1739 + $0xc1] sm:$0xff] %vm1435, %v1687
  %1751 = vst.msk [vmem:[%s1739 + $0xd1] sm:$0xff] %vm1435, %v1694
  %1752 = vst.msk [vmem:[%s1739 + $0xe1] sm:$0xff] %vm1435, %v1701
  %1753 = vst.msk [vmem:[%s1739 + $0xf1] sm:$0xff] %vm1435, %v1708
  %1754 = vst.msk [vmem:[%s1739 + $0x101] sm:$0xff] %vm1435, %v1715
  %1755 = vst.msk [vmem:[%s1739 + $0x111] sm:$0xff] %vm1435, %v1722
  %v1756 = vld [vmem:[#allocation2] sm:$0xff]
  %v1757 = vld [vmem:[#allocation2 + $0x8] sm:$0x3]
  %v1758 = vld [vmem:[#allocation2 + $0x10] sm:$0xff]
  %v1759 = vld [vmem:[#allocation2 + $0x18] sm:$0x3]
  %v1760 = vld [vmem:[#allocation2 + $0x20] sm:$0xff]
  %v1761 = vld [vmem:[#allocation2 + $0x28] sm:$0x3]
  %v1762 = vld [vmem:[#allocation2 + $0x30] sm:$0xff]
  %v1763 = vld [vmem:[#allocation2 + $0x38] sm:$0x3]
  %v1764 = vld [vmem:[#allocation2 + $0x40] sm:$0xff]
  %v1765 = vld [vmem:[#allocation2 + $0x48] sm:$0x3]
  %v1766 = vld [vmem:[#allocation2 + $0x50] sm:$0xff]
  %v1767 = vld [vmem:[#allocation2 + $0x58] sm:$0x3]
  %v1768 = vld [vmem:[#allocation2 + $0x60] sm:$0xff]
  %v1769 = vld [vmem:[#allocation2 + $0x68] sm:$0x3]
  %v1770 = vld [vmem:[#allocation2 + $0x70] sm:$0xff]
  %v1771 = vld [vmem:[#allocation2 + $0x78] sm:$0x3]
  %v1772 = vld [vmem:[#allocation2 + $0x80] sm:$0xff]
  %v1773 = vld [vmem:[#allocation2 + $0x88] sm:$0x3]
  %v1774 = vld [vmem:[#allocation2 + $0x90] sm:$0xff]
  %v1775 = vld [vmem:[#allocation2 + $0x98] sm:$0x3]
  %v1776 = vld [vmem:[#allocation2 + $0xa0] sm:$0xff]
  %v1777 = vld [vmem:[#allocation2 + $0xa8] sm:$0x3]
  %v1778 = vld [vmem:[#allocation2 + $0xb0] sm:$0xff]
  %v1779 = vld [vmem:[#allocation2 + $0xb8] sm:$0x3]
  %v1780 = vld [vmem:[#allocation2 + $0xc0] sm:$0xff]
  %v1781 = vld [vmem:[#allocation2 + $0xc8] sm:$0x3]
  %v1782 = vld [vmem:[#allocation2 + $0xd0] sm:$0xff]
  %v1783 = vld [vmem:[#allocation2 + $0xd8] sm:$0x3]
  %v1784 = vld [vmem:[#allocation2 + $0xe0] sm:$0xff]
  %v1785 = vld [vmem:[#allocation2 + $0xe8] sm:$0x3]
  %v1786 = vld [vmem:[#allocation2 + $0xf0] sm:$0xff]
  %v1787 = vld [vmem:[#allocation2 + $0xf8] sm:$0x3]
  %v1788 = vld [vmem:[#allocation2 + $0x100] sm:$0xff]
  %v1789 = vld [vmem:[#allocation2 + $0x108] sm:$0x3]
  %v1790 = vld [vmem:[#allocation2 + $0x110] sm:$0xff]
  %v1791 = vld [vmem:[#allocation2 + $0x118] sm:$0x3]
  %v1792 = vld [vmem:[#allocation2 + $0x120] sm:$0xff]
  %v1793 = vld [vmem:[#allocation2 + $0x128] sm:$0x3]
  %v1794 = vld [vmem:[#allocation2 + $0x130] sm:$0xff]
  %v1795 = vld [vmem:[#allocation2 + $0x138] sm:$0x3]
  %v1796 = vld [vmem:[%s1] sm:$0xff]
  %v1797 = vld [vmem:[%s1 + $0x8] sm:$0xff]
  %v1798 = vld [vmem:[%s1 + $0x10] sm:$0xff]
  %v1799 = vld [vmem:[%s1 + $0x18] sm:$0xff]
  %v1800 = vld [vmem:[%s1 + $0x20] sm:$0xf]
  %v1801 = vld [vmem:[%s2] sm:$0x1]
  %v1802 = vld [vmem:[%s3] sm:$0x1]
  %1803 = vst.msk [vmem:[#allocation4] sm:$0xff] %vm1435, %v1756
  %1804 = vst.msk [vmem:[#allocation4 + $0x8] sm:$0xff] %vm1435, %v1758
  %1805 = vst.msk [vmem:[#allocation4 + $0x10] sm:$0xff] %vm1435, %v1760
  %1806 = vst.msk [vmem:[#allocation4 + $0x18] sm:$0xff] %vm1435, %v1762
  %1807 = vst.msk [vmem:[#allocation4 + $0x20] sm:$0xff] %vm1435, %v1764
  %1808 = vst.msk [vmem:[#allocation4 + $0x28] sm:$0xff] %vm1435, %v1766
  %1809 = vst.msk [vmem:[#allocation4 + $0x30] sm:$0xff] %vm1435, %v1768
  %1810 = vst.msk [vmem:[#allocation4 + $0x38] sm:$0xff] %vm1435, %v1770
  %1811 = vst.msk [vmem:[#allocation4 + $0x40] sm:$0xff] %vm1435, %v1776
  %1812 = vst.msk [vmem:[#allocation4 + $0x48] sm:$0xff] %vm1435, %v1778
  %1813 = vst.msk [vmem:[#allocation4 + $0x50] sm:$0xff] %vm1435, %v1780
  %1814 = vst.msk [vmem:[#allocation4 + $0x58] sm:$0xff] %vm1435, %v1782
  %1815 = vst.msk [vmem:[#allocation4 + $0x60] sm:$0xff] %vm1435, %v1784
  %1816 = vst.msk [vmem:[#allocation4 + $0x68] sm:$0xff] %vm1435, %v1786
  %1817 = vst.msk [vmem:[#allocation4 + $0x70] sm:$0xff] %vm1435, %v1788
  %1818 = vst.msk [vmem:[#allocation4 + $0x78] sm:$0xff] %vm1435, %v1790
  %vm1851 = vcmask 1046528
  %v1852 = vrot.slane %v1756, 1
  %v1853 = vrot.slane %v1757, 1
  %v1854 = vsel %vm1851, %v1852, %v1853
  %v1855 = vrot.slane %v1758, 1
  %v1856 = vrot.slane %v1759, 1
  %v1857 = vsel %vm1851, %v1855, %v1856
  %v1858 = vrot.slane %v1760, 1
  %v1859 = vrot.slane %v1761, 1
  %v1860 = vsel %vm1851, %v1858, %v1859
  %v1861 = vrot.slane %v1762, 1
  %v1862 = vrot.slane %v1763, 1
  %v1863 = vsel %vm1851, %v1861, %v1862
  %v1864 = vrot.slane %v1764, 1
  %v1865 = vrot.slane %v1765, 1
  %v1866 = vsel %vm1851, %v1864, %v1865
  %v1867 = vrot.slane %v1766, 1
  %v1868 = vrot.slane %v1767, 1
  %v1869 = vsel %vm1851, %v1867, %v1868
  %v1870 = vrot.slane %v1768, 1
  %v1871 = vrot.slane %v1769, 1
  %v1872 = vsel %vm1851, %v1870, %v1871
  %v1873 = vrot.slane %v1770, 1
  %v1874 = vrot.slane %v1771, 1
  %v1875 = vsel %vm1851, %v1873, %v1874
  %v1876 = vrot.slane %v1776, 1
  %v1877 = vrot.slane %v1777, 1
  %v1878 = vsel %vm1851, %v1876, %v1877
  %v1879 = vrot.slane %v1778, 1
  %v1880 = vrot.slane %v1779, 1
  %v1881 = vsel %vm1851, %v1879, %v1880
  %v1882 = vrot.slane %v1780, 1
  %v1883 = vrot.slane %v1781, 1
  %v1884 = vsel %vm1851, %v1882, %v1883
  %v1885 = vrot.slane %v1782, 1
  %v1886 = vrot.slane %v1783, 1
  %v1887 = vsel %vm1851, %v1885, %v1886
  %v1888 = vrot.slane %v1784, 1
  %v1889 = vrot.slane %v1785, 1
  %v1890 = vsel %vm1851, %v1888, %v1889
  %v1891 = vrot.slane %v1786, 1
  %v1892 = vrot.slane %v1787, 1
  %v1893 = vsel %vm1851, %v1891, %v1892
  %v1894 = vrot.slane %v1788, 1
  %v1895 = vrot.slane %v1789, 1
  %v1896 = vsel %vm1851, %v1894, %v1895
  %v1897 = vrot.slane %v1790, 1
  %v1898 = vrot.slane %v1791, 1
  %v1899 = vsel %vm1851, %v1897, %v1898
  %1900 = vrot.lane.b32.xlu0 %v1854, 4
  %v1901 = vpop.permute.xlu0 %1900
  %1902 = vrot.lane.b32.xlu0 %v1857, 4
  %v1903 = vpop.permute.xlu0 %1902
  %1904 = vrot.lane.b32.xlu0 %v1860, 4
  %v1905 = vpop.permute.xlu0 %1904
  %1906 = vrot.lane.b32.xlu0 %v1863, 4
  %v1907 = vpop.permute.xlu0 %1906
  %1908 = vrot.lane.b32.xlu0 %v1866, 4
  %v1909 = vpop.permute.xlu0 %1908
  %1910 = vrot.lane.b32.xlu0 %v1869, 4
  %v1911 = vpop.permute.xlu0 %1910
  %1912 = vrot.lane.b32.xlu0 %v1872, 4
  %v1913 = vpop.permute.xlu0 %1912
  %1914 = vrot.lane.b32.xlu0 %v1875, 4
  %v1915 = vpop.permute.xlu0 %1914
  %1916 = vrot.lane.b32.xlu0 %v1878, 4
  %v1917 = vpop.permute.xlu0 %1916
  %1918 = vrot.lane.b32.xlu0 %v1881, 4
  %v1919 = vpop.permute.xlu0 %1918
  %1920 = vrot.lane.b32.xlu0 %v1884, 4
  %v1921 = vpop.permute.xlu0 %1920
  %1922 = vrot.lane.b32.xlu0 %v1887, 4
  %v1923 = vpop.permute.xlu0 %1922
  %1924 = vrot.lane.b32.xlu0 %v1890, 4
  %v1925 = vpop.permute.xlu0 %1924
  %1926 = vrot.lane.b32.xlu0 %v1893, 4
  %v1927 = vpop.permute.xlu0 %1926
  %1928 = vrot.lane.b32.xlu0 %v1896, 4
  %v1929 = vpop.permute.xlu0 %1928
  %1930 = vrot.lane.b32.xlu0 %v1899, 4
  %v1931 = vpop.permute.xlu0 %1930
  %vm1948 = vcmask 64544
  %1949 = vst.msk [vmem:[#allocation4] sm:$0xff] %vm1948, %v1901
  %1950 = vst.msk [vmem:[#allocation4 + $0x8] sm:$0xff] %vm1948, %v1903
  %1951 = vst.msk [vmem:[#allocation4 + $0x10] sm:$0xff] %vm1948, %v1905
  %1952 = vst.msk [vmem:[#allocation4 + $0x18] sm:$0xff] %vm1948, %v1907
  %1953 = vst.msk [vmem:[#allocation4 + $0x20] sm:$0xff] %vm1948, %v1909
  %1954 = vst.msk [vmem:[#allocation4 + $0x28] sm:$0xff] %vm1948, %v1911
  %1955 = vst.msk [vmem:[#allocation4 + $0x30] sm:$0xff] %vm1948, %v1913
  %1956 = vst.msk [vmem:[#allocation4 + $0x38] sm:$0xff] %vm1948, %v1915
  %1957 = vst.msk [vmem:[#allocation4 + $0x40] sm:$0xff] %vm1948, %v1917
  %1958 = vst.msk [vmem:[#allocation4 + $0x48] sm:$0xff] %vm1948, %v1919
  %1959 = vst.msk [vmem:[#allocation4 + $0x50] sm:$0xff] %vm1948, %v1921
  %1960 = vst.msk [vmem:[#allocation4 + $0x58] sm:$0xff] %vm1948, %v1923
  %1961 = vst.msk [vmem:[#allocation4 + $0x60] sm:$0xff] %vm1948, %v1925
  %1962 = vst.msk [vmem:[#allocation4 + $0x68] sm:$0xff] %vm1948, %v1927
  %1963 = vst.msk [vmem:[#allocation4 + $0x70] sm:$0xff] %vm1948, %v1929
  %1964 = vst.msk [vmem:[#allocation4 + $0x78] sm:$0xff] %vm1948, %v1931
  %vm1965 = vcmask 1045504
  %v1966 = vrot.slane %v1756, 2
  %v1967 = vrot.slane %v1757, 2
  %v1968 = vsel %vm1965, %v1966, %v1967
  %v1969 = vrot.slane %v1758, 2
  %v1970 = vrot.slane %v1759, 2
  %v1971 = vsel %vm1965, %v1969, %v1970
  %v1972 = vrot.slane %v1760, 2
  %v1973 = vrot.slane %v1761, 2
  %v1974 = vsel %vm1965, %v1972, %v1973
  %v1975 = vrot.slane %v1762, 2
  %v1976 = vrot.slane %v1763, 2
  %v1977 = vsel %vm1965, %v1975, %v1976
  %v1978 = vrot.slane %v1764, 2
  %v1979 = vrot.slane %v1765, 2
  %v1980 = vsel %vm1965, %v1978, %v1979
  %v1981 = vrot.slane %v1766, 2
  %v1982 = vrot.slane %v1767, 2
  %v1983 = vsel %vm1965, %v1981, %v1982
  %v1984 = vrot.slane %v1768, 2
  %v1985 = vrot.slane %v1769, 2
  %v1986 = vsel %vm1965, %v1984, %v1985
  %v1987 = vrot.slane %v1770, 2
  %v1988 = vrot.slane %v1771, 2
  %v1989 = vsel %vm1965, %v1987, %v1988
  %v1990 = vrot.slane %v1776, 2
  %v1991 = vrot.slane %v1777, 2
  %v1992 = vsel %vm1965, %v1990, %v1991
  %v1993 = vrot.slane %v1778, 2
  %v1994 = vrot.slane %v1779, 2
  %v1995 = vsel %vm1965, %v1993, %v1994
  %v1996 = vrot.slane %v1780, 2
  %v1997 = vrot.slane %v1781, 2
  %v1998 = vsel %vm1965, %v1996, %v1997
  %v1999 = vrot.slane %v1782, 2
  %v2000 = vrot.slane %v1783, 2
  %v2001 = vsel %vm1965, %v1999, %v2000
  %v2002 = vrot.slane %v1784, 2
  %v2003 = vrot.slane %v1785, 2
  %v2004 = vsel %vm1965, %v2002, %v2003
  %v2005 = vrot.slane %v1786, 2
  %v2006 = vrot.slane %v1787, 2
  %v2007 = vsel %vm1965, %v2005, %v2006
  %v2008 = vrot.slane %v1788, 2
  %v2009 = vrot.slane %v1789, 2
  %v2010 = vsel %vm1965, %v2008, %v2009
  %v2011 = vrot.slane %v1790, 2
  %v2012 = vrot.slane %v1791, 2
  %v2013 = vsel %vm1965, %v2011, %v2012
  %2014 = vrot.lane.b32.xlu0 %v1968, 8
  %v2015 = vpop.permute.xlu0 %2014
  %2016 = vrot.lane.b32.xlu0 %v1971, 8
  %v2017 = vpop.permute.xlu0 %2016
  %2018 = vrot.lane.b32.xlu0 %v1974, 8
  %v2019 = vpop.permute.xlu0 %2018
  %2020 = vrot.lane.b32.xlu0 %v1977, 8
  %v2021 = vpop.permute.xlu0 %2020
  %2022 = vrot.lane.b32.xlu0 %v1980, 8
  %v2023 = vpop.permute.xlu0 %2022
  %2024 = vrot.lane.b32.xlu0 %v1983, 8
  %v2025 = vpop.permute.xlu0 %2024
  %2026 = vrot.lane.b32.xlu0 %v1986, 8
  %v2027 = vpop.permute.xlu0 %2026
  %2028 = vrot.lane.b32.xlu0 %v1989, 8
  %v2029 = vpop.permute.xlu0 %2028
  %2030 = vrot.lane.b32.xlu0 %v1992, 8
  %v2031 = vpop.permute.xlu0 %2030
  %2032 = vrot.lane.b32.xlu0 %v1995, 8
  %v2033 = vpop.permute.xlu0 %2032
  %2034 = vrot.lane.b32.xlu0 %v1998, 8
  %v2035 = vpop.permute.xlu0 %2034
  %2036 = vrot.lane.b32.xlu0 %v2001, 8
  %v2037 = vpop.permute.xlu0 %2036
  %2038 = vrot.lane.b32.xlu0 %v2004, 8
  %v2039 = vpop.permute.xlu0 %2038
  %2040 = vrot.lane.b32.xlu0 %v2007, 8
  %v2041 = vpop.permute.xlu0 %2040
  %2042 = vrot.lane.b32.xlu0 %v2010, 8
  %v2043 = vpop.permute.xlu0 %2042
  %2044 = vrot.lane.b32.xlu0 %v2013, 8
  %v2045 = vpop.permute.xlu0 %2044
  %vm2062 = vcmask 97344
  %2063 = vst.msk [vmem:[#allocation4] sm:$0xff] %vm2062, %v2015
  %2064 = vst.msk [vmem:[#allocation4 + $0x8] sm:$0xff] %vm2062, %v2017
  %2065 = vst.msk [vmem:[#allocation4 + $0x10] sm:$0xff] %vm2062, %v2019
  %2066 = vst.msk [vmem:[#allocation4 + $0x18] sm:$0xff] %vm2062, %v2021
  %2067 = vst.msk [vmem:[#allocation4 + $0x20] sm:$0xff] %vm2062, %v2023
  %2068 = vst.msk [vmem:[#allocation4 + $0x28] sm:$0xff] %vm2062, %v2025
  %2069 = vst.msk [vmem:[#allocation4 + $0x30] sm:$0xff] %vm2062, %v2027
  %2070 = vst.msk [vmem:[#allocation4 + $0x38] sm:$0xff] %vm2062, %v2029
  %2071 = vst.msk [vmem:[#allocation4 + $0x40] sm:$0xff] %vm2062, %v2031
  %2072 = vst.msk [vmem:[#allocation4 + $0x48] sm:$0xff] %vm2062, %v2033
  %2073 = vst.msk [vmem:[#allocation4 + $0x50] sm:$0xff] %vm2062, %v2035
  %2074 = vst.msk [vmem:[#allocation4 + $0x58] sm:$0xff] %vm2062, %v2037
  %2075 = vst.msk [vmem:[#allocation4 + $0x60] sm:$0xff] %vm2062, %v2039
  %2076 = vst.msk [vmem:[#allocation4 + $0x68] sm:$0xff] %vm2062, %v2041
  %2077 = vst.msk [vmem:[#allocation4 + $0x70] sm:$0xff] %vm2062, %v2043
  %2078 = vst.msk [vmem:[#allocation4 + $0x78] sm:$0xff] %vm2062, %v2045
  %2081 = vrot.lane.b32.xlu0 %v1758, 12
  %v2082 = vpop.permute.xlu0 %2081
  %2083 = vrot.lane.b32.xlu0 %v1760, 12
  %v2084 = vpop.permute.xlu0 %2083
  %2085 = vrot.lane.b32.xlu0 %v1762, 12
  %v2086 = vpop.permute.xlu0 %2085
  %2087 = vrot.lane.b32.xlu0 %v1764, 12
  %v2088 = vpop.permute.xlu0 %2087
  %2089 = vrot.lane.b32.xlu0 %v1766, 12
  %v2090 = vpop.permute.xlu0 %2089
  %2091 = vrot.lane.b32.xlu0 %v1768, 12
  %v2092 = vpop.permute.xlu0 %2091
  %2093 = vrot.lane.b32.xlu0 %v1770, 12
  %v2094 = vpop.permute.xlu0 %2093
  %2095 = vrot.lane.b32.xlu0 %v1772, 12
  %v2096 = vpop.permute.xlu0 %2095
  %2097 = vrot.lane.b32.xlu0 %v1778, 12
  %v2098 = vpop.permute.xlu0 %2097
  %2099 = vrot.lane.b32.xlu0 %v1780, 12
  %v2100 = vpop.permute.xlu0 %2099
  %2101 = vrot.lane.b32.xlu0 %v1782, 12
  %v2102 = vpop.permute.xlu0 %2101
  %2103 = vrot.lane.b32.xlu0 %v1784, 12
  %v2104 = vpop.permute.xlu0 %2103
  %2105 = vrot.lane.b32.xlu0 %v1786, 12
  %v2106 = vpop.permute.xlu0 %2105
  %2107 = vrot.lane.b32.xlu0 %v1788, 12
  %v2108 = vpop.permute.xlu0 %2107
  %2109 = vrot.lane.b32.xlu0 %v1790, 12
  %v2110 = vpop.permute.xlu0 %2109
  %2111 = vrot.lane.b32.xlu0 %v1792, 12
  %v2112 = vpop.permute.xlu0 %2111
  %vm2129 = vcmask 130144
  %2130 = vst.msk [vmem:[#allocation4] sm:$0xff] %vm2129, %v2082
  %2131 = vst.msk [vmem:[#allocation4 + $0x8] sm:$0xff] %vm2129, %v2084
  %2132 = vst.msk [vmem:[#allocation4 + $0x10] sm:$0xff] %vm2129, %v2086
  %2133 = vst.msk [vmem:[#allocation4 + $0x18] sm:$0xff] %vm2129, %v2088
  %2134 = vst.msk [vmem:[#allocation4 + $0x20] sm:$0xff] %vm2129, %v2090
  %2135 = vst.msk [vmem:[#allocation4 + $0x28] sm:$0xff] %vm2129, %v2092
  %2136 = vst.msk [vmem:[#allocation4 + $0x30] sm:$0xff] %vm2129, %v2094
  %2137 = vst.msk [vmem:[#allocation4 + $0x38] sm:$0xff] %vm2129, %v2096
  %2138 = vst.msk [vmem:[#allocation4 + $0x40] sm:$0xff] %vm2129, %v2098
  %2139 = vst.msk [vmem:[#allocation4 + $0x48] sm:$0xff] %vm2129, %v2100
  %2140 = vst.msk [vmem:[#allocation4 + $0x50] sm:$0xff] %vm2129, %v2102
  %2141 = vst.msk [vmem:[#allocation4 + $0x58] sm:$0xff] %vm2129, %v2104
  %2142 = vst.msk [vmem:[#allocation4 + $0x60] sm:$0xff] %vm2129, %v2106
  %2143 = vst.msk [vmem:[#allocation4 + $0x68] sm:$0xff] %vm2129, %v2108
  %2144 = vst.msk [vmem:[#allocation4 + $0x70] sm:$0xff] %vm2129, %v2110
  %2145 = vst.msk [vmem:[#allocation4 + $0x78] sm:$0xff] %vm2129, %v2112
  %v2148 = vrot.slane %v1772, 1
  %v2149 = vrot.slane %v1773, 1
  %v2150 = vsel %vm1851, %v2148, %v2149
  %v2151 = vrot.slane %v1792, 1
  %v2152 = vrot.slane %v1793, 1
  %v2153 = vsel %vm1851, %v2151, %v2152
  %2154 = vrot.lane.b32.xlu0 %v1857, 16
  %v2155 = vpop.permute.xlu0 %2154
  %2156 = vrot.lane.b32.xlu0 %v1860, 16
  %v2157 = vpop.permute.xlu0 %2156
  %2158 = vrot.lane.b32.xlu0 %v1863, 16
  %v2159 = vpop.permute.xlu0 %2158
  %2160 = vrot.lane.b32.xlu0 %v1866, 16
  %v2161 = vpop.permute.xlu0 %2160
  %2162 = vrot.lane.b32.xlu0 %v1869, 16
  %v2163 = vpop.permute.xlu0 %2162
  %2164 = vrot.lane.b32.xlu0 %v1872, 16
  %v2165 = vpop.permute.xlu0 %2164
  %2166 = vrot.lane.b32.xlu0 %v1875, 16
  %v2167 = vpop.permute.xlu0 %2166
  %2168 = vrot.lane.b32.xlu0 %v2150, 16
  %v2169 = vpop.permute.xlu0 %2168
  %2170 = vrot.lane.b32.xlu0 %v1881, 16
  %v2171 = vpop.permute.xlu0 %2170
  %2172 = vrot.lane.b32.xlu0 %v1884, 16
  %v2173 = vpop.permute.xlu0 %2172
  %2174 = vrot.lane.b32.xlu0 %v1887, 16
  %v2175 = vpop.permute.xlu0 %2174
  %2176 = vrot.lane.b32.xlu0 %v1890, 16
  %v2177 = vpop.permute.xlu0 %2176
  %2178 = vrot.lane.b32.xlu0 %v1893, 16
  %v2179 = vpop.permute.xlu0 %2178
  %2180 = vrot.lane.b32.xlu0 %v1896, 16
  %v2181 = vpop.permute.xlu0 %2180
  %2182 = vrot.lane.b32.xlu0 %v1899, 16
  %v2183 = vpop.permute.xlu0 %2182
  %2184 = vrot.lane.b32.xlu0 %v2153, 16
  %v2185 = vpop.permute.xlu0 %2184
  %vm2202 = vcmask 162944
  %2203 = vst.msk [vmem:[#allocation4] sm:$0xff] %vm2202, %v2155
  %2204 = vst.msk [vmem:[#allocation4 + $0x8] sm:$0xff] %vm2202, %v2157
  %2205 = vst.msk [vmem:[#allocation4 + $0x10] sm:$0xff] %vm2202, %v2159
  %2206 = vst.msk [vmem:[#allocation4 + $0x18] sm:$0xff] %vm2202, %v2161
  %2207 = vst.msk [vmem:[#allocation4 + $0x20] sm:$0xff] %vm2202, %v2163
  %2208 = vst.msk [vmem:[#allocation4 + $0x28] sm:$0xff] %vm2202, %v2165
  %2209 = vst.msk [vmem:[#allocation4 + $0x30] sm:$0xff] %vm2202, %v2167
  %2210 = vst.msk [vmem:[#allocation4 + $0x38] sm:$0xff] %vm2202, %v2169
  %2211 = vst.msk [vmem:[#allocation4 + $0x40] sm:$0xff] %vm2202, %v2171
  %2212 = vst.msk [vmem:[#allocation4 + $0x48] sm:$0xff] %vm2202, %v2173
  %2213 = vst.msk [vmem:[#allocation4 + $0x50] sm:$0xff] %vm2202, %v2175
  %2214 = vst.msk [vmem:[#allocation4 + $0x58] sm:$0xff] %vm2202, %v2177
  %2215 = vst.msk [vmem:[#allocation4 + $0x60] sm:$0xff] %vm2202, %v2179
  %2216 = vst.msk [vmem:[#allocation4 + $0x68] sm:$0xff] %vm2202, %v2181
  %2217 = vst.msk [vmem:[#allocation4 + $0x70] sm:$0xff] %vm2202, %v2183
  %2218 = vst.msk [vmem:[#allocation4 + $0x78] sm:$0xff] %vm2202, %v2185
  %v2219 = vrot.slane %v1772, 2
  %v2220 = vrot.slane %v1773, 2
  %v2221 = vsel %vm1965, %v2219, %v2220
  %v2222 = vrot.slane %v1792, 2
  %v2223 = vrot.slane %v1793, 2
  %v2224 = vsel %vm1965, %v2222, %v2223
  %2225 = vrot.lane.b32.xlu0 %v1971, 20
  %v2226 = vpop.permute.xlu0 %2225
  %2227 = vrot.lane.b32.xlu0 %v1974, 20
  %v2228 = vpop.permute.xlu0 %2227
  %2229 = vrot.lane.b32.xlu0 %v1977, 20
  %v2230 = vpop.permute.xlu0 %2229
  %2231 = vrot.lane.b32.xlu0 %v1980, 20
  %v2232 = vpop.permute.xlu0 %2231
  %2233 = vrot.lane.b32.xlu0 %v1983, 20
  %v2234 = vpop.permute.xlu0 %2233
  %2235 = vrot.lane.b32.xlu0 %v1986, 20
  %v2236 = vpop.permute.xlu0 %2235
  %2237 = vrot.lane.b32.xlu0 %v1989, 20
  %v2238 = vpop.permute.xlu0 %2237
  %2239 = vrot.lane.b32.xlu0 %v2221, 20
  %v2240 = vpop.permute.xlu0 %2239
  %2241 = vrot.lane.b32.xlu0 %v1995, 20
  %v2242 = vpop.permute.xlu0 %2241
  %2243 = vrot.lane.b32.xlu0 %v1998, 20
  %v2244 = vpop.permute.xlu0 %2243
  %2245 = vrot.lane.b32.xlu0 %v2001, 20
  %v2246 = vpop.permute.xlu0 %2245
  %2247 = vrot.lane.b32.xlu0 %v2004, 20
  %v2248 = vpop.permute.xlu0 %2247
  %2249 = vrot.lane.b32.xlu0 %v2007, 20
  %v2250 = vpop.permute.xlu0 %2249
  %2251 = vrot.lane.b32.xlu0 %v2010, 20
  %v2252 = vpop.permute.xlu0 %2251
  %2253 = vrot.lane.b32.xlu0 %v2013, 20
  %v2254 = vpop.permute.xlu0 %2253
  %2255 = vrot.lane.b32.xlu0 %v2224, 20
  %v2256 = vpop.permute.xlu0 %2255
  %vm2273 = vcmask 195744
  %2274 = vst.msk [vmem:[#allocation4] sm:$0xff] %vm2273, %v2226
  %2275 = vst.msk [vmem:[#allocation4 + $0x8] sm:$0xff] %vm2273, %v2228
  %2276 = vst.msk [vmem:[#allocation4 + $0x10] sm:$0xff] %vm2273, %v2230
  %2277 = vst.msk [vmem:[#allocation4 + $0x18] sm:$0xff] %vm2273, %v2232
  %2278 = vst.msk [vmem:[#allocation4 + $0x20] sm:$0xff] %vm2273, %v2234
  %2279 = vst.msk [vmem:[#allocation4 + $0x28] sm:$0xff] %vm2273, %v2236
  %2280 = vst.msk [vmem:[#allocation4 + $0x30] sm:$0xff] %vm2273, %v2238
  %2281 = vst.msk [vmem:[#allocation4 + $0x38] sm:$0xff] %vm2273, %v2240
  %2282 = vst.msk [vmem:[#allocation4 + $0x40] sm:$0xff] %vm2273, %v2242
  %2283 = vst.msk [vmem:[#allocation4 + $0x48] sm:$0xff] %vm2273, %v2244
  %2284 = vst.msk [vmem:[#allocation4 + $0x50] sm:$0xff] %vm2273, %v2246
  %2285 = vst.msk [vmem:[#allocation4 + $0x58] sm:$0xff] %vm2273, %v2248
  %2286 = vst.msk [vmem:[#allocation4 + $0x60] sm:$0xff] %vm2273, %v2250
  %2287 = vst.msk [vmem:[#allocation4 + $0x68] sm:$0xff] %vm2273, %v2252
  %2288 = vst.msk [vmem:[#allocation4 + $0x70] sm:$0xff] %vm2273, %v2254
  %2289 = vst.msk [vmem:[#allocation4 + $0x78] sm:$0xff] %vm2273, %v2256
  %2292 = vrot.lane.b32.xlu0 %v1760, 24
  %v2293 = vpop.permute.xlu0 %2292
  %2294 = vrot.lane.b32.xlu0 %v1762, 24
  %v2295 = vpop.permute.xlu0 %2294
  %2296 = vrot.lane.b32.xlu0 %v1764, 24
  %v2297 = vpop.permute.xlu0 %2296
  %2298 = vrot.lane.b32.xlu0 %v1766, 24
  %v2299 = vpop.permute.xlu0 %2298
  %2300 = vrot.lane.b32.xlu0 %v1768, 24
  %v2301 = vpop.permute.xlu0 %2300
  %2302 = vrot.lane.b32.xlu0 %v1770, 24
  %v2303 = vpop.permute.xlu0 %2302
  %2304 = vrot.lane.b32.xlu0 %v1772, 24
  %v2305 = vpop.permute.xlu0 %2304
  %2306 = vrot.lane.b32.xlu0 %v1774, 24
  %v2307 = vpop.permute.xlu0 %2306
  %2308 = vrot.lane.b32.xlu0 %v1780, 24
  %v2309 = vpop.permute.xlu0 %2308
  %2310 = vrot.lane.b32.xlu0 %v1782, 24
  %v2311 = vpop.permute.xlu0 %2310
  %2312 = vrot.lane.b32.xlu0 %v1784, 24
  %v2313 = vpop.permute.xlu0 %2312
  %2314 = vrot.lane.b32.xlu0 %v1786, 24
  %v2315 = vpop.permute.xlu0 %2314
  %2316 = vrot.lane.b32.xlu0 %v1788, 24
  %v2317 = vpop.permute.xlu0 %2316
  %2318 = vrot.lane.b32.xlu0 %v1790, 24
  %v2319 = vpop.permute.xlu0 %2318
  %2320 = vrot.lane.b32.xlu0 %v1792, 24
  %v2321 = vpop.permute.xlu0 %2320
  %2322 = vrot.lane.b32.xlu0 %v1794, 24
  %v2323 = vpop.permute.xlu0 %2322
  %vm2340 = vcmask 228544
  %2341 = vst.msk [vmem:[#allocation4] sm:$0xff] %vm2340, %v2293
  %2342 = vst.msk [vmem:[#allocation4 + $0x8] sm:$0xff] %vm2340, %v2295
  %2343 = vst.msk [vmem:[#allocation4 + $0x10] sm:$0xff] %vm2340, %v2297
  %2344 = vst.msk [vmem:[#allocation4 + $0x18] sm:$0xff] %vm2340, %v2299
  %2345 = vst.msk [vmem:[#allocation4 + $0x20] sm:$0xff] %vm2340, %v2301
  %2346 = vst.msk [vmem:[#allocation4 + $0x28] sm:$0xff] %vm2340, %v2303
  %2347 = vst.msk [vmem:[#allocation4 + $0x30] sm:$0xff] %vm2340, %v2305
  %2348 = vst.msk [vmem:[#allocation4 + $0x38] sm:$0xff] %vm2340, %v2307
  %2349 = vst.msk [vmem:[#allocation4 + $0x40] sm:$0xff] %vm2340, %v2309
  %2350 = vst.msk [vmem:[#allocation4 + $0x48] sm:$0xff] %vm2340, %v2311
  %2351 = vst.msk [vmem:[#allocation4 + $0x50] sm:$0xff] %vm2340, %v2313
  %2352 = vst.msk [vmem:[#allocation4 + $0x58] sm:$0xff] %vm2340, %v2315
  %2353 = vst.msk [vmem:[#allocation4 + $0x60] sm:$0xff] %vm2340, %v2317
  %2354 = vst.msk [vmem:[#allocation4 + $0x68] sm:$0xff] %vm2340, %v2319
  %2355 = vst.msk [vmem:[#allocation4 + $0x70] sm:$0xff] %vm2340, %v2321
  %2356 = vst.msk [vmem:[#allocation4 + $0x78] sm:$0xff] %vm2340, %v2323
  %v2359 = vrot.slane %v1774, 1
  %v2360 = vrot.slane %v1775, 1
  %v2361 = vsel %vm1851, %v2359, %v2360
  %v2362 = vrot.slane %v1794, 1
  %v2363 = vrot.slane %v1795, 1
  %v2364 = vsel %vm1851, %v2362, %v2363
  %2365 = vrot.lane.b32.xlu0 %v1860, 28
  %v2366 = vpop.permute.xlu0 %2365
  %2367 = vrot.lane.b32.xlu0 %v1863, 28
  %v2368 = vpop.permute.xlu0 %2367
  %2369 = vrot.lane.b32.xlu0 %v1866, 28
  %v2370 = vpop.permute.xlu0 %2369
  %2371 = vrot.lane.b32.xlu0 %v1869, 28
  %v2372 = vpop.permute.xlu0 %2371
  %2373 = vrot.lane.b32.xlu0 %v1872, 28
  %v2374 = vpop.permute.xlu0 %2373
  %2375 = vrot.lane.b32.xlu0 %v1875, 28
  %v2376 = vpop.permute.xlu0 %2375
  %2377 = vrot.lane.b32.xlu0 %v2150, 28
  %v2378 = vpop.permute.xlu0 %2377
  %2379 = vrot.lane.b32.xlu0 %v2361, 28
  %v2380 = vpop.permute.xlu0 %2379
  %2381 = vrot.lane.b32.xlu0 %v1884, 28
  %v2382 = vpop.permute.xlu0 %2381
  %2383 = vrot.lane.b32.xlu0 %v1887, 28
  %v2384 = vpop.permute.xlu0 %2383
  %2385 = vrot.lane.b32.xlu0 %v1890, 28
  %v2386 = vpop.permute.xlu0 %2385
  %2387 = vrot.lane.b32.xlu0 %v1893, 28
  %v2388 = vpop.permute.xlu0 %2387
  %2389 = vrot.lane.b32.xlu0 %v1896, 28
  %v2390 = vpop.permute.xlu0 %2389
  %2391 = vrot.lane.b32.xlu0 %v1899, 28
  %v2392 = vpop.permute.xlu0 %2391
  %2393 = vrot.lane.b32.xlu0 %v2153, 28
  %v2394 = vpop.permute.xlu0 %2393
  %2395 = vrot.lane.b32.xlu0 %v2364, 28
  %v2396 = vpop.permute.xlu0 %2395
  %vm2413 = vcmask 261344
  %2414 = vst.msk [vmem:[#allocation4] sm:$0xff] %vm2413, %v2366
  %2415 = vst.msk [vmem:[#allocation4 + $0x8] sm:$0xff] %vm2413, %v2368
  %2416 = vst.msk [vmem:[#allocation4 + $0x10] sm:$0xff] %vm2413, %v2370
  %2417 = vst.msk [vmem:[#allocation4 + $0x18] sm:$0xff] %vm2413, %v2372
  %2418 = vst.msk [vmem:[#allocation4 + $0x20] sm:$0xff] %vm2413, %v2374
  %2419 = vst.msk [vmem:[#allocation4 + $0x28] sm:$0xff] %vm2413, %v2376
  %2420 = vst.msk [vmem:[#allocation4 + $0x30] sm:$0xff] %vm2413, %v2378
  %2421 = vst.msk [vmem:[#allocation4 + $0x38] sm:$0xff] %vm2413, %v2380
  %2422 = vst.msk [vmem:[#allocation4 + $0x40] sm:$0xff] %vm2413, %v2382
  %2423 = vst.msk [vmem:[#allocation4 + $0x48] sm:$0xff] %vm2413, %v2384
  %2424 = vst.msk [vmem:[#allocation4 + $0x50] sm:$0xff] %vm2413, %v2386
  %2425 = vst.msk [vmem:[#allocation4 + $0x58] sm:$0xff] %vm2413, %v2388
  %2426 = vst.msk [vmem:[#allocation4 + $0x60] sm:$0xff] %vm2413, %v2390
  %2427 = vst.msk [vmem:[#allocation4 + $0x68] sm:$0xff] %vm2413, %v2392
  %2428 = vst.msk [vmem:[#allocation4 + $0x70] sm:$0xff] %vm2413, %v2394
  %2429 = vst.msk [vmem:[#allocation4 + $0x78] sm:$0xff] %vm2413, %v2396
  %v2430 = vrot.slane %v1774, 2
  %v2431 = vrot.slane %v1775, 2
  %v2432 = vsel %vm1965, %v2430, %v2431
  %v2433 = vrot.slane %v1794, 2
  %v2434 = vrot.slane %v1795, 2
  %v2435 = vsel %vm1965, %v2433, %v2434
  %2436 = vrot.lane.b32.xlu0 %v1974, 32
  %v2437 = vpop.permute.xlu0 %2436
  %2438 = vrot.lane.b32.xlu0 %v1977, 32
  %v2439 = vpop.permute.xlu0 %2438
  %2440 = vrot.lane.b32.xlu0 %v1980, 32
  %v2441 = vpop.permute.xlu0 %2440
  %2442 = vrot.lane.b32.xlu0 %v1983, 32
  %v2443 = vpop.permute.xlu0 %2442
  %2444 = vrot.lane.b32.xlu0 %v1986, 32
  %v2445 = vpop.permute.xlu0 %2444
  %2446 = vrot.lane.b32.xlu0 %v1989, 32
  %v2447 = vpop.permute.xlu0 %2446
  %2448 = vrot.lane.b32.xlu0 %v2221, 32
  %v2449 = vpop.permute.xlu0 %2448
  %2450 = vrot.lane.b32.xlu0 %v2432, 32
  %v2451 = vpop.permute.xlu0 %2450
  %2452 = vrot.lane.b32.xlu0 %v1998, 32
  %v2453 = vpop.permute.xlu0 %2452
  %2454 = vrot.lane.b32.xlu0 %v2001, 32
  %v2455 = vpop.permute.xlu0 %2454
  %2456 = vrot.lane.b32.xlu0 %v2004, 32
  %v2457 = vpop.permute.xlu0 %2456
  %2458 = vrot.lane.b32.xlu0 %v2007, 32
  %v2459 = vpop.permute.xlu0 %2458
  %2460 = vrot.lane.b32.xlu0 %v2010, 32
  %v2461 = vpop.permute.xlu0 %2460
  %2462 = vrot.lane.b32.xlu0 %v2013, 32
  %v2463 = vpop.permute.xlu0 %2462
  %2464 = vrot.lane.b32.xlu0 %v2224, 32
  %v2465 = vpop.permute.xlu0 %2464
  %2466 = vrot.lane.b32.xlu0 %v2435, 32
  %v2467 = vpop.permute.xlu0 %2466
  %vm2484 = vcmask 294144
  %2485 = vst.msk [vmem:[#allocation4] sm:$0xff] %vm2484, %v2437
  %2486 = vst.msk [vmem:[#allocation4 + $0x8] sm:$0xff] %vm2484, %v2439
  %2487 = vst.msk [vmem:[#allocation4 + $0x10] sm:$0xff] %vm2484, %v2441
  %2488 = vst.msk [vmem:[#allocation4 + $0x18] sm:$0xff] %vm2484, %v2443
  %2489 = vst.msk [vmem:[#allocation4 + $0x20] sm:$0xff] %vm2484, %v2445
  %2490 = vst.msk [vmem:[#allocation4 + $0x28] sm:$0xff] %vm2484, %v2447
  %2491 = vst.msk [vmem:[#allocation4 + $0x30] sm:$0xff] %vm2484, %v2449
  %2492 = vst.msk [vmem:[#allocation4 + $0x38] sm:$0xff] %vm2484, %v2451
  %2493 = vst.msk [vmem:[#allocation4 + $0x40] sm:$0xff] %vm2484, %v2453
  %2494 = vst.msk [vmem:[#allocation4 + $0x48] sm:$0xff] %vm2484, %v2455
  %2495 = vst.msk [vmem:[#allocation4 + $0x50] sm:$0xff] %vm2484, %v2457
  %2496 = vst.msk [vmem:[#allocation4 + $0x58] sm:$0xff] %vm2484, %v2459
  %2497 = vst.msk [vmem:[#allocation4 + $0x60] sm:$0xff] %vm2484, %v2461
  %2498 = vst.msk [vmem:[#allocation4 + $0x68] sm:$0xff] %vm2484, %v2463
  %2499 = vst.msk [vmem:[#allocation4 + $0x70] sm:$0xff] %vm2484, %v2465
  %2500 = vst.msk [vmem:[#allocation4 + $0x78] sm:$0xff] %vm2484, %v2467
  %v2501 = vld [vmem:[#allocation4] sm:$0xff]
  %v2502 = vld [vmem:[#allocation4 + $0x8] sm:$0xff]
  %v2503 = vld [vmem:[#allocation4 + $0x10] sm:$0xff]
  %v2504 = vld [vmem:[#allocation4 + $0x18] sm:$0xff]
  %v2505 = vld [vmem:[#allocation4 + $0x20] sm:$0xff]
  %v2506 = vld [vmem:[#allocation4 + $0x28] sm:$0xff]
  %v2507 = vld [vmem:[#allocation4 + $0x30] sm:$0xff]
  %v2508 = vld [vmem:[#allocation4 + $0x38] sm:$0xff]
  %v2509 = vld [vmem:[#allocation4 + $0x40] sm:$0xff]
  %v2510 = vld [vmem:[#allocation4 + $0x48] sm:$0xff]
  %v2511 = vld [vmem:[#allocation4 + $0x50] sm:$0xff]
  %v2512 = vld [vmem:[#allocation4 + $0x58] sm:$0xff]
  %v2513 = vld [vmem:[#allocation4 + $0x60] sm:$0xff]
  %v2514 = vld [vmem:[#allocation4 + $0x68] sm:$0xff]
  %v2515 = vld [vmem:[#allocation4 + $0x70] sm:$0xff]
  %v2516 = vld [vmem:[#allocation4 + $0x78] sm:$0xff]
  %vm2517 = vcmask 293888
  %v2519 = vsel %vm2517, %v2501, 0
  %v2522 = vsel %vm2517, %v2502, 0
  %v2525 = vsel %vm2517, %v2503, 0
  %v2528 = vsel %vm2517, %v2504, 0
  %v2531 = vsel %vm2517, %v2505, 0
  %v2534 = vsel %vm2517, %v2506, 0
  %v2537 = vsel %vm2517, %v2507, 0
  %v2540 = vsel %vm2517, %v2508, 0
  %v2543 = vsel %vm2517, %v2509, 0
  %v2546 = vsel %vm2517, %v2510, 0
  %v2549 = vsel %vm2517, %v2511, 0
  %v2552 = vsel %vm2517, %v2512, 0
  %v2555 = vsel %vm2517, %v2513, 0
  %v2558 = vsel %vm2517, %v2514, 0
  %v2561 = vsel %vm2517, %v2515, 0
  %v2564 = vsel %vm2517, %v2516, 0
  %vm2566 = vcmask 1043456
  %v2568 = vsel %vm2566, %v1800, 0
  %2570 = vmatprep.subr.mxu0 0.0
  %2571 = vmatpush1.msra.mxu0 %v1796
  %2572 = vmatprep.subr.mxu0 0.0
  %2573 = vmatpush1.msra.mxu0 %v1797
  %2574 = vmatprep.subr.mxu0 0.0
  %2575 = vmatpush1.msra.mxu0 %v1798
  %2576 = vmatprep.subr.mxu0 0.0
  %2577 = vmatpush1.msra.mxu0 %v1799
  %2578 = vmatprep.subr.mxu0 0.0
  %2579 = vmatpush1.msra.mxu0 %v2568
  %2580 = vmatprep.subr.mxu0 0.0
  %2581 = vmatpush1.msra.mxu0 0.0
  %2582 = vmatprep.subr.mxu0 0.0
  %2583 = vmatpush1.msra.mxu0 0.0
  %2584 = vmatprep.subr.mxu0 0.0
  %2585 = vmatpush1.msra.mxu0 0.0
  %2586 = vmatprep.subr.mxu0 0.0
  %2587 = vmatpush1.msra.mxu0 0.0
  %2588 = vmatprep.subr.mxu0 0.0
  %2589 = vmatpush1.msra.mxu0 0.0
  %2590 = vmatprep.subr.mxu0 0.0
  %2591 = vmatpush1.msra.mxu0 0.0
  %2592 = vmatprep.subr.mxu0 0.0
  %2593 = vmatpush1.msra.mxu0 0.0
  %2594 = vmatprep.subr.mxu0 0.0
  %2595 = vmatpush1.msra.mxu0 0.0
  %2596 = vmatprep.subr.mxu0 0.0
  %2597 = vmatpush1.msra.mxu0 0.0
  %2598 = vmatprep.subr.mxu0 0.0
  %2599 = vmatpush1.msra.mxu0 0.0
  %2600 = vmatprep.subr.mxu0 0.0
  %2601 = vmatpush1.msra.mxu0 0.0
  %2602 = vmatprep.subr.mxu0 0.0
  %2603 = vmatpush1.msra.mxu0 0.0
  %2604 = vmatprep.subr.mxu0 0.0
  %2605 = vmatpush1.msra.mxu0 0.0
  %2606 = vmatprep.subr.mxu0 0.0
  %2607 = vmatpush1.msra.mxu0 0.0
  %2608 = vmatprep.subr.mxu0 0.0
  %2609 = vmatpush1.msra.mxu0 0.0
  %2610 = vmatprep.subr.mxu0 0.0
  %2611 = vmatpush1.msra.mxu0 0.0
  %2612 = vmatprep.subr.mxu0 0.0
  %2613 = vmatpush1.msra.mxu0 0.0
  %2614 = vmatprep.subr.mxu0 0.0
  %2615 = vmatpush1.msra.mxu0 0.0
  %2616 = vmatprep.subr.mxu0 0.0
  %2617 = vmatpush1.msra.mxu0 0.0
  %2618 = vmatprep.subr.mxu0 0.0
  %2619 = vmatpush1.msra.mxu0 0.0
  %2620 = vmatprep.subr.mxu0 0.0
  %2621 = vmatpush1.msra.mxu0 0.0
  %2622 = vmatprep.subr.mxu0 0.0
  %2623 = vmatpush1.msra.mxu0 0.0
  %2624 = vmatprep.subr.mxu0 0.0
  %2625 = vmatpush1.msra.mxu0 0.0
  %2626 = vmatprep.subr.mxu0 0.0
  %2627 = vmatpush1.msra.mxu0 0.0
  %2628 = vmatprep.subr.mxu0 0.0
  %2629 = vmatpush1.msra.mxu0 0.0
  %2630 = vmatprep.subr.mxu0 0.0
  %2631 = vmatpush1.msra.mxu0 0.0
  %2632 = vmatprep.subr.mxu0 0.0
  %2633 = vmatpush1.msra.mxu0 0.0
  %2634 = vmatprep.mubr.f32.mxu0 0.0
  %2635 = vmatmul.mubr.f32.gmra.mrb[0].mxu0 %v2519
  %v2636 = vpop.f32.mrb[0].mxu0
  %v2637 = vadd.f32 0.0, %v2636
  %v2638 = vpop.f32.mrb[0].mxu0
  %2639 = vmatprep.mubr.f32.mxu0 0.0
  %2640 = vmatmul.mubr.f32.gmra.mrb[0].mxu0 %v2522
  %v2641 = vpop.f32.mrb[0].mxu0
  %v2642 = vadd.f32 0.0, %v2641
  %v2643 = vpop.f32.mrb[0].mxu0
  %2644 = vmatprep.mubr.f32.mxu0 0.0
  %2645 = vmatmul.mubr.f32.gmra.mrb[0].mxu0 %v2525
  %v2646 = vpop.f32.mrb[0].mxu0
  %v2647 = vadd.f32 0.0, %v2646
  %v2648 = vpop.f32.mrb[0].mxu0
  %2649 = vmatprep.mubr.f32.mxu0 0.0
  %2650 = vmatmul.mubr.f32.gmra.mrb[0].mxu0 %v2528
  %v2651 = vpop.f32.mrb[0].mxu0
  %v2652 = vadd.f32 0.0, %v2651
  %v2653 = vpop.f32.mrb[0].mxu0
  %2654 = vmatprep.mubr.f32.mxu0 0.0
  %2655 = vmatmul.mubr.f32.gmra.mrb[0].mxu0 %v2531
  %v2656 = vpop.f32.mrb[0].mxu0
  %v2657 = vadd.f32 0.0, %v2656
  %v2658 = vpop.f32.mrb[0].mxu0
  %2659 = vmatprep.mubr.f32.mxu0 0.0
  %2660 = vmatmul.mubr.f32.gmra.mrb[0].mxu0 %v2534
  %v2661 = vpop.f32.mrb[0].mxu0
  %v2662 = vadd.f32 0.0, %v2661
  %v2663 = vpop.f32.mrb[0].mxu0
  %2664 = vmatprep.mubr.f32.mxu0 0.0
  %2665 = vmatmul.mubr.f32.gmra.mrb[0].mxu0 %v2537
  %v2666 = vpop.f32.mrb[0].mxu0
  %v2667 = vadd.f32 0.0, %v2666
  %v2668 = vpop.f32.mrb[0].mxu0
  %2669 = vmatprep.mubr.f32.mxu0 0.0
  %2670 = vmatmul.mubr.f32.gmra.mrb[0].mxu0 %v2540
  %v2671 = vpop.f32.mrb[0].mxu0
  %v2672 = vadd.f32 0.0, %v2671
  %v2673 = vpop.f32.mrb[0].mxu0
  %2674 = vmatprep.mubr.f32.mxu0 0.0
  %2675 = vmatmul.mubr.f32.gmra.mrb[0].mxu0 %v2543
  %v2676 = vpop.f32.mrb[0].mxu0
  %v2677 = vadd.f32 0.0, %v2676
  %v2678 = vpop.f32.mrb[0].mxu0
  %2679 = vmatprep.mubr.f32.mxu0 0.0
  %2680 = vmatmul.mubr.f32.gmra.mrb[0].mxu0 %v2546
  %v2681 = vpop.f32.mrb[0].mxu0
  %v2682 = vadd.f32 0.0, %v2681
  %v2683 = vpop.f32.mrb[0].mxu0
  %2684 = vmatprep.mubr.f32.mxu0 0.0
  %2685 = vmatmul.mubr.f32.gmra.mrb[0].mxu0 %v2549
  %v2686 = vpop.f32.mrb[0].mxu0
  %v2687 = vadd.f32 0.0, %v2686
  %v2688 = vpop.f32.mrb[0].mxu0
  %2689 = vmatprep.mubr.f32.mxu0 0.0
  %2690 = vmatmul.mubr.f32.gmra.mrb[0].mxu0 %v2552
  %v2691 = vpop.f32.mrb[0].mxu0
  %v2692 = vadd.f32 0.0, %v2691
  %v2693 = vpop.f32.mrb[0].mxu0
  %2694 = vmatprep.mubr.f32.mxu0 0.0
  %2695 = vmatmul.mubr.f32.gmra.mrb[0].mxu0 %v2555
  %v2696 = vpop.f32.mrb[0].mxu0
  %v2697 = vadd.f32 0.0, %v2696
  %v2698 = vpop.f32.mrb[0].mxu0
  %2699 = vmatprep.mubr.f32.mxu0 0.0
  %2700 = vmatmul.mubr.f32.gmra.mrb[0].mxu0 %v2558
  %v2701 = vpop.f32.mrb[0].mxu0
  %v2702 = vadd.f32 0.0, %v2701
  %v2703 = vpop.f32.mrb[0].mxu0
  %2704 = vmatprep.mubr.f32.mxu0 0.0
  %2705 = vmatmul.mubr.f32.gmra.mrb[0].mxu0 %v2561
  %v2706 = vpop.f32.mrb[0].mxu0
  %v2707 = vadd.f32 0.0, %v2706
  %v2708 = vpop.f32.mrb[0].mxu0
  %2709 = vmatprep.mubr.f32.mxu0 0.0
  %2710 = vmatmul.mubr.f32.gmra.mrb[0].mxu0 %v2564
  %v2711 = vpop.f32.mrb[0].mxu0
  %v2712 = vadd.f32 0.0, %v2711
  %v2713 = vpop.f32.mrb[0].mxu0
  %2714 = vdwg.mxu0
  %vm2715 = vcmask 64512
  %v2716 = vsel %vm2715, %v2637, 0.0
  %v2717 = vsel %vm2715, %v2642, 0.0
  %v2718 = vadd.f32 %v2716, %v2717
  %v2719 = vsel %vm2715, %v2647, 0.0
  %v2720 = vadd.f32 %v2718, %v2719
  %v2721 = vsel %vm2715, %v2652, 0.0
  %v2722 = vadd.f32 %v2720, %v2721
  %v2723 = vsel %vm2715, %v2657, 0.0
  %v2724 = vadd.f32 %v2722, %v2723
  %v2725 = vsel %vm2715, %v2662, 0.0
  %v2726 = vadd.f32 %v2724, %v2725
  %v2727 = vsel %vm2715, %v2667, 0.0
  %v2728 = vadd.f32 %v2726, %v2727
  %v2729 = vsel %vm2715, %v2672, 0.0
  %v2730 = vadd.f32 %v2728, %v2729
  %v2731 = vsel %vm2715, %v2677, 0.0
  %v2732 = vadd.f32 %v2730, %v2731
  %v2733 = vsel %vm2715, %v2682, 0.0
  %v2734 = vadd.f32 %v2732, %v2733
  %v2735 = vsel %vm2715, %v2687, 0.0
  %v2736 = vadd.f32 %v2734, %v2735
  %v2737 = vsel %vm2715, %v2692, 0.0
  %v2738 = vadd.f32 %v2736, %v2737
  %v2739 = vsel %vm2715, %v2697, 0.0
  %v2740 = vadd.f32 %v2738, %v2739
  %v2741 = vsel %vm2715, %v2702, 0.0
  %v2742 = vadd.f32 %v2740, %v2741
  %v2743 = vsel %vm2715, %v2707, 0.0
  %v2744 = vadd.f32 %v2742, %v2743
  %v2745 = vsel %vm2715, %v2712, 0.0
  %v2746 = vadd.f32 %v2744, %v2745
  %v2747 = vrot.slane %v2746, 4
  %v2748 = vadd.f32 %v2746, %v2747
  %v2749 = vrot.slane %v2748, 2
  %v2750 = vadd.f32 %v2748, %v2749
  %v2751 = vrot.slane %v2750, 1
  %v2752 = vadd.f32 %v2750, %v2751
  %v2753 = vmul.f32 %v2752, 0.0078125
  %v2754 = vmul.f32 %v2637, %v2637
  %v2755 = vmul.f32 %v2642, %v2642
  %v2756 = vmul.f32 %v2647, %v2647
  %v2757 = vmul.f32 %v2652, %v2652
  %v2758 = vmul.f32 %v2657, %v2657
  %v2759 = vmul.f32 %v2662, %v2662
  %v2760 = vmul.f32 %v2667, %v2667
  %v2761 = vmul.f32 %v2672, %v2672
  %v2762 = vmul.f32 %v2677, %v2677
  %v2763 = vmul.f32 %v2682, %v2682
  %v2764 = vmul.f32 %v2687, %v2687
  %v2765 = vmul.f32 %v2692, %v2692
  %v2766 = vmul.f32 %v2697, %v2697
  %v2767 = vmul.f32 %v2702, %v2702
  %v2768 = vmul.f32 %v2707, %v2707
  %v2769 = vmul.f32 %v2712, %v2712
  %v2770 = vsel %vm2715, %v2754, 0.0
  %v2771 = vsel %vm2715, %v2755, 0.0
  %v2772 = vadd.f32 %v2770, %v2771
  %v2773 = vsel %vm2715, %v2756, 0.0
  %v2774 = vadd.f32 %v2772, %v2773
  %v2775 = vsel %vm2715, %v2757, 0.0
  %v2776 = vadd.f32 %v2774, %v2775
  %v2777 = vsel %vm2715, %v2758, 0.0
  %v2778 = vadd.f32 %v2776, %v2777
  %v2779 = vsel %vm2715, %v2759, 0.0
  %v2780 = vadd.f32 %v2778, %v2779
  %v2781 = vsel %vm2715, %v2760, 0.0
  %v2782 = vadd.f32 %v2780, %v2781
  %v2783 = vsel %vm2715, %v2761, 0.0
  %v2784 = vadd.f32 %v2782, %v2783
  %v2785 = vsel %vm2715, %v2762, 0.0
  %v2786 = vadd.f32 %v2784, %v2785
  %v2787 = vsel %vm2715, %v2763, 0.0
  %v2788 = vadd.f32 %v2786, %v2787
  %v2789 = vsel %vm2715, %v2764, 0.0
  %v2790 = vadd.f32 %v2788, %v2789
  %v2791 = vsel %vm2715, %v2765, 0.0
  %v2792 = vadd.f32 %v2790, %v2791
  %v2793 = vsel %vm2715, %v2766, 0.0
  %v2794 = vadd.f32 %v2792, %v2793
  %v2795 = vsel %vm2715, %v2767, 0.0
  %v2796 = vadd.f32 %v2794, %v2795
  %v2797 = vsel %vm2715, %v2768, 0.0
  %v2798 = vadd.f32 %v2796, %v2797
  %v2799 = vsel %vm2715, %v2769, 0.0
  %v2800 = vadd.f32 %v2798, %v2799
  %v2801 = vrot.slane %v2800, 4
  %v2802 = vadd.f32 %v2800, %v2801
  %v2803 = vrot.slane %v2802, 2
  %v2804 = vadd.f32 %v2802, %v2803
  %v2805 = vrot.slane %v2804, 1
  %v2806 = vadd.f32 %v2804, %v2805
  %v2807 = vmul.f32 %v2806, 0.0078125
  %v2808 = vmul.f32 %v2753, %v2753
  %v2809 = vsub.f32 %v2807, %v2808
  %v2810 = vadd.f32 %v2809, 1e-05
  %v2811 = vrsqrt.pop %v2810
  %v2812 = vmul.f32 %v1801, %v2811
  %v2813 = vmul.f32 %v2753, %v2812
  %v2814 = vsub.f32 %v1802, %v2813
  %v2816 = vlaneseq
  %v2817 = vshrl.u32 %v2816, 7
  %v2818 = vsub.s32 0, %v2817
  %v2819 = vrot.slane %v2812, %v2818
  %v2821 = vmul.f32 %v2637, %v2819
  %v2822 = vmul.f32 %v2642, %v2819
  %v2823 = vmul.f32 %v2647, %v2819
  %v2824 = vmul.f32 %v2652, %v2819
  %v2825 = vmul.f32 %v2657, %v2819
  %v2826 = vmul.f32 %v2662, %v2819
  %v2827 = vmul.f32 %v2667, %v2819
  %v2828 = vmul.f32 %v2672, %v2819
  %v2829 = vmul.f32 %v2677, %v2819
  %v2830 = vmul.f32 %v2682, %v2819
  %v2831 = vmul.f32 %v2687, %v2819
  %v2832 = vmul.f32 %v2692, %v2819
  %v2833 = vmul.f32 %v2697, %v2819
  %v2834 = vmul.f32 %v2702, %v2819
  %v2835 = vmul.f32 %v2707, %v2819
  %v2836 = vmul.f32 %v2712, %v2819
  %v2838 = vlaneseq
  %v2839 = vshrl.u32 %v2838, 7
  %v2840 = vsub.s32 0, %v2839
  %v2841 = vrot.slane %v2814, %v2840
  %v2843 = vadd.f32 %v2821, %v2841
  %v2844 = vadd.f32 %v2822, %v2841
  %v2845 = vadd.f32 %v2823, %v2841
  %v2846 = vadd.f32 %v2824, %v2841
  %v2847 = vadd.f32 %v2825, %v2841
  %v2848 = vadd.f32 %v2826, %v2841
  %v2849 = vadd.f32 %v2827, %v2841
  %v2850 = vadd.f32 %v2828, %v2841
  %v2851 = vadd.f32 %v2829, %v2841
  %v2852 = vadd.f32 %v2830, %v2841
  %v2853 = vadd.f32 %v2831, %v2841
  %v2854 = vadd.f32 %v2832, %v2841
  %v2855 = vadd.f32 %v2833, %v2841
  %v2856 = vadd.f32 %v2834, %v2841
  %v2857 = vadd.f32 %v2835, %v2841
  %v2858 = vadd.f32 %v2836, %v2841
  %v2859 = vmax.f32 %v2843, 0.0
  %v2860 = vmax.f32 %v2844, 0.0
  %v2861 = vmax.f32 %v2845, 0.0
  %v2862 = vmax.f32 %v2846, 0.0
  %v2863 = vmax.f32 %v2847, 0.0
  %v2864 = vmax.f32 %v2848, 0.0
  %v2865 = vmax.f32 %v2849, 0.0
  %v2866 = vmax.f32 %v2850, 0.0
  %v2867 = vmax.f32 %v2851, 0.0
  %v2868 = vmax.f32 %v2852, 0.0
  %v2869 = vmax.f32 %v2853, 0.0
  %v2870 = vmax.f32 %v2854, 0.0
  %v2871 = vmax.f32 %v2855, 0.0
  %v2872 = vmax.f32 %v2856, 0.0
  %v2873 = vmax.f32 %v2857, 0.0
  %v2874 = vmax.f32 %v2858, 0.0
  %2875 = vst.msk [vmem:[#allocation3] sm:$0xff] %vm2715, 0.0
  %vm2876 = vcmask 58368
  %2877 = vst.msk [vmem:[#allocation3 + $0x8] sm:$0x3] %vm2876, 0.0
  %2878 = vst.msk [vmem:[#allocation3 + $0x10] sm:$0xff] %vm2715, 0.0
  %2879 = vst.msk [vmem:[#allocation3 + $0x18] sm:$0x3] %vm2876, 0.0
  %2880 = vst.msk [vmem:[#allocation3 + $0x20] sm:$0xff] %vm2715, 0.0
  %2881 = vst.msk [vmem:[#allocation3 + $0x28] sm:$0x3] %vm2876, 0.0
  %2882 = vst.msk [vmem:[#allocation3 + $0x30] sm:$0xff] %vm2715, 0.0
  %2883 = vst.msk [vmem:[#allocation3 + $0x38] sm:$0x3] %vm2876, 0.0
  %2884 = vst.msk [vmem:[#allocation3 + $0x40] sm:$0xff] %vm2715, 0.0
  %2885 = vst.msk [vmem:[#allocation3 + $0x48] sm:$0x3] %vm2876, 0.0
  %2886 = vst.msk [vmem:[#allocation3 + $0x50] sm:$0xff] %vm2715, 0.0
  %2887 = vst.msk [vmem:[#allocation3 + $0x58] sm:$0x3] %vm2876, 0.0
  %2888 = vst.msk [vmem:[#allocation3 + $0x60] sm:$0xff] %vm2715, 0.0
  %2889 = vst.msk [vmem:[#allocation3 + $0x68] sm:$0x3] %vm2876, 0.0
  %2890 = vst.msk [vmem:[#allocation3 + $0x70] sm:$0xff] %vm2715, 0.0
  %2891 = vst.msk [vmem:[#allocation3 + $0x78] sm:$0x3] %vm2876, 0.0
  %2892 = vst.msk [vmem:[#allocation3 + $0x80] sm:$0xff] %vm2715, 0.0
  %2893 = vst.msk [vmem:[#allocation3 + $0x88] sm:$0x3] %vm2876, 0.0
  %2894 = vst.msk [vmem:[#allocation3 + $0x90] sm:$0xff] %vm2715, 0.0
  %2895 = vst.msk [vmem:[#allocation3 + $0x98] sm:$0x3] %vm2876, 0.0
  %2896 = vst.msk [vmem:[#allocation3 + $0xa0] sm:$0xff] %vm2715, 0.0
  %2897 = vst.msk [vmem:[#allocation3 + $0xa8] sm:$0x3] %vm2876, 0.0
  %2898 = vst.msk [vmem:[#allocation3 + $0xb0] sm:$0xff] %vm2715, 0.0
  %2899 = vst.msk [vmem:[#allocation3 + $0xb8] sm:$0x3] %vm2876, 0.0
  %2900 = vst.msk [vmem:[#allocation3 + $0xc0] sm:$0xff] %vm2715, 0.0
  %2901 = vst.msk [vmem:[#allocation3 + $0xc8] sm:$0x3] %vm2876, 0.0
  %2902 = vst.msk [vmem:[#allocation3 + $0xd0] sm:$0xff] %vm2715, 0.0
  %2903 = vst.msk [vmem:[#allocation3 + $0xd8] sm:$0x3] %vm2876, 0.0
  %2904 = vst.msk [vmem:[#allocation3 + $0xe0] sm:$0xff] %vm2715, 0.0
  %2905 = vst.msk [vmem:[#allocation3 + $0xe8] sm:$0x3] %vm2876, 0.0
  %2906 = vst.msk [vmem:[#allocation3 + $0xf0] sm:$0xff] %vm2715, 0.0
  %2907 = vst.msk [vmem:[#allocation3 + $0xf8] sm:$0x3] %vm2876, 0.0
  %2908 = vst.msk [vmem:[#allocation3 + $0x100] sm:$0xff] %vm2715, 0.0
  %2909 = vst.msk [vmem:[#allocation3 + $0x108] sm:$0x3] %vm2876, 0.0
  %2910 = vst.msk [vmem:[#allocation3 + $0x110] sm:$0xff] %vm2715, 0.0
  %2911 = vst.msk [vmem:[#allocation3 + $0x118] sm:$0x3] %vm2876, 0.0
  %2912 = vst.msk [vmem:[#allocation3 + $0x120] sm:$0xff] %vm2715, 0.0
  %2913 = vst.msk [vmem:[#allocation3 + $0x128] sm:$0x3] %vm2876, 0.0
  %2914 = vst.msk [vmem:[#allocation3 + $0x130] sm:$0xff] %vm2715, 0.0
  %2915 = vst.msk [vmem:[#allocation3 + $0x138] sm:$0x3] %vm2876, 0.0
  %s2916 = scalar_lea.vmem [#allocation3], 16
  %2917 = vst.msk [vmem:[%s2916 + $0x1] sm:$0xff] %vm2715, %v2859
  %2918 = vst.msk [vmem:[%s2916 + $0x11] sm:$0xff] %vm2715, %v2860
  %2919 = vst.msk [vmem:[%s2916 + $0x21] sm:$0xff] %vm2715, %v2861
  %2920 = vst.msk [vmem:[%s2916 + $0x31] sm:$0xff] %vm2715, %v2862
  %2921 = vst.msk [vmem:[%s2916 + $0x41] sm:$0xff] %vm2715, %v2863
  %2922 = vst.msk [vmem:[%s2916 + $0x51] sm:$0xff] %vm2715, %v2864
  %2923 = vst.msk [vmem:[%s2916 + $0x61] sm:$0xff] %vm2715, %v2865
  %2924 = vst.msk [vmem:[%s2916 + $0x71] sm:$0xff] %vm2715, %v2866
  %2925 = vst.msk [vmem:[%s2916 + $0xa1] sm:$0xff] %vm2715, %v2867
  %2926 = vst.msk [vmem:[%s2916 + $0xb1] sm:$0xff] %vm2715, %v2868
  %2927 = vst.msk [vmem:[%s2916 + $0xc1] sm:$0xff] %vm2715, %v2869
  %2928 = vst.msk [vmem:[%s2916 + $0xd1] sm:$0xff] %vm2715, %v2870
  %2929 = vst.msk [vmem:[%s2916 + $0xe1] sm:$0xff] %vm2715, %v2871
  %2930 = vst.msk [vmem:[%s2916 + $0xf1] sm:$0xff] %vm2715, %v2872
  %2931 = vst.msk [vmem:[%s2916 + $0x101] sm:$0xff] %vm2715, %v2873
  %2932 = vst.msk [vmem:[%s2916 + $0x111] sm:$0xff] %vm2715, %v2874
  %v2933 = vld [vmem:[#allocation3] sm:$0xff]
  %v2934 = vld [vmem:[#allocation3 + $0x8] sm:$0x3]
  %v2935 = vld [vmem:[#allocation3 + $0x10] sm:$0xff]
  %v2936 = vld [vmem:[#allocation3 + $0x18] sm:$0x3]
  %v2937 = vld [vmem:[#allocation3 + $0x20] sm:$0xff]
  %v2938 = vld [vmem:[#allocation3 + $0x28] sm:$0x3]
  %v2939 = vld [vmem:[#allocation3 + $0x30] sm:$0xff]
  %v2940 = vld [vmem:[#allocation3 + $0x38] sm:$0x3]
  %v2941 = vld [vmem:[#allocation3 + $0x40] sm:$0xff]
  %v2942 = vld [vmem:[#allocation3 + $0x48] sm:$0x3]
  %v2943 = vld [vmem:[#allocation3 + $0x50] sm:$0xff]
  %v2944 = vld [vmem:[#allocation3 + $0x58] sm:$0x3]
  %v2945 = vld [vmem:[#allocation3 + $0x60] sm:$0xff]
  %v2946 = vld [vmem:[#allocation3 + $0x68] sm:$0x3]
  %v2947 = vld [vmem:[#allocation3 + $0x70] sm:$0xff]
  %v2948 = vld [vmem:[#allocation3 + $0x78] sm:$0x3]
  %v2949 = vld [vmem:[#allocation3 + $0x80] sm:$0xff]
  %v2950 = vld [vmem:[#allocation3 + $0x88] sm:$0x3]
  %v2951 = vld [vmem:[#allocation3 + $0x90] sm:$0xff]
  %v2952 = vld [vmem:[#allocation3 + $0x98] sm:$0x3]
  %v2953 = vld [vmem:[#allocation3 + $0xa0] sm:$0xff]
  %v2954 = vld [vmem:[#allocation3 + $0xa8] sm:$0x3]
  %v2955 = vld [vmem:[#allocation3 + $0xb0] sm:$0xff]
  %v2956 = vld [vmem:[#allocation3 + $0xb8] sm:$0x3]
  %v2957 = vld [vmem:[#allocation3 + $0xc0] sm:$0xff]
  %v2958 = vld [vmem:[#allocation3 + $0xc8] sm:$0x3]
  %v2959 = vld [vmem:[#allocation3 + $0xd0] sm:$0xff]
  %v2960 = vld [vmem:[#allocation3 + $0xd8] sm:$0x3]
  %v2961 = vld [vmem:[#allocation3 + $0xe0] sm:$0xff]
  %v2962 = vld [vmem:[#allocation3 + $0xe8] sm:$0x3]
  %v2963 = vld [vmem:[#allocation3 + $0xf0] sm:$0xff]
  %v2964 = vld [vmem:[#allocation3 + $0xf8] sm:$0x3]
  %v2965 = vld [vmem:[#allocation3 + $0x100] sm:$0xff]
  %v2966 = vld [vmem:[#allocation3 + $0x108] sm:$0x3]
  %v2967 = vld [vmem:[#allocation3 + $0x110] sm:$0xff]
  %v2968 = vld [vmem:[#allocation3 + $0x118] sm:$0x3]
  %v2969 = vld [vmem:[#allocation3 + $0x120] sm:$0xff]
  %v2970 = vld [vmem:[#allocation3 + $0x128] sm:$0x3]
  %v2971 = vld [vmem:[#allocation3 + $0x130] sm:$0xff]
  %v2972 = vld [vmem:[#allocation3 + $0x138] sm:$0x3]
  %v2973 = vld [vmem:[%s4] sm:$0xff]
  %v2974 = vld [vmem:[%s4 + $0x8] sm:$0xff]
  %v2975 = vld [vmem:[%s4 + $0x10] sm:$0xff]
  %v2976 = vld [vmem:[%s4 + $0x18] sm:$0xff]
  %v2977 = vld [vmem:[%s4 + $0x20] sm:$0xff]
  %v2978 = vld [vmem:[%s4 + $0x28] sm:$0xff]
  %v2979 = vld [vmem:[%s4 + $0x30] sm:$0xff]
  %v2980 = vld [vmem:[%s4 + $0x38] sm:$0xff]
  %v2981 = vld [vmem:[%s4 + $0x40] sm:$0xff]
  %v2982 = vld [vmem:[%s5] sm:$0x1]
  %v2983 = vld [vmem:[%s6] sm:$0x1]
  %2984 = vst.msk [vmem:[#allocation5] sm:$0xff] %vm2715, %v2933
  %2985 = vst.msk [vmem:[#allocation5 + $0x8] sm:$0xff] %vm2715, %v2935
  %2986 = vst.msk [vmem:[#allocation5 + $0x10] sm:$0xff] %vm2715, %v2937
  %2987 = vst.msk [vmem:[#allocation5 + $0x18] sm:$0xff] %vm2715, %v2939
  %2988 = vst.msk [vmem:[#allocation5 + $0x20] sm:$0xff] %vm2715, %v2941
  %2989 = vst.msk [vmem:[#allocation5 + $0x28] sm:$0xff] %vm2715, %v2943
  %2990 = vst.msk [vmem:[#allocation5 + $0x30] sm:$0xff] %vm2715, %v2945
  %2991 = vst.msk [vmem:[#allocation5 + $0x38] sm:$0xff] %vm2715, %v2947
  %2992 = vst.msk [vmem:[#allocation5 + $0x40] sm:$0xff] %vm2715, %v2953
  %2993 = vst.msk [vmem:[#allocation5 + $0x48] sm:$0xff] %vm2715, %v2955
  %2994 = vst.msk [vmem:[#allocation5 + $0x50] sm:$0xff] %vm2715, %v2957
  %2995 = vst.msk [vmem:[#allocation5 + $0x58] sm:$0xff] %vm2715, %v2959
  %2996 = vst.msk [vmem:[#allocation5 + $0x60] sm:$0xff] %vm2715, %v2961
  %2997 = vst.msk [vmem:[#allocation5 + $0x68] sm:$0xff] %vm2715, %v2963
  %2998 = vst.msk [vmem:[#allocation5 + $0x70] sm:$0xff] %vm2715, %v2965
  %2999 = vst.msk [vmem:[#allocation5 + $0x78] sm:$0xff] %vm2715, %v2967
  %v3032 = vrot.slane %v2933, 1
  %v3033 = vrot.slane %v2934, 1
  %v3034 = vsel %vm1851, %v3032, %v3033
  %v3035 = vrot.slane %v2935, 1
  %v3036 = vrot.slane %v2936, 1
  %v3037 = vsel %vm1851, %v3035, %v3036
  %v3038 = vrot.slane %v2937, 1
  %v3039 = vrot.slane %v2938, 1
  %v3040 = vsel %vm1851, %v3038, %v3039
  %v3041 = vrot.slane %v2939, 1
  %v3042 = vrot.slane %v2940, 1
  %v3043 = vsel %vm1851, %v3041, %v3042
  %v3044 = vrot.slane %v2941, 1
  %v3045 = vrot.slane %v2942, 1
  %v3046 = vsel %vm1851, %v3044, %v3045
  %v3047 = vrot.slane %v2943, 1
  %v3048 = vrot.slane %v2944, 1
  %v3049 = vsel %vm1851, %v3047, %v3048
  %v3050 = vrot.slane %v2945, 1
  %v3051 = vrot.slane %v2946, 1
  %v3052 = vsel %vm1851, %v3050, %v3051
  %v3053 = vrot.slane %v2947, 1
  %v3054 = vrot.slane %v2948, 1
  %v3055 = vsel %vm1851, %v3053, %v3054
  %v3056 = vrot.slane %v2953, 1
  %v3057 = vrot.slane %v2954, 1
  %v3058 = vsel %vm1851, %v3056, %v3057
  %v3059 = vrot.slane %v2955, 1
  %v3060 = vrot.slane %v2956, 1
  %v3061 = vsel %vm1851, %v3059, %v3060
  %v3062 = vrot.slane %v2957, 1
  %v3063 = vrot.slane %v2958, 1
  %v3064 = vsel %vm1851, %v3062, %v3063
  %v3065 = vrot.slane %v2959, 1
  %v3066 = vrot.slane %v2960, 1
  %v3067 = vsel %vm1851, %v3065, %v3066
  %v3068 = vrot.slane %v2961, 1
  %v3069 = vrot.slane %v2962, 1
  %v3070 = vsel %vm1851, %v3068, %v3069
  %v3071 = vrot.slane %v2963, 1
  %v3072 = vrot.slane %v2964, 1
  %v3073 = vsel %vm1851, %v3071, %v3072
  %v3074 = vrot.slane %v2965, 1
  %v3075 = vrot.slane %v2966, 1
  %v3076 = vsel %vm1851, %v3074, %v3075
  %v3077 = vrot.slane %v2967, 1
  %v3078 = vrot.slane %v2968, 1
  %v3079 = vsel %vm1851, %v3077, %v3078
  %3080 = vrot.lane.b32.xlu0 %v3034, 8
  %v3081 = vpop.permute.xlu0 %3080
  %3082 = vrot.lane.b32.xlu0 %v3037, 8
  %v3083 = vpop.permute.xlu0 %3082
  %3084 = vrot.lane.b32.xlu0 %v3040, 8
  %v3085 = vpop.permute.xlu0 %3084
  %3086 = vrot.lane.b32.xlu0 %v3043, 8
  %v3087 = vpop.permute.xlu0 %3086
  %3088 = vrot.lane.b32.xlu0 %v3046, 8
  %v3089 = vpop.permute.xlu0 %3088
  %3090 = vrot.lane.b32.xlu0 %v3049, 8
  %v3091 = vpop.permute.xlu0 %3090
  %3092 = vrot.lane.b32.xlu0 %v3052, 8
  %v3093 = vpop.permute.xlu0 %3092
  %3094 = vrot.lane.b32.xlu0 %v3055, 8
  %v3095 = vpop.permute.xlu0 %3094
  %3096 = vrot.lane.b32.xlu0 %v3058, 8
  %v3097 = vpop.permute.xlu0 %3096
  %3098 = vrot.lane.b32.xlu0 %v3061, 8
  %v3099 = vpop.permute.xlu0 %3098
  %3100 = vrot.lane.b32.xlu0 %v3064, 8
  %v3101 = vpop.permute.xlu0 %3100
  %3102 = vrot.lane.b32.xlu0 %v3067, 8
  %v3103 = vpop.permute.xlu0 %3102
  %3104 = vrot.lane.b32.xlu0 %v3070, 8
  %v3105 = vpop.permute.xlu0 %3104
  %3106 = vrot.lane.b32.xlu0 %v3073, 8
  %v3107 = vpop.permute.xlu0 %3106
  %3108 = vrot.lane.b32.xlu0 %v3076, 8
  %v3109 = vpop.permute.xlu0 %3108
  %3110 = vrot.lane.b32.xlu0 %v3079, 8
  %v3111 = vpop.permute.xlu0 %3110
  %vm3128 = vcmask 130112
  %3129 = vst.msk [vmem:[#allocation5] sm:$0xff] %vm3128, %v3081
  %3130 = vst.msk [vmem:[#allocation5 + $0x8] sm:$0xff] %vm3128, %v3083
  %3131 = vst.msk [vmem:[#allocation5 + $0x10] sm:$0xff] %vm3128, %v3085
  %3132 = vst.msk [vmem:[#allocation5 + $0x18] sm:$0xff] %vm3128, %v3087
  %3133 = vst.msk [vmem:[#allocation5 + $0x20] sm:$0xff] %vm3128, %v3089
  %3134 = vst.msk [vmem:[#allocation5 + $0x28] sm:$0xff] %vm3128, %v3091
  %3135 = vst.msk [vmem:[#allocation5 + $0x30] sm:$0xff] %vm3128, %v3093
  %3136 = vst.msk [vmem:[#allocation5 + $0x38] sm:$0xff] %vm3128, %v3095
  %3137 = vst.msk [vmem:[#allocation5 + $0x40] sm:$0xff] %vm3128, %v3097
  %3138 = vst.msk [vmem:[#allocation5 + $0x48] sm:$0xff] %vm3128, %v3099
  %3139 = vst.msk [vmem:[#allocation5 + $0x50] sm:$0xff] %vm3128, %v3101
  %3140 = vst.msk [vmem:[#allocation5 + $0x58] sm:$0xff] %vm3128, %v3103
  %3141 = vst.msk [vmem:[#allocation5 + $0x60] sm:$0xff] %vm3128, %v3105
  %3142 = vst.msk [vmem:[#allocation5 + $0x68] sm:$0xff] %vm3128, %v3107
  %3143 = vst.msk [vmem:[#allocation5 + $0x70] sm:$0xff] %vm3128, %v3109
  %3144 = vst.msk [vmem:[#allocation5 + $0x78] sm:$0xff] %vm3128, %v3111
  %v3145 = vrot.slane %v2933, 2
  %v3146 = vrot.slane %v2934, 2
  %v3147 = vsel %vm1965, %v3145, %v3146
  %v3148 = vrot.slane %v2935, 2
  %v3149 = vrot.slane %v2936, 2
  %v3150 = vsel %vm1965, %v3148, %v3149
  %v3151 = vrot.slane %v2937, 2
  %v3152 = vrot.slane %v2938, 2
  %v3153 = vsel %vm1965, %v3151, %v3152
  %v3154 = vrot.slane %v2939, 2
  %v3155 = vrot.slane %v2940, 2
  %v3156 = vsel %vm1965, %v3154, %v3155
  %v3157 = vrot.slane %v2941, 2
  %v3158 = vrot.slane %v2942, 2
  %v3159 = vsel %vm1965, %v3157, %v3158
  %v3160 = vrot.slane %v2943, 2
  %v3161 = vrot.slane %v2944, 2
  %v3162 = vsel %vm1965, %v3160, %v3161
  %v3163 = vrot.slane %v2945, 2
  %v3164 = vrot.slane %v2946, 2
  %v3165 = vsel %vm1965, %v3163, %v3164
  %v3166 = vrot.slane %v2947, 2
  %v3167 = vrot.slane %v2948, 2
  %v3168 = vsel %vm1965, %v3166, %v3167
  %v3169 = vrot.slane %v2953, 2
  %v3170 = vrot.slane %v2954, 2
  %v3171 = vsel %vm1965, %v3169, %v3170
  %v3172 = vrot.slane %v2955, 2
  %v3173 = vrot.slane %v2956, 2
  %v3174 = vsel %vm1965, %v3172, %v3173
  %v3175 = vrot.slane %v2957, 2
  %v3176 = vrot.slane %v2958, 2
  %v3177 = vsel %vm1965, %v3175, %v3176
  %v3178 = vrot.slane %v2959, 2
  %v3179 = vrot.slane %v2960, 2
  %v3180 = vsel %vm1965, %v3178, %v3179
  %v3181 = vrot.slane %v2961, 2
  %v3182 = vrot.slane %v2962, 2
  %v3183 = vsel %vm1965, %v3181, %v3182
  %v3184 = vrot.slane %v2963, 2
  %v3185 = vrot.slane %v2964, 2
  %v3186 = vsel %vm1965, %v3184, %v3185
  %v3187 = vrot.slane %v2965, 2
  %v3188 = vrot.slane %v2966, 2
  %v3189 = vsel %vm1965, %v3187, %v3188
  %v3190 = vrot.slane %v2967, 2
  %v3191 = vrot.slane %v2968, 2
  %v3192 = vsel %vm1965, %v3190, %v3191
  %3193 = vrot.lane.b32.xlu0 %v3147, 16
  %v3194 = vpop.permute.xlu0 %3193
  %3195 = vrot.lane.b32.xlu0 %v3150, 16
  %v3196 = vpop.permute.xlu0 %3195
  %3197 = vrot.lane.b32.xlu0 %v3153, 16
  %v3198 = vpop.permute.xlu0 %3197
  %3199 = vrot.lane.b32.xlu0 %v3156, 16
  %v3200 = vpop.permute.xlu0 %3199
  %3201 = vrot.lane.b32.xlu0 %v3159, 16
  %v3202 = vpop.permute.xlu0 %3201
  %3203 = vrot.lane.b32.xlu0 %v3162, 16
  %v3204 = vpop.permute.xlu0 %3203
  %3205 = vrot.lane.b32.xlu0 %v3165, 16
  %v3206 = vpop.permute.xlu0 %3205
  %3207 = vrot.lane.b32.xlu0 %v3168, 16
  %v3208 = vpop.permute.xlu0 %3207
  %3209 = vrot.lane.b32.xlu0 %v3171, 16
  %v3210 = vpop.permute.xlu0 %3209
  %3211 = vrot.lane.b32.xlu0 %v3174, 16
  %v3212 = vpop.permute.xlu0 %3211
  %3213 = vrot.lane.b32.xlu0 %v3177, 16
  %v3214 = vpop.permute.xlu0 %3213
  %3215 = vrot.lane.b32.xlu0 %v3180, 16
  %v3216 = vpop.permute.xlu0 %3215
  %3217 = vrot.lane.b32.xlu0 %v3183, 16
  %v3218 = vpop.permute.xlu0 %3217
  %3219 = vrot.lane.b32.xlu0 %v3186, 16
  %v3220 = vpop.permute.xlu0 %3219
  %3221 = vrot.lane.b32.xlu0 %v3189, 16
  %v3222 = vpop.permute.xlu0 %3221
  %3223 = vrot.lane.b32.xlu0 %v3192, 16
  %v3224 = vpop.permute.xlu0 %3223
  %vm3241 = vcmask 195712
  %3242 = vst.msk [vmem:[#allocation5] sm:$0xff] %vm3241, %v3194
  %3243 = vst.msk [vmem:[#allocation5 + $0x8] sm:$0xff] %vm3241, %v3196
  %3244 = vst.msk [vmem:[#allocation5 + $0x10] sm:$0xff] %vm3241, %v3198
  %3245 = vst.msk [vmem:[#allocation5 + $0x18] sm:$0xff] %vm3241, %v3200
  %3246 = vst.msk [vmem:[#allocation5 + $0x20] sm:$0xff] %vm3241, %v3202
  %3247 = vst.msk [vmem:[#allocation5 + $0x28] sm:$0xff] %vm3241, %v3204
  %3248 = vst.msk [vmem:[#allocation5 + $0x30] sm:$0xff] %vm3241, %v3206
  %3249 = vst.msk [vmem:[#allocation5 + $0x38] sm:$0xff] %vm3241, %v3208
  %3250 = vst.msk [vmem:[#allocation5 + $0x40] sm:$0xff] %vm3241, %v3210
  %3251 = vst.msk [vmem:[#allocation5 + $0x48] sm:$0xff] %vm3241, %v3212
  %3252 = vst.msk [vmem:[#allocation5 + $0x50] sm:$0xff] %vm3241, %v3214
  %3253 = vst.msk [vmem:[#allocation5 + $0x58] sm:$0xff] %vm3241, %v3216
  %3254 = vst.msk [vmem:[#allocation5 + $0x60] sm:$0xff] %vm3241, %v3218
  %3255 = vst.msk [vmem:[#allocation5 + $0x68] sm:$0xff] %vm3241, %v3220
  %3256 = vst.msk [vmem:[#allocation5 + $0x70] sm:$0xff] %vm3241, %v3222
  %3257 = vst.msk [vmem:[#allocation5 + $0x78] sm:$0xff] %vm3241, %v3224
  %3260 = vrot.lane.b32.xlu0 %v2935, 24
  %v3261 = vpop.permute.xlu0 %3260
  %3262 = vrot.lane.b32.xlu0 %v2937, 24
  %v3263 = vpop.permute.xlu0 %3262
  %3264 = vrot.lane.b32.xlu0 %v2939, 24
  %v3265 = vpop.permute.xlu0 %3264
  %3266 = vrot.lane.b32.xlu0 %v2941, 24
  %v3267 = vpop.permute.xlu0 %3266
  %3268 = vrot.lane.b32.xlu0 %v2943, 24
  %v3269 = vpop.permute.xlu0 %3268
  %3270 = vrot.lane.b32.xlu0 %v2945, 24
  %v3271 = vpop.permute.xlu0 %3270
  %3272 = vrot.lane.b32.xlu0 %v2947, 24
  %v3273 = vpop.permute.xlu0 %3272
  %3274 = vrot.lane.b32.xlu0 %v2949, 24
  %v3275 = vpop.permute.xlu0 %3274
  %3276 = vrot.lane.b32.xlu0 %v2955, 24
  %v3277 = vpop.permute.xlu0 %3276
  %3278 = vrot.lane.b32.xlu0 %v2957, 24
  %v3279 = vpop.permute.xlu0 %3278
  %3280 = vrot.lane.b32.xlu0 %v2959, 24
  %v3281 = vpop.permute.xlu0 %3280
  %3282 = vrot.lane.b32.xlu0 %v2961, 24
  %v3283 = vpop.permute.xlu0 %3282
  %3284 = vrot.lane.b32.xlu0 %v2963, 24
  %v3285 = vpop.permute.xlu0 %3284
  %3286 = vrot.lane.b32.xlu0 %v2965, 24
  %v3287 = vpop.permute.xlu0 %3286
  %3288 = vrot.lane.b32.xlu0 %v2967, 24
  %v3289 = vpop.permute.xlu0 %3288
  %3290 = vrot.lane.b32.xlu0 %v2969, 24
  %v3291 = vpop.permute.xlu0 %3290
  %vm3308 = vcmask 261312
  %3309 = vst.msk [vmem:[#allocation5] sm:$0xff] %vm3308, %v3261
  %3310 = vst.msk [vmem:[#allocation5 + $0x8] sm:$0xff] %vm3308, %v3263
  %3311 = vst.msk [vmem:[#allocation5 + $0x10] sm:$0xff] %vm3308, %v3265
  %3312 = vst.msk [vmem:[#allocation5 + $0x18] sm:$0xff] %vm3308, %v3267
  %3313 = vst.msk [vmem:[#allocation5 + $0x20] sm:$0xff] %vm3308, %v3269
  %3314 = vst.msk [vmem:[#allocation5 + $0x28] sm:$0xff] %vm3308, %v3271
  %3315 = vst.msk [vmem:[#allocation5 + $0x30] sm:$0xff] %vm3308, %v3273
  %3316 = vst.msk [vmem:[#allocation5 + $0x38] sm:$0xff] %vm3308, %v3275
  %3317 = vst.msk [vmem:[#allocation5 + $0x40] sm:$0xff] %vm3308, %v3277
  %3318 = vst.msk [vmem:[#allocation5 + $0x48] sm:$0xff] %vm3308, %v3279
  %3319 = vst.msk [vmem:[#allocation5 + $0x50] sm:$0xff] %vm3308, %v3281
  %3320 = vst.msk [vmem:[#allocation5 + $0x58] sm:$0xff] %vm3308, %v3283
  %3321 = vst.msk [vmem:[#allocation5 + $0x60] sm:$0xff] %vm3308, %v3285
  %3322 = vst.msk [vmem:[#allocation5 + $0x68] sm:$0xff] %vm3308, %v3287
  %3323 = vst.msk [vmem:[#allocation5 + $0x70] sm:$0xff] %vm3308, %v3289
  %3324 = vst.msk [vmem:[#allocation5 + $0x78] sm:$0xff] %vm3308, %v3291
  %v3327 = vrot.slane %v2949, 1
  %v3328 = vrot.slane %v2950, 1
  %v3329 = vsel %vm1851, %v3327, %v3328
  %v3330 = vrot.slane %v2969, 1
  %v3331 = vrot.slane %v2970, 1
  %v3332 = vsel %vm1851, %v3330, %v3331
  %3333 = vrot.lane.b32.xlu0 %v3037, 32
  %v3334 = vpop.permute.xlu0 %3333
  %3335 = vrot.lane.b32.xlu0 %v3040, 32
  %v3336 = vpop.permute.xlu0 %3335
  %3337 = vrot.lane.b32.xlu0 %v3043, 32
  %v3338 = vpop.permute.xlu0 %3337
  %3339 = vrot.lane.b32.xlu0 %v3046, 32
  %v3340 = vpop.permute.xlu0 %3339
  %3341 = vrot.lane.b32.xlu0 %v3049, 32
  %v3342 = vpop.permute.xlu0 %3341
  %3343 = vrot.lane.b32.xlu0 %v3052, 32
  %v3344 = vpop.permute.xlu0 %3343
  %3345 = vrot.lane.b32.xlu0 %v3055, 32
  %v3346 = vpop.permute.xlu0 %3345
  %3347 = vrot.lane.b32.xlu0 %v3329, 32
  %v3348 = vpop.permute.xlu0 %3347
  %3349 = vrot.lane.b32.xlu0 %v3061, 32
  %v3350 = vpop.permute.xlu0 %3349
  %3351 = vrot.lane.b32.xlu0 %v3064, 32
  %v3352 = vpop.permute.xlu0 %3351
  %3353 = vrot.lane.b32.xlu0 %v3067, 32
  %v3354 = vpop.permute.xlu0 %3353
  %3355 = vrot.lane.b32.xlu0 %v3070, 32
  %v3356 = vpop.permute.xlu0 %3355
  %3357 = vrot.lane.b32.xlu0 %v3073, 32
  %v3358 = vpop.permute.xlu0 %3357
  %3359 = vrot.lane.b32.xlu0 %v3076, 32
  %v3360 = vpop.permute.xlu0 %3359
  %3361 = vrot.lane.b32.xlu0 %v3079, 32
  %v3362 = vpop.permute.xlu0 %3361
  %3363 = vrot.lane.b32.xlu0 %v3332, 32
  %v3364 = vpop.permute.xlu0 %3363
  %vm3381 = vcmask 326912
  %3382 = vst.msk [vmem:[#allocation5] sm:$0xff] %vm3381, %v3334
  %3383 = vst.msk [vmem:[#allocation5 + $0x8] sm:$0xff] %vm3381, %v3336
  %3384 = vst.msk [vmem:[#allocation5 + $0x10] sm:$0xff] %vm3381, %v3338
  %3385 = vst.msk [vmem:[#allocation5 + $0x18] sm:$0xff] %vm3381, %v3340
  %3386 = vst.msk [vmem:[#allocation5 + $0x20] sm:$0xff] %vm3381, %v3342
  %3387 = vst.msk [vmem:[#allocation5 + $0x28] sm:$0xff] %vm3381, %v3344
  %3388 = vst.msk [vmem:[#allocation5 + $0x30] sm:$0xff] %vm3381, %v3346
  %3389 = vst.msk [vmem:[#allocation5 + $0x38] sm:$0xff] %vm3381, %v3348
  %3390 = vst.msk [vmem:[#allocation5 + $0x40] sm:$0xff] %vm3381, %v3350
  %3391 = vst.msk [vmem:[#allocation5 + $0x48] sm:$0xff] %vm3381, %v3352
  %3392 = vst.msk [vmem:[#allocation5 + $0x50] sm:$0xff] %vm3381, %v3354
  %3393 = vst.msk [vmem:[#allocation5 + $0x58] sm:$0xff] %vm3381, %v3356
  %3394 = vst.msk [vmem:[#allocation5 + $0x60] sm:$0xff] %vm3381, %v3358
  %3395 = vst.msk [vmem:[#allocation5 + $0x68] sm:$0xff] %vm3381, %v3360
  %3396 = vst.msk [vmem:[#allocation5 + $0x70] sm:$0xff] %vm3381, %v3362
  %3397 = vst.msk [vmem:[#allocation5 + $0x78] sm:$0xff] %vm3381, %v3364
  %v3398 = vrot.slane %v2949, 2
  %v3399 = vrot.slane %v2950, 2
  %v3400 = vsel %vm1965, %v3398, %v3399
  %v3401 = vrot.slane %v2969, 2
  %v3402 = vrot.slane %v2970, 2
  %v3403 = vsel %vm1965, %v3401, %v3402
  %3404 = vrot.lane.b32.xlu0 %v3150, 40
  %v3405 = vpop.permute.xlu0 %3404
  %3406 = vrot.lane.b32.xlu0 %v3153, 40
  %v3407 = vpop.permute.xlu0 %3406
  %3408 = vrot.lane.b32.xlu0 %v3156, 40
  %v3409 = vpop.permute.xlu0 %3408
  %3410 = vrot.lane.b32.xlu0 %v3159, 40
  %v3411 = vpop.permute.xlu0 %3410
  %3412 = vrot.lane.b32.xlu0 %v3162, 40
  %v3413 = vpop.permute.xlu0 %3412
  %3414 = vrot.lane.b32.xlu0 %v3165, 40
  %v3415 = vpop.permute.xlu0 %3414
  %3416 = vrot.lane.b32.xlu0 %v3168, 40
  %v3417 = vpop.permute.xlu0 %3416
  %3418 = vrot.lane.b32.xlu0 %v3400, 40
  %v3419 = vpop.permute.xlu0 %3418
  %3420 = vrot.lane.b32.xlu0 %v3174, 40
  %v3421 = vpop.permute.xlu0 %3420
  %3422 = vrot.lane.b32.xlu0 %v3177, 40
  %v3423 = vpop.permute.xlu0 %3422
  %3424 = vrot.lane.b32.xlu0 %v3180, 40
  %v3425 = vpop.permute.xlu0 %3424
  %3426 = vrot.lane.b32.xlu0 %v3183, 40
  %v3427 = vpop.permute.xlu0 %3426
  %3428 = vrot.lane.b32.xlu0 %v3186, 40
  %v3429 = vpop.permute.xlu0 %3428
  %3430 = vrot.lane.b32.xlu0 %v3189, 40
  %v3431 = vpop.permute.xlu0 %3430
  %3432 = vrot.lane.b32.xlu0 %v3192, 40
  %v3433 = vpop.permute.xlu0 %3432
  %3434 = vrot.lane.b32.xlu0 %v3403, 40
  %v3435 = vpop.permute.xlu0 %3434
  %vm3452 = vcmask 392512
  %3453 = vst.msk [vmem:[#allocation5] sm:$0xff] %vm3452, %v3405
  %3454 = vst.msk [vmem:[#allocation5 + $0x8] sm:$0xff] %vm3452, %v3407
  %3455 = vst.msk [vmem:[#allocation5 + $0x10] sm:$0xff] %vm3452, %v3409
  %3456 = vst.msk [vmem:[#allocation5 + $0x18] sm:$0xff] %vm3452, %v3411
  %3457 = vst.msk [vmem:[#allocation5 + $0x20] sm:$0xff] %vm3452, %v3413
  %3458 = vst.msk [vmem:[#allocation5 + $0x28] sm:$0xff] %vm3452, %v3415
  %3459 = vst.msk [vmem:[#allocation5 + $0x30] sm:$0xff] %vm3452, %v3417
  %3460 = vst.msk [vmem:[#allocation5 + $0x38] sm:$0xff] %vm3452, %v3419
  %3461 = vst.msk [vmem:[#allocation5 + $0x40] sm:$0xff] %vm3452, %v3421
  %3462 = vst.msk [vmem:[#allocation5 + $0x48] sm:$0xff] %vm3452, %v3423
  %3463 = vst.msk [vmem:[#allocation5 + $0x50] sm:$0xff] %vm3452, %v3425
  %3464 = vst.msk [vmem:[#allocation5 + $0x58] sm:$0xff] %vm3452, %v3427
  %3465 = vst.msk [vmem:[#allocation5 + $0x60] sm:$0xff] %vm3452, %v3429
  %3466 = vst.msk [vmem:[#allocation5 + $0x68] sm:$0xff] %vm3452, %v3431
  %3467 = vst.msk [vmem:[#allocation5 + $0x70] sm:$0xff] %vm3452, %v3433
  %3468 = vst.msk [vmem:[#allocation5 + $0x78] sm:$0xff] %vm3452, %v3435
  %3471 = vrot.lane.b32.xlu0 %v2937, 48
  %v3472 = vpop.permute.xlu0 %3471
  %3473 = vrot.lane.b32.xlu0 %v2939, 48
  %v3474 = vpop.permute.xlu0 %3473
  %3475 = vrot.lane.b32.xlu0 %v2941, 48
  %v3476 = vpop.permute.xlu0 %3475
  %3477 = vrot.lane.b32.xlu0 %v2943, 48
  %v3478 = vpop.permute.xlu0 %3477
  %3479 = vrot.lane.b32.xlu0 %v2945, 48
  %v3480 = vpop.permute.xlu0 %3479
  %3481 = vrot.lane.b32.xlu0 %v2947, 48
  %v3482 = vpop.permute.xlu0 %3481
  %3483 = vrot.lane.b32.xlu0 %v2949, 48
  %v3484 = vpop.permute.xlu0 %3483
  %3485 = vrot.lane.b32.xlu0 %v2951, 48
  %v3486 = vpop.permute.xlu0 %3485
  %3487 = vrot.lane.b32.xlu0 %v2957, 48
  %v3488 = vpop.permute.xlu0 %3487
  %3489 = vrot.lane.b32.xlu0 %v2959, 48
  %v3490 = vpop.permute.xlu0 %3489
  %3491 = vrot.lane.b32.xlu0 %v2961, 48
  %v3492 = vpop.permute.xlu0 %3491
  %3493 = vrot.lane.b32.xlu0 %v2963, 48
  %v3494 = vpop.permute.xlu0 %3493
  %3495 = vrot.lane.b32.xlu0 %v2965, 48
  %v3496 = vpop.permute.xlu0 %3495
  %3497 = vrot.lane.b32.xlu0 %v2967, 48
  %v3498 = vpop.permute.xlu0 %3497
  %3499 = vrot.lane.b32.xlu0 %v2969, 48
  %v3500 = vpop.permute.xlu0 %3499
  %3501 = vrot.lane.b32.xlu0 %v2971, 48
  %v3502 = vpop.permute.xlu0 %3501
  %vm3519 = vcmask 458112
  %3520 = vst.msk [vmem:[#allocation5] sm:$0xff] %vm3519, %v3472
  %3521 = vst.msk [vmem:[#allocation5 + $0x8] sm:$0xff] %vm3519, %v3474
  %3522 = vst.msk [vmem:[#allocation5 + $0x10] sm:$0xff] %vm3519, %v3476
  %3523 = vst.msk [vmem:[#allocation5 + $0x18] sm:$0xff] %vm3519, %v3478
  %3524 = vst.msk [vmem:[#allocation5 + $0x20] sm:$0xff] %vm3519, %v3480
  %3525 = vst.msk [vmem:[#allocation5 + $0x28] sm:$0xff] %vm3519, %v3482
  %3526 = vst.msk [vmem:[#allocation5 + $0x30] sm:$0xff] %vm3519, %v3484
  %3527 = vst.msk [vmem:[#allocation5 + $0x38] sm:$0xff] %vm3519, %v3486
  %3528 = vst.msk [vmem:[#allocation5 + $0x40] sm:$0xff] %vm3519, %v3488
  %3529 = vst.msk [vmem:[#allocation5 + $0x48] sm:$0xff] %vm3519, %v3490
  %3530 = vst.msk [vmem:[#allocation5 + $0x50] sm:$0xff] %vm3519, %v3492
  %3531 = vst.msk [vmem:[#allocation5 + $0x58] sm:$0xff] %vm3519, %v3494
  %3532 = vst.msk [vmem:[#allocation5 + $0x60] sm:$0xff] %vm3519, %v3496
  %3533 = vst.msk [vmem:[#allocation5 + $0x68] sm:$0xff] %vm3519, %v3498
  %3534 = vst.msk [vmem:[#allocation5 + $0x70] sm:$0xff] %vm3519, %v3500
  %3535 = vst.msk [vmem:[#allocation5 + $0x78] sm:$0xff] %vm3519, %v3502
  %v3538 = vrot.slane %v2951, 1
  %v3539 = vrot.slane %v2952, 1
  %v3540 = vsel %vm1851, %v3538, %v3539
  %v3541 = vrot.slane %v2971, 1
  %v3542 = vrot.slane %v2972, 1
  %v3543 = vsel %vm1851, %v3541, %v3542
  %3544 = vrot.lane.b32.xlu0 %v3040, 56
  %v3545 = vpop.permute.xlu0 %3544
  %3546 = vrot.lane.b32.xlu0 %v3043, 56
  %v3547 = vpop.permute.xlu0 %3546
  %3548 = vrot.lane.b32.xlu0 %v3046, 56
  %v3549 = vpop.permute.xlu0 %3548
  %3550 = vrot.lane.b32.xlu0 %v3049, 56
  %v3551 = vpop.permute.xlu0 %3550
  %3552 = vrot.lane.b32.xlu0 %v3052, 56
  %v3553 = vpop.permute.xlu0 %3552
  %3554 = vrot.lane.b32.xlu0 %v3055, 56
  %v3555 = vpop.permute.xlu0 %3554
  %3556 = vrot.lane.b32.xlu0 %v3329, 56
  %v3557 = vpop.permute.xlu0 %3556
  %3558 = vrot.lane.b32.xlu0 %v3540, 56
  %v3559 = vpop.permute.xlu0 %3558
  %3560 = vrot.lane.b32.xlu0 %v3064, 56
  %v3561 = vpop.permute.xlu0 %3560
  %3562 = vrot.lane.b32.xlu0 %v3067, 56
  %v3563 = vpop.permute.xlu0 %3562
  %3564 = vrot.lane.b32.xlu0 %v3070, 56
  %v3565 = vpop.permute.xlu0 %3564
  %3566 = vrot.lane.b32.xlu0 %v3073, 56
  %v3567 = vpop.permute.xlu0 %3566
  %3568 = vrot.lane.b32.xlu0 %v3076, 56
  %v3569 = vpop.permute.xlu0 %3568
  %3570 = vrot.lane.b32.xlu0 %v3079, 56
  %v3571 = vpop.permute.xlu0 %3570
  %3572 = vrot.lane.b32.xlu0 %v3332, 56
  %v3573 = vpop.permute.xlu0 %3572
  %3574 = vrot.lane.b32.xlu0 %v3543, 56
  %v3575 = vpop.permute.xlu0 %3574
  %vm3592 = vcmask 523712
  %3593 = vst.msk [vmem:[#allocation5] sm:$0xff] %vm3592, %v3545
  %3594 = vst.msk [vmem:[#allocation5 + $0x8] sm:$0xff] %vm3592, %v3547
  %3595 = vst.msk [vmem:[#allocation5 + $0x10] sm:$0xff] %vm3592, %v3549
  %3596 = vst.msk [vmem:[#allocation5 + $0x18] sm:$0xff] %vm3592, %v3551
  %3597 = vst.msk [vmem:[#allocation5 + $0x20] sm:$0xff] %vm3592, %v3553
  %3598 = vst.msk [vmem:[#allocation5 + $0x28] sm:$0xff] %vm3592, %v3555
  %3599 = vst.msk [vmem:[#allocation5 + $0x30] sm:$0xff] %vm3592, %v3557
  %3600 = vst.msk [vmem:[#allocation5 + $0x38] sm:$0xff] %vm3592, %v3559
  %3601 = vst.msk [vmem:[#allocation5 + $0x40] sm:$0xff] %vm3592, %v3561
  %3602 = vst.msk [vmem:[#allocation5 + $0x48] sm:$0xff] %vm3592, %v3563
  %3603 = vst.msk [vmem:[#allocation5 + $0x50] sm:$0xff] %vm3592, %v3565
  %3604 = vst.msk [vmem:[#allocation5 + $0x58] sm:$0xff] %vm3592, %v3567
  %3605 = vst.msk [vmem:[#allocation5 + $0x60] sm:$0xff] %vm3592, %v3569
  %3606 = vst.msk [vmem:[#allocation5 + $0x68] sm:$0xff] %vm3592, %v3571
  %3607 = vst.msk [vmem:[#allocation5 + $0x70] sm:$0xff] %vm3592, %v3573
  %3608 = vst.msk [vmem:[#allocation5 + $0x78] sm:$0xff] %vm3592, %v3575
  %v3609 = vrot.slane %v2951, 2
  %v3610 = vrot.slane %v2952, 2
  %v3611 = vsel %vm1965, %v3609, %v3610
  %v3612 = vrot.slane %v2971, 2
  %v3613 = vrot.slane %v2972, 2
  %v3614 = vsel %vm1965, %v3612, %v3613
  %3615 = vrot.lane.b32.xlu0 %v3153, 64
  %v3616 = vpop.permute.xlu0 %3615
  %3617 = vrot.lane.b32.xlu0 %v3156, 64
  %v3618 = vpop.permute.xlu0 %3617
  %3619 = vrot.lane.b32.xlu0 %v3159, 64
  %v3620 = vpop.permute.xlu0 %3619
  %3621 = vrot.lane.b32.xlu0 %v3162, 64
  %v3622 = vpop.permute.xlu0 %3621
  %3623 = vrot.lane.b32.xlu0 %v3165, 64
  %v3624 = vpop.permute.xlu0 %3623
  %3625 = vrot.lane.b32.xlu0 %v3168, 64
  %v3626 = vpop.permute.xlu0 %3625
  %3627 = vrot.lane.b32.xlu0 %v3400, 64
  %v3628 = vpop.permute.xlu0 %3627
  %3629 = vrot.lane.b32.xlu0 %v3611, 64
  %v3630 = vpop.permute.xlu0 %3629
  %3631 = vrot.lane.b32.xlu0 %v3177, 64
  %v3632 = vpop.permute.xlu0 %3631
  %3633 = vrot.lane.b32.xlu0 %v3180, 64
  %v3634 = vpop.permute.xlu0 %3633
  %3635 = vrot.lane.b32.xlu0 %v3183, 64
  %v3636 = vpop.permute.xlu0 %3635
  %3637 = vrot.lane.b32.xlu0 %v3186, 64
  %v3638 = vpop.permute.xlu0 %3637
  %3639 = vrot.lane.b32.xlu0 %v3189, 64
  %v3640 = vpop.permute.xlu0 %3639
  %3641 = vrot.lane.b32.xlu0 %v3192, 64
  %v3642 = vpop.permute.xlu0 %3641
  %3643 = vrot.lane.b32.xlu0 %v3403, 64
  %v3644 = vpop.permute.xlu0 %3643
  %3645 = vrot.lane.b32.xlu0 %v3614, 64
  %v3646 = vpop.permute.xlu0 %3645
  %vm3663 = vcmask 589312
  %3664 = vst.msk [vmem:[#allocation5] sm:$0xff] %vm3663, %v3616
  %3665 = vst.msk [vmem:[#allocation5 + $0x8] sm:$0xff] %vm3663, %v3618
  %3666 = vst.msk [vmem:[#allocation5 + $0x10] sm:$0xff] %vm3663, %v3620
  %3667 = vst.msk [vmem:[#allocation5 + $0x18] sm:$0xff] %vm3663, %v3622
  %3668 = vst.msk [vmem:[#allocation5 + $0x20] sm:$0xff] %vm3663, %v3624
  %3669 = vst.msk [vmem:[#allocation5 + $0x28] sm:$0xff] %vm3663, %v3626
  %3670 = vst.msk [vmem:[#allocation5 + $0x30] sm:$0xff] %vm3663, %v3628
  %3671 = vst.msk [vmem:[#allocation5 + $0x38] sm:$0xff] %vm3663, %v3630
  %3672 = vst.msk [vmem:[#allocation5 + $0x40] sm:$0xff] %vm3663, %v3632
  %3673 = vst.msk [vmem:[#allocation5 + $0x48] sm:$0xff] %vm3663, %v3634
  %3674 = vst.msk [vmem:[#allocation5 + $0x50] sm:$0xff] %vm3663, %v3636
  %3675 = vst.msk [vmem:[#allocation5 + $0x58] sm:$0xff] %vm3663, %v3638
  %3676 = vst.msk [vmem:[#allocation5 + $0x60] sm:$0xff] %vm3663, %v3640
  %3677 = vst.msk [vmem:[#allocation5 + $0x68] sm:$0xff] %vm3663, %v3642
  %3678 = vst.msk [vmem:[#allocation5 + $0x70] sm:$0xff] %vm3663, %v3644
  %3679 = vst.msk [vmem:[#allocation5 + $0x78] sm:$0xff] %vm3663, %v3646
  %v3680 = vld [vmem:[#allocation5] sm:$0xff]
  %v3681 = vld [vmem:[#allocation5 + $0x8] sm:$0xff]
  %v3682 = vld [vmem:[#allocation5 + $0x10] sm:$0xff]
  %v3683 = vld [vmem:[#allocation5 + $0x18] sm:$0xff]
  %v3684 = vld [vmem:[#allocation5 + $0x20] sm:$0xff]
  %v3685 = vld [vmem:[#allocation5 + $0x28] sm:$0xff]
  %v3686 = vld [vmem:[#allocation5 + $0x30] sm:$0xff]
  %v3687 = vld [vmem:[#allocation5 + $0x38] sm:$0xff]
  %v3688 = vld [vmem:[#allocation5 + $0x40] sm:$0xff]
  %v3689 = vld [vmem:[#allocation5 + $0x48] sm:$0xff]
  %v3690 = vld [vmem:[#allocation5 + $0x50] sm:$0xff]
  %v3691 = vld [vmem:[#allocation5 + $0x58] sm:$0xff]
  %v3692 = vld [vmem:[#allocation5 + $0x60] sm:$0xff]
  %v3693 = vld [vmem:[#allocation5 + $0x68] sm:$0xff]
  %v3694 = vld [vmem:[#allocation5 + $0x70] sm:$0xff]
  %v3695 = vld [vmem:[#allocation5 + $0x78] sm:$0xff]
  %vm3696 = vcmask 588800
  %v3698 = vsel %vm3696, %v3680, 0
  %v3701 = vsel %vm3696, %v3681, 0
  %v3704 = vsel %vm3696, %v3682, 0
  %v3707 = vsel %vm3696, %v3683, 0
  %v3710 = vsel %vm3696, %v3684, 0
  %v3713 = vsel %vm3696, %v3685, 0
  %v3716 = vsel %vm3696, %v3686, 0
  %v3719 = vsel %vm3696, %v3687, 0
  %v3722 = vsel %vm3696, %v3688, 0
  %v3725 = vsel %vm3696, %v3689, 0
  %v3728 = vsel %vm3696, %v3690, 0
  %v3731 = vsel %vm3696, %v3691, 0
  %v3734 = vsel %vm3696, %v3692, 0
  %v3737 = vsel %vm3696, %v3693, 0
  %v3740 = vsel %vm3696, %v3694, 0
  %v3743 = vsel %vm3696, %v3695, 0
  %3745 = vmatprep.subr.mxu0 0.0
  %3746 = vmatpush1.msra.mxu0 %v2973
  %3747 = vmatprep.subr.mxu0 0.0
  %3748 = vmatpush1.msra.mxu0 %v2974
  %3749 = vmatprep.subr.mxu0 0.0
  %3750 = vmatpush1.msra.mxu0 %v2975
  %3751 = vmatprep.subr.mxu0 0.0
  %3752 = vmatpush1.msra.mxu0 %v2976
  %3753 = vmatprep.subr.mxu0 0.0
  %3754 = vmatpush1.msra.mxu0 %v2977
  %3755 = vmatprep.subr.mxu0 0.0
  %3756 = vmatpush1.msra.mxu0 %v2978
  %3757 = vmatprep.subr.mxu0 0.0
  %3758 = vmatpush1.msra.mxu0 %v2979
  %3759 = vmatprep.subr.mxu0 0.0
  %3760 = vmatpush1.msra.mxu0 %v2980
  %3761 = vmatprep.subr.mxu0 0.0
  %3762 = vmatpush1.msra.mxu0 %v2981
  %3763 = vmatprep.subr.mxu0 0.0
  %3764 = vmatpush1.msra.mxu0 0.0
  %3765 = vmatprep.subr.mxu0 0.0
  %3766 = vmatpush1.msra.mxu0 0.0
  %3767 = vmatprep.subr.mxu0 0.0
  %3768 = vmatpush1.msra.mxu0 0.0
  %3769 = vmatprep.subr.mxu0 0.0
  %3770 = vmatpush1.msra.mxu0 0.0
  %3771 = vmatprep.subr.mxu0 0.0
  %3772 = vmatpush1.msra.mxu0 0.0
  %3773 = vmatprep.subr.mxu0 0.0
  %3774 = vmatpush1.msra.mxu0 0.0
  %3775 = vmatprep.subr.mxu0 0.0
  %3776 = vmatpush1.msra.mxu0 0.0
  %3777 = vmatprep.subr.mxu0 0.0
  %3778 = vmatpush1.msra.mxu0 0.0
  %3779 = vmatprep.subr.mxu0 0.0
  %3780 = vmatpush1.msra.mxu0 0.0
  %3781 = vmatprep.subr.mxu0 0.0
  %3782 = vmatpush1.msra.mxu0 0.0
  %3783 = vmatprep.subr.mxu0 0.0
  %3784 = vmatpush1.msra.mxu0 0.0
  %3785 = vmatprep.subr.mxu0 0.0
  %3786 = vmatpush1.msra.mxu0 0.0
  %3787 = vmatprep.subr.mxu0 0.0
  %3788 = vmatpush1.msra.mxu0 0.0
  %3789 = vmatprep.subr.mxu0 0.0
  %3790 = vmatpush1.msra.mxu0 0.0
  %3791 = vmatprep.subr.mxu0 0.0
  %3792 = vmatpush1.msra.mxu0 0.0
  %3793 = vmatprep.subr.mxu0 0.0
  %3794 = vmatpush1.msra.mxu0 0.0
  %3795 = vmatprep.subr.mxu0 0.0
  %3796 = vmatpush1.msra.mxu0 0.0
  %3797 = vmatprep.subr.mxu0 0.0
  %3798 = vmatpush1.msra.mxu0 0.0
  %3799 = vmatprep.subr.mxu0 0.0
  %3800 = vmatpush1.msra.mxu0 0.0
  %3801 = vmatprep.subr.mxu0 0.0
  %3802 = vmatpush1.msra.mxu0 0.0
  %3803 = vmatprep.subr.mxu0 0.0
  %3804 = vmatpush1.msra.mxu0 0.0
  %3805 = vmatprep.subr.mxu0 0.0
  %3806 = vmatpush1.msra.mxu0 0.0
  %3807 = vmatprep.subr.mxu0 0.0
  %3808 = vmatpush1.msra.mxu0 0.0
  %3809 = vmatprep.mubr.f32.mxu0 0.0
  %3810 = vmatmul.mubr.f32.gmra.mrb[0].mxu0 %v3698
  %v3811 = vpop.f32.mrb[0].mxu0
  %v3812 = vadd.f32 0.0, %v3811
  %v3813 = vpop.f32.mrb[0].mxu0
  %3814 = vmatprep.mubr.f32.mxu0 0.0
  %3815 = vmatmul.mubr.f32.gmra.mrb[0].mxu0 %v3701
  %v3816 = vpop.f32.mrb[0].mxu0
  %v3817 = vadd.f32 0.0, %v3816
  %v3818 = vpop.f32.mrb[0].mxu0
  %3819 = vmatprep.mubr.f32.mxu0 0.0
  %3820 = vmatmul.mubr.f32.gmra.mrb[0].mxu0 %v3704
  %v3821 = vpop.f32.mrb[0].mxu0
  %v3822 = vadd.f32 0.0, %v3821
  %v3823 = vpop.f32.mrb[0].mxu0
  %3824 = vmatprep.mubr.f32.mxu0 0.0
  %3825 = vmatmul.mubr.f32.gmra.mrb[0].mxu0 %v3707
  %v3826 = vpop.f32.mrb[0].mxu0
  %v3827 = vadd.f32 0.0, %v3826
  %v3828 = vpop.f32.mrb[0].mxu0
  %3829 = vmatprep.mubr.f32.mxu0 0.0
  %3830 = vmatmul.mubr.f32.gmra.mrb[0].mxu0 %v3710
  %v3831 = vpop.f32.mrb[0].mxu0
  %v3832 = vadd.f32 0.0, %v3831
  %v3833 = vpop.f32.mrb[0].mxu0
  %3834 = vmatprep.mubr.f32.mxu0 0.0
  %3835 = vmatmul.mubr.f32.gmra.mrb[0].mxu0 %v3713
  %v3836 = vpop.f32.mrb[0].mxu0
  %v3837 = vadd.f32 0.0, %v3836
  %v3838 = vpop.f32.mrb[0].mxu0
  %3839 = vmatprep.mubr.f32.mxu0 0.0
  %3840 = vmatmul.mubr.f32.gmra.mrb[0].mxu0 %v3716
  %v3841 = vpop.f32.mrb[0].mxu0
  %v3842 = vadd.f32 0.0, %v3841
  %v3843 = vpop.f32.mrb[0].mxu0
  %3844 = vmatprep.mubr.f32.mxu0 0.0
  %3845 = vmatmul.mubr.f32.gmra.mrb[0].mxu0 %v3719
  %v3846 = vpop.f32.mrb[0].mxu0
  %v3847 = vadd.f32 0.0, %v3846
  %v3848 = vpop.f32.mrb[0].mxu0
  %3849 = vmatprep.mubr.f32.mxu0 0.0
  %3850 = vmatmul.mubr.f32.gmra.mrb[0].mxu0 %v3722
  %v3851 = vpop.f32.mrb[0].mxu0
  %v3852 = vadd.f32 0.0, %v3851
  %v3853 = vpop.f32.mrb[0].mxu0
  %3854 = vmatprep.mubr.f32.mxu0 0.0
  %3855 = vmatmul.mubr.f32.gmra.mrb[0].mxu0 %v3725
  %v3856 = vpop.f32.mrb[0].mxu0
  %v3857 = vadd.f32 0.0, %v3856
  %v3858 = vpop.f32.mrb[0].mxu0
  %3859 = vmatprep.mubr.f32.mxu0 0.0
  %3860 = vmatmul.mubr.f32.gmra.mrb[0].mxu0 %v3728
  %v3861 = vpop.f32.mrb[0].mxu0
  %v3862 = vadd.f32 0.0, %v3861
  %v3863 = vpop.f32.mrb[0].mxu0
  %3864 = vmatprep.mubr.f32.mxu0 0.0
  %3865 = vmatmul.mubr.f32.gmra.mrb[0].mxu0 %v3731
  %v3866 = vpop.f32.mrb[0].mxu0
  %v3867 = vadd.f32 0.0, %v3866
  %v3868 = vpop.f32.mrb[0].mxu0
  %3869 = vmatprep.mubr.f32.mxu0 0.0
  %3870 = vmatmul.mubr.f32.gmra.mrb[0].mxu0 %v3734
  %v3871 = vpop.f32.mrb[0].mxu0
  %v3872 = vadd.f32 0.0, %v3871
  %v3873 = vpop.f32.mrb[0].mxu0
  %3874 = vmatprep.mubr.f32.mxu0 0.0
  %3875 = vmatmul.mubr.f32.gmra.mrb[0].mxu0 %v3737
  %v3876 = vpop.f32.mrb[0].mxu0
  %v3877 = vadd.f32 0.0, %v3876
  %v3878 = vpop.f32.mrb[0].mxu0
  %3879 = vmatprep.mubr.f32.mxu0 0.0
  %3880 = vmatmul.mubr.f32.gmra.mrb[0].mxu0 %v3740
  %v3881 = vpop.f32.mrb[0].mxu0
  %v3882 = vadd.f32 0.0, %v3881
  %v3883 = vpop.f32.mrb[0].mxu0
  %3884 = vmatprep.mubr.f32.mxu0 0.0
  %3885 = vmatmul.mubr.f32.gmra.mrb[0].mxu0 %v3743
  %v3886 = vpop.f32.mrb[0].mxu0
  %v3887 = vadd.f32 0.0, %v3886
  %v3888 = vpop.f32.mrb[0].mxu0
  %3889 = vdwg.mxu0
  %v3890 = vsel %vm2715, %v3812, 0.0
  %v3891 = vsel %vm2715, %v3817, 0.0
  %v3892 = vadd.f32 %v3890, %v3891
  %v3893 = vsel %vm2715, %v3822, 0.0
  %v3894 = vadd.f32 %v3892, %v3893
  %v3895 = vsel %vm2715, %v3827, 0.0
  %v3896 = vadd.f32 %v3894, %v3895
  %v3897 = vsel %vm2715, %v3832, 0.0
  %v3898 = vadd.f32 %v3896, %v3897
  %v3899 = vsel %vm2715, %v3837, 0.0
  %v3900 = vadd.f32 %v3898, %v3899
  %v3901 = vsel %vm2715, %v3842, 0.0
  %v3902 = vadd.f32 %v3900, %v3901
  %v3903 = vsel %vm2715, %v3847, 0.0
  %v3904 = vadd.f32 %v3902, %v3903
  %v3905 = vsel %vm2715, %v3852, 0.0
  %v3906 = vadd.f32 %v3904, %v3905
  %v3907 = vsel %vm2715, %v3857, 0.0
  %v3908 = vadd.f32 %v3906, %v3907
  %v3909 = vsel %vm2715, %v3862, 0.0
  %v3910 = vadd.f32 %v3908, %v3909
  %v3911 = vsel %vm2715, %v3867, 0.0
  %v3912 = vadd.f32 %v3910, %v3911
  %v3913 = vsel %vm2715, %v3872, 0.0
  %v3914 = vadd.f32 %v3912, %v3913
  %v3915 = vsel %vm2715, %v3877, 0.0
  %v3916 = vadd.f32 %v3914, %v3915
  %v3917 = vsel %vm2715, %v3882, 0.0
  %v3918 = vadd.f32 %v3916, %v3917
  %v3919 = vsel %vm2715, %v3887, 0.0
  %v3920 = vadd.f32 %v3918, %v3919
  %v3921 = vrot.slane %v3920, 4
  %v3922 = vadd.f32 %v3920, %v3921
  %v3923 = vrot.slane %v3922, 2
  %v3924 = vadd.f32 %v3922, %v3923
  %v3925 = vrot.slane %v3924, 1
  %v3926 = vadd.f32 %v3924, %v3925
  %v3927 = vmul.f32 %v3926, 0.0078125
  %v3928 = vmul.f32 %v3812, %v3812
  %v3929 = vmul.f32 %v3817, %v3817
  %v3930 = vmul.f32 %v3822, %v3822
  %v3931 = vmul.f32 %v3827, %v3827
  %v3932 = vmul.f32 %v3832, %v3832
  %v3933 = vmul.f32 %v3837, %v3837
  %v3934 = vmul.f32 %v3842, %v3842
  %v3935 = vmul.f32 %v3847, %v3847
  %v3936 = vmul.f32 %v3852, %v3852
  %v3937 = vmul.f32 %v3857, %v3857
  %v3938 = vmul.f32 %v3862, %v3862
  %v3939 = vmul.f32 %v3867, %v3867
  %v3940 = vmul.f32 %v3872, %v3872
  %v3941 = vmul.f32 %v3877, %v3877
  %v3942 = vmul.f32 %v3882, %v3882
  %v3943 = vmul.f32 %v3887, %v3887
  %v3944 = vsel %vm2715, %v3928, 0.0
  %v3945 = vsel %vm2715, %v3929, 0.0
  %v3946 = vadd.f32 %v3944, %v3945
  %v3947 = vsel %vm2715, %v3930, 0.0
  %v3948 = vadd.f32 %v3946, %v3947
  %v3949 = vsel %vm2715, %v3931, 0.0
  %v3950 = vadd.f32 %v3948, %v3949
  %v3951 = vsel %vm2715, %v3932, 0.0
  %v3952 = vadd.f32 %v3950, %v3951
  %v3953 = vsel %vm2715, %v3933, 0.0
  %v3954 = vadd.f32 %v3952, %v3953
  %v3955 = vsel %vm2715, %v3934, 0.0
  %v3956 = vadd.f32 %v3954, %v3955
  %v3957 = vsel %vm2715, %v3935, 0.0
  %v3958 = vadd.f32 %v3956, %v3957
  %v3959 = vsel %vm2715, %v3936, 0.0
  %v3960 = vadd.f32 %v3958, %v3959
  %v3961 = vsel %vm2715, %v3937, 0.0
  %v3962 = vadd.f32 %v3960, %v3961
  %v3963 = vsel %vm2715, %v3938, 0.0
  %v3964 = vadd.f32 %v3962, %v3963
  %v3965 = vsel %vm2715, %v3939, 0.0
  %v3966 = vadd.f32 %v3964, %v3965
  %v3967 = vsel %vm2715, %v3940, 0.0
  %v3968 = vadd.f32 %v3966, %v3967
  %v3969 = vsel %vm2715, %v3941, 0.0
  %v3970 = vadd.f32 %v3968, %v3969
  %v3971 = vsel %vm2715, %v3942, 0.0
  %v3972 = vadd.f32 %v3970, %v3971
  %v3973 = vsel %vm2715, %v3943, 0.0
  %v3974 = vadd.f32 %v3972, %v3973
  %v3975 = vrot.slane %v3974, 4
  %v3976 = vadd.f32 %v3974, %v3975
  %v3977 = vrot.slane %v3976, 2
  %v3978 = vadd.f32 %v3976, %v3977
  %v3979 = vrot.slane %v3978, 1
  %v3980 = vadd.f32 %v3978, %v3979
  %v3981 = vmul.f32 %v3980, 0.0078125
  %v3982 = vmul.f32 %v3927, %v3927
  %v3983 = vsub.f32 %v3981, %v3982
  %v3984 = vadd.f32 %v3983, 1e-05
  %v3985 = vrsqrt.pop %v3984
  %v3986 = vmul.f32 %v2982, %v3985
  %v3987 = vmul.f32 %v3927, %v3986
  %v3988 = vsub.f32 %v2983, %v3987
  %v3990 = vlaneseq
  %v3991 = vshrl.u32 %v3990, 7
  %v3992 = vsub.s32 0, %v3991
  %v3993 = vrot.slane %v3986, %v3992
  %v3995 = vmul.f32 %v3812, %v3993
  %v3996 = vmul.f32 %v3817, %v3993
  %v3997 = vmul.f32 %v3822, %v3993
  %v3998 = vmul.f32 %v3827, %v3993
  %v3999 = vmul.f32 %v3832, %v3993
  %v4000 = vmul.f32 %v3837, %v3993
  %v4001 = vmul.f32 %v3842, %v3993
  %v4002 = vmul.f32 %v3847, %v3993
  %v4003 = vmul.f32 %v3852, %v3993
  %v4004 = vmul.f32 %v3857, %v3993
  %v4005 = vmul.f32 %v3862, %v3993
  %v4006 = vmul.f32 %v3867, %v3993
  %v4007 = vmul.f32 %v3872, %v3993
  %v4008 = vmul.f32 %v3877, %v3993
  %v4009 = vmul.f32 %v3882, %v3993
  %v4010 = vmul.f32 %v3887, %v3993
  %v4012 = vlaneseq
  %v4013 = vshrl.u32 %v4012, 7
  %v4014 = vsub.s32 0, %v4013
  %v4015 = vrot.slane %v3988, %v4014
  %v4017 = vadd.f32 %v3995, %v4015
  %v4018 = vadd.f32 %v3996, %v4015
  %v4019 = vadd.f32 %v3997, %v4015
  %v4020 = vadd.f32 %v3998, %v4015
  %v4021 = vadd.f32 %v3999, %v4015
  %v4022 = vadd.f32 %v4000, %v4015
  %v4023 = vadd.f32 %v4001, %v4015
  %v4024 = vadd.f32 %v4002, %v4015
  %v4025 = vadd.f32 %v4003, %v4015
  %v4026 = vadd.f32 %v4004, %v4015
  %v4027 = vadd.f32 %v4005, %v4015
  %v4028 = vadd.f32 %v4006, %v4015
  %v4029 = vadd.f32 %v4007, %v4015
  %v4030 = vadd.f32 %v4008, %v4015
  %v4031 = vadd.f32 %v4009, %v4015
  %v4032 = vadd.f32 %v4010, %v4015
  %v4033 = vmax.f32 %v4017, 0.0
  %v4034 = vmax.f32 %v4018, 0.0
  %v4035 = vmax.f32 %v4019, 0.0
  %v4036 = vmax.f32 %v4020, 0.0
  %v4037 = vmax.f32 %v4021, 0.0
  %v4038 = vmax.f32 %v4022, 0.0
  %v4039 = vmax.f32 %v4023, 0.0
  %v4040 = vmax.f32 %v4024, 0.0
  %v4041 = vmax.f32 %v4025, 0.0
  %v4042 = vmax.f32 %v4026, 0.0
  %v4043 = vmax.f32 %v4027, 0.0
  %v4044 = vmax.f32 %v4028, 0.0
  %v4045 = vmax.f32 %v4029, 0.0
  %v4046 = vmax.f32 %v4030, 0.0
  %v4047 = vmax.f32 %v4031, 0.0
  %v4048 = vmax.f32 %v4032, 0.0
  %4049 = vxpose.xlu0.b32.start [1/16] %v4033, 128
  %4050 = vxpose.xlu0.b32.cont [2/16] %v4034, 128
  %4051 = vxpose.xlu0.b32.cont [3/16] %v4035, 128
  %4052 = vxpose.xlu0.b32.cont [4/16] %v4036, 128
  %4053 = vxpose.xlu0.b32.cont [5/16] %v4037, 128
  %4054 = vxpose.xlu0.b32.cont [6/16] %v4038, 128
  %4055 = vxpose.xlu0.b32.cont [7/16] %v4039, 128
  %4056 = vxpose.xlu0.b32.cont [8/16] %v4040, 128
  %4057 = vxpose.xlu0.b32.cont [9/16] 0.0, 128
  %4058 = vxpose.xlu0.b32.cont [10/16] 0.0, 128
  %4059 = vxpose.xlu0.b32.cont [11/16] 0.0, 128
  %4060 = vxpose.xlu0.b32.cont [12/16] 0.0, 128
  %4061 = vxpose.xlu0.b32.cont [13/16] 0.0, 128
  %4062 = vxpose.xlu0.b32.cont [14/16] 0.0, 128
  %4063 = vxpose.xlu0.b32.cont [15/16] 0.0, 128
  %4064 = vxpose.xlu0.b32.end [16/16] 0.0, 128
  %v4065 = vpop.trf.xlu0
  %v4066 = vpop.trf.xlu0
  %v4067 = vpop.trf.xlu0
  %v4068 = vpop.trf.xlu0
  %v4069 = vpop.trf.xlu0
  %v4070 = vpop.trf.xlu0
  %v4071 = vpop.trf.xlu0
  %v4072 = vpop.trf.xlu0
  %v4073 = vpop.trf.xlu0
  %v4074 = vpop.trf.xlu0
  %v4075 = vpop.trf.xlu0
  %v4076 = vpop.trf.xlu0
  %v4077 = vpop.trf.xlu0
  %v4078 = vpop.trf.xlu0
  %v4079 = vpop.trf.xlu0
  %v4080 = vpop.trf.xlu0
  %4081 = vxpose.xlu0.b32.start [1/16] %v4041, 128
  %4082 = vxpose.xlu0.b32.cont [2/16] %v4042, 128
  %4083 = vxpose.xlu0.b32.cont [3/16] %v4043, 128
  %4084 = vxpose.xlu0.b32.cont [4/16] %v4044, 128
  %4085 = vxpose.xlu0.b32.cont [5/16] %v4045, 128
  %4086 = vxpose.xlu0.b32.cont [6/16] %v4046, 128
  %4087 = vxpose.xlu0.b32.cont [7/16] %v4047, 128
  %4088 = vxpose.xlu0.b32.cont [8/16] %v4048, 128
  %4089 = vxpose.xlu0.b32.cont [9/16] 0.0, 128
  %4090 = vxpose.xlu0.b32.cont [10/16] 0.0, 128
  %4091 = vxpose.xlu0.b32.cont [11/16] 0.0, 128
  %4092 = vxpose.xlu0.b32.cont [12/16] 0.0, 128
  %4093 = vxpose.xlu0.b32.cont [13/16] 0.0, 128
  %4094 = vxpose.xlu0.b32.cont [14/16] 0.0, 128
  %4095 = vxpose.xlu0.b32.cont [15/16] 0.0, 128
  %4096 = vxpose.xlu0.b32.end [16/16] 0.0, 128
  %v4097 = vpop.trf.xlu0
  %v4098 = vpop.trf.xlu0
  %v4099 = vpop.trf.xlu0
  %v4100 = vpop.trf.xlu0
  %v4101 = vpop.trf.xlu0
  %v4102 = vpop.trf.xlu0
  %v4103 = vpop.trf.xlu0
  %v4104 = vpop.trf.xlu0
  %v4105 = vpop.trf.xlu0
  %v4106 = vpop.trf.xlu0
  %v4107 = vpop.trf.xlu0
  %v4108 = vpop.trf.xlu0
  %v4109 = vpop.trf.xlu0
  %v4110 = vpop.trf.xlu0
  %v4111 = vpop.trf.xlu0
  %v4112 = vpop.trf.xlu0
  %vm4113 = vcmask 523264
  %4114 = vst.msk [vmem:[%s7] sm:$0xff] %vm4113, %v4065
  %4115 = vst.msk [vmem:[%s7 + $0x8] sm:$0xff] %vm4113, %v4097
  // Predicated region
  $region30: #{down_forward.1} parent=0 // pred_check
    _
  $region31: #{down_forward.1} parent=0 // pred_check_branch
    %4117 = sbr.rel (0) target = $region33
  $region32: #{down_forward.1} parent=0 // pred_region
    _
  $region33: #{down_forward.1} parent=0 // pred_fallthru
    _
  // Predicated region
  $region34: #{down_forward.1} parent=0 // pred_check
    _
  $region35: #{down_forward.1} parent=0 // pred_check_branch
    %4119 = sbr.rel (0) target = $region37
  $region36: #{down_forward.1} parent=0 // pred_region
    _
  $region37: #{down_forward.1} parent=0 // pred_fallthru
    _

</llo_original>
